<compile_context>
chip_gen: v7x
topology: tpu7x:2x2x1
jax: 0.10.0
libtpu: 0.0.40
codegen_flags: <defaults>
</compile_context>

<pallas_src>
import jax
import jax.numpy as jnp
from jax.experimental import pallas as pl
from jax.experimental.pallas import tpu as pltpu

MATMUL_DTYPE = jnp.bfloat16   # storage / MXU dtype (set jnp.float32 for exact f32)
B_TILE_MAX = 32               # boards per grid step (sized for 32 MiB scoped VMEM)


def _round_up(x, m):
    return ((x + m - 1) // m) * m


def _pick_b_tile(n, max_tile=B_TILE_MAX):
    # Keep >= 2 grid steps when possible (v7x has 2 TensorCores and the grid
    # axis is "parallel"); cap the tile so live intermediates stay well inside
    # 32 MiB scoped VMEM on all of v5e / v6e / v7x.
    if n <= 1:
        return 1
    return max(1, min(max_tile, -(-n // 2)))


# ----------------------------------------------------------------------------
# Parameters (synthetic, torch layouts) and one-time kernel-layout preparation.
# ----------------------------------------------------------------------------
def init_params(key, board_w, board_h):
    """Deterministic synthetic parameters in the PyTorch layouts:
    conv weights (Cout, Cin, kh, kw), conv biases (Cout,),
    linear weights (out, in), linear biases (out,)."""
    hw = board_w * board_h
    shapes = {
        "conv1_w": (32, 4, 3, 3),      "conv1_b": (32,),
        "conv2_w": (64, 32, 3, 3),     "conv2_b": (64,),
        "conv3_w": (128, 64, 3, 3),    "conv3_b": (128,),
        "act_conv1_w": (4, 128, 1, 1), "act_conv1_b": (4,),
        "act_fc1_w": (hw, 4 * hw),     "act_fc1_b": (hw,),
        "val_conv1_w": (2, 128, 1, 1), "val_conv1_b": (2,),
        "val_fc1_w": (64, 2 * hw),     "val_fc1_b": (64,),
        "val_fc2_w": (1, 64),          "val_fc2_b": (1,),
    }
    params = {}
    keys = jax.random.split(key, len(shapes))
    for k_rng, (name, shape) in zip(keys, sorted(shapes.items())):
        params[name] = (0.05 * jax.random.normal(k_rng, shape)).astype(jnp.float32)
    return params


def prepare_params(p, matmul_dtype=MATMUL_DTYPE):
    """One-time (outside jit) conversion to kernel-friendly layouts.

    * 3x3 conv weights -> (9*Cin, Cout), rows in (dy, dx, ci) order matching
      the im2col lane concat.
    * act/val 1x1 head convs are fused into one (128, 8) matrix
      (cols 0..3 act, 4..5 val, 6..7 zero).
    * act_fc1 / val_fc1 (torch (out, in)) are transposed and split per head
      channel into (4, HW, HW) / (2, HW, 64) so the FCs become accumulating
      per-channel MXU dots (reproducing torch's channel-major .view flatten).
    * val_fc2 is transposed and zero-padded to (64, 64) so the value is
      produced in a lane-dense block (extra lanes hold tanh(0)=0).
    * The 8 bias vectors are packed into one (8, 128) f32 array.
    """
    f32 = jnp.float32
    hw = p["act_fc1_b"].shape[0]

    def conv_w(w):                       # (Cout, Cin, 3, 3) -> (9*Cin, Cout)
        w = jnp.transpose(w, (2, 3, 1, 0))
        return w.reshape(-1, w.shape[-1]).astype(matmul_dtype)

    wa = jnp.transpose(p["act_conv1_w"].reshape(4, 128))     # (128, 4)
    wv = jnp.transpose(p["val_conv1_w"].reshape(2, 128))     # (128, 2)
    whead = jnp.concatenate([wa, wv, jnp.zeros((128, 2), f32)],
                            axis=1).astype(matmul_dtype)     # (128, 8)

    wafc = jnp.transpose(p["act_fc1_w"]).reshape(4, hw, hw).astype(matmul_dtype)
    wv1 = jnp.transpose(p["val_fc1_w"]).reshape(2, hw, 64).astype(matmul_dtype)
    wv2 = jnp.pad(jnp.transpose(p["val_fc2_w"]), ((0, 0), (0, 63))).astype(matmul_dtype)

    biases = jnp.zeros((8, 128), f32)
    biases = biases.at[0, :32].set(p["conv1_b"])
    biases = biases.at[1, :64].set(p["conv2_b"])
    biases = biases.at[2, :128].set(p["conv3_b"])
    biases = biases.at[3, :4].set(p["act_conv1_b"])
    biases = biases.at[3, 4:6].set(p["val_conv1_b"])
    biases = biases.at[4, :hw].set(p["act_fc1_b"])
    biases = biases.at[5, :64].set(p["val_fc1_b"])
    biases = biases.at[6, :1].set(p["val_fc2_b"])

    return {
        "w1": conv_w(p["conv1_w"]),
        "w2": conv_w(p["conv2_w"]),
        "w3": conv_w(p["conv3_w"]),
        "whead": whead,
        "wafc": wafc,
        "wv1": wv1,
        "wv2": wv2,
        "biases": biases,
    }


# ----------------------------------------------------------------------------
# Fused forward pass.
# ----------------------------------------------------------------------------
def net_forward(prep, x_nchw):
    """Equivalent of Net.forward.  x_nchw: (N, 4, H, W) f32.
    Returns (log_act_probs (N, H*W), value (N, 1))."""
    N, C, H, W = x_nchw.shape
    HW = H * W
    assert C == 4
    assert HW == 64, "kernel is specialized to the 8x8 board net"

    # Extended spatial grids: conv1 is evaluated on board coords [-2, H+2) x
    # [-2, ...), conv2 on [-1, H+1) x [-1, ...), conv3 exactly on the board.
    # Out-of-board outputs are zero-masked so the next conv reads true zero
    # padding through plain static slices.  W-extents are multiples of 8.
    WO2 = _round_up(W + 2, 8)
    WO1 = _round_up(WO2 + 2, 8)
    HO1, HO2 = H + 4, H + 2
    HIN, WIN = HO1 + 2, WO1 + 2

    B_TILE = _pick_b_tile(N)
    N_pad = _round_up(N, B_TILE)
    n_steps = N_pad // B_TILE

    # ---- XLA-side layout glue (tiny): NCHW -> padded NHWC frame (board
    # anchored at (3,3)) -> conv1 im2col patches in bf16.
    x = jnp.transpose(x_nchw, (0, 2, 3, 1)).astype(jnp.float32)
    xp = jnp.pad(x, ((0, N_pad - N), (3, HIN - 3 - H), (3, WIN - 3 - W), (0, 0)))
    taps = [xp[:, dy:dy + HO1, dx:dx + WO1, :] for dy in range(3) for dx in range(3)]
    patches1 = jnp.concatenate(taps, axis=-1)                 # (N_pad, HO1, WO1, 36)
    patches1 = patches1.reshape(N_pad, HO1 * WO1, 9 * C).astype(MATMUL_DTYPE)

    # Precomputed 0/1 board masks (constant-folded by XLA), packed in one array:
    # lane 0 = conv1 extended-grid mask (board at (2,2)),
    # lane 1 = conv2 extended-grid mask (board at (1,1), stored top-left).
    def board_mask(ho, wo, oh, ow):
        r = (jnp.arange(ho) >= oh) & (jnp.arange(ho) < oh + H)
        c = (jnp.arange(wo) >= ow) & (jnp.arange(wo) < ow + W)
        return (r[:, None] & c[None, :]).astype(jnp.float32)

    masks = jnp.zeros((HO1, WO1, 2), jnp.float32)
    masks = masks.at[:, :, 0].set(board_mask(HO1, WO1, 2, 2))
    masks = masks.at[:HO2, :WO2, 1].set(board_mask(HO2, WO2, 1, 1))

    def kernel(p1_ref, mask_ref, w1_ref, w2_ref, w3_ref, wh_ref,
               wafc_ref, wv1_ref, wv2_ref, bias_ref, out_ref):
        f32 = jnp.float32
        B = B_TILE

        def brow(r, n):                        # (1, n) f32 bias row
            return bias_ref[r:r + 1, 0:n]

        def conv_relu(patches, w_ref, b):      # (rows,K)x(K,Cout)+bias, ReLU (f32)
            acc = jnp.dot(patches, w_ref[...], preferred_element_type=f32)
            return jnp.maximum(acc + b, 0.0)

        def im2col(y, ho, wo):                 # 9-tap lane concat -> (B*ho*wo, 9*Cin)
            t = [y[:, dy:dy + ho, dx:dx + wo, :]
                 for dy in range(3) for dx in range(3)]
            pat = jnp.concatenate(t, axis=-1)
            return pat.reshape(B * ho * wo, pat.shape[-1])

        m1 = mask_ref[:, :, 0:1]                               # (HO1, WO1, 1)
        m2 = mask_ref[0:HO2, 0:WO2, 1:2]                       # (HO2, WO2, 1)

        # conv1 (im2col prebuilt by the wrapper) -> masked extended grid, bf16
        p1 = p1_ref[...].reshape(B * HO1 * WO1, 9 * 4)
        y1 = conv_relu(p1, w1_ref, brow(0, 32)).reshape(B, HO1, WO1, 32)
        y1 = (y1 * m1).astype(MATMUL_DTYPE)

        # conv2
        y2 = conv_relu(im2col(y1, HO2, WO2), w2_ref,
                       brow(1, 64)).reshape(B, HO2, WO2, 64)
        y2 = (y2 * m2).astype(MATMUL_DTYPE)

        # conv3: exactly the board
        x3 = conv_relu(im2col(y2, H, W), w3_ref, brow(2, 128)).astype(MATMUL_DTYPE)

        # fused act/val 1x1 head convs: (B*HW,128)x(128,8); cols 0..3 act, 4..5 val
        th = jnp.maximum(
            jnp.dot(x3, wh_ref[...], preferred_element_type=f32) + brow(3, 8), 0.0)
        t8 = jnp.swapaxes(th.reshape(B, HW, 8), 1, 2)          # (B, 8, HW) f32

        def chan(c):                                           # (B, HW) bf16
            return t8[:, c, :].astype(MATMUL_DTYPE)

        # policy head: per-channel accumulating dots == torch NCHW flatten + FC
        logits = brow(4, HW) + jnp.dot(chan(0), wafc_ref[0],
                                       preferred_element_type=f32)
        for c in range(1, 4):
            logits = logits + jnp.dot(chan(c), wafc_ref[c],
                                      preferred_element_type=f32)
        s = logits - jnp.max(logits, axis=-1, keepdims=True)
        logp = s - jnp.log(jnp.sum(jnp.exp(s), axis=-1, keepdims=True))

        # value head
        hid = brow(5, 64) + jnp.dot(chan(4), wv1_ref[0],
                                    preferred_element_type=f32)
        hid = hid + jnp.dot(chan(5), wv1_ref[1], preferred_element_type=f32)
        hid = jnp.maximum(hid, 0.0).astype(MATMUL_DTYPE)
        val = jnp.tanh(jnp.dot(hid, wv2_ref[...], preferred_element_type=f32)
                       + brow(6, 64))                          # (B, 64), lane 0 real

        # merged lane-dense store: lanes [0,64) = log-probs, lane 64 = value
        out_ref[...] = jnp.concatenate([logp, val], axis=-1).reshape(1, B, HW + 64)

    weights = (masks, prep["w1"], prep["w2"], prep["w3"], prep["whead"],
               prep["wafc"], prep["wv1"], prep["wv2"], prep["biases"])

    def full_spec(a):
        nd = a.ndim
        return pl.BlockSpec(a.shape, lambda i, _nd=nd: (0,) * _nd)

    in_specs = [pl.BlockSpec((B_TILE, HO1 * WO1, 9 * C), lambda i: (i, 0, 0))]
    in_specs += [full_spec(w) for w in weights]

    out = pl.pallas_call(
        kernel,
        grid=(n_steps,),
        in_specs=in_specs,
        out_specs=pl.BlockSpec((1, B_TILE, HW + 64), lambda i: (i, 0, 0)),
        out_shape=jax.ShapeDtypeStruct((n_steps, B_TILE, HW + 64), jnp.float32),
        compiler_params=pltpu.CompilerParams(
            dimension_semantics=("parallel",),
            vmem_limit_bytes=32 * 1024 * 1024),
    )(patches1, *weights)

    out = out.reshape(N_pad, HW + 64)
    return out[:N, :HW], out[:N, HW:HW + 1]


# TODO(synk): Net.reshape_linear (bilinear FC-weight resampling for non-8x8
# boards) is checkpoint surgery, not part of forward(); not implemented.

if __name__ == "__main__":
    board_w = board_h = 8
    batch = 2
    key = jax.random.PRNGKey(0)
    k_params, k_x = jax.random.split(key)

    params = init_params(k_params, board_w, board_h)
    prep = prepare_params(params)                       # one-time layout prep
    x = jax.random.normal(k_x, (batch, 4, board_h, board_w), dtype=jnp.float32)

    fwd = jax.jit(net_forward)
    x_act, x_val = fwd(prep, x)
    jax.block_until_ready((x_act, x_val))

    assert x_act.shape == (batch, board_w * board_h)
    assert x_val.shape == (batch, 1)
    # self-consistency: log_softmax rows normalize to 1 in prob space; |tanh|<=1
    prob_norm = jnp.sum(jnp.exp(x_act), axis=-1)
    assert bool(jnp.all(jnp.abs(prob_norm - 1.0) < 1e-3))
    assert bool(jnp.all(jnp.abs(x_val) <= 1.0))
    print("KERNEL_OK")
</pallas_src>

<mosaic_0001>
module attributes {stable_mosaic.version = 11 : i64} {
  func.func @kernel(%arg0: i32, %arg1: memref<1x288x36xbf16, #tpu.memory_space<vmem>>, %arg2: memref<12x24x2xf32, #tpu.memory_space<vmem>>, %arg3: memref<36x32xbf16, #tpu.memory_space<vmem>>, %arg4: memref<288x64xbf16, #tpu.memory_space<vmem>>, %arg5: memref<576x128xbf16, #tpu.memory_space<vmem>>, %arg6: memref<128x8xbf16, #tpu.memory_space<vmem>>, %arg7: memref<4x64x64xbf16, #tpu.memory_space<vmem>>, %arg8: memref<2x64x64xbf16, #tpu.memory_space<vmem>>, %arg9: memref<64x64xbf16, #tpu.memory_space<vmem>>, %arg10: memref<8x128xf32, #tpu.memory_space<vmem>>, %arg11: memref<1x1x128xf32, #tpu.memory_space<vmem>>) attributes {dimension_semantics = [#tpu.dimension_semantics<parallel>], iteration_bounds = array<i64: 2>, scalar_prefetch = 0 : i64, scratch_operands = 0 : i64, tpu.core_type = #tpu.core_type<tc>, window_params = [{transform_indices = @transform_0, window_bounds = array<i64: 1, 288, 36>}, {pipeline_mode = #tpu.pipeline_mode<synchronous>, transform_indices = @transform_1, window_bounds = array<i64: 12, 24, 2>}, {pipeline_mode = #tpu.pipeline_mode<synchronous>, transform_indices = @transform_2, window_bounds = array<i64: 36, 32>}, {pipeline_mode = #tpu.pipeline_mode<synchronous>, transform_indices = @transform_3, window_bounds = array<i64: 288, 64>}, {pipeline_mode = #tpu.pipeline_mode<synchronous>, transform_indices = @transform_4, window_bounds = array<i64: 576, 128>}, {pipeline_mode = #tpu.pipeline_mode<synchronous>, transform_indices = @transform_5, window_bounds = array<i64: 128, 8>}, {pipeline_mode = #tpu.pipeline_mode<synchronous>, transform_indices = @transform_6, window_bounds = array<i64: 4, 64, 64>}, {pipeline_mode = #tpu.pipeline_mode<synchronous>, transform_indices = @transform_7, window_bounds = array<i64: 2, 64, 64>}, {pipeline_mode = #tpu.pipeline_mode<synchronous>, transform_indices = @transform_8, window_bounds = array<i64: 64, 64>}, {pipeline_mode = #tpu.pipeline_mode<synchronous>, transform_indices = @transform_9, window_bounds = array<i64: 8, 128>}, {transform_indices = @transform_10, window_bounds = array<i64: 1, 1, 128>}]} {
    %c0 = arith.constant 0 : index
    %c0_0 = arith.constant 0 : index
    %c0_1 = arith.constant 0 : index
    %0 = vector.load %arg2[%c0, %c0_0, %c0_1] : memref<12x24x2xf32, #tpu.memory_space<vmem>>, vector<12x24x1xf32>
    %c0_2 = arith.constant 0 : index
    %c0_3 = arith.constant 0 : index
    %c1 = arith.constant 1 : index
    %1 = vector.load %arg2[%c0_2, %c0_3, %c1] : memref<12x24x2xf32, #tpu.memory_space<vmem>>, vector<10x16x1xf32>
    %c0_4 = arith.constant 0 : index
    %c0_5 = arith.constant 0 : index
    %c0_6 = arith.constant 0 : index
    %2 = vector.load %arg1[%c0_4, %c0_5, %c0_6] : memref<1x288x36xbf16, #tpu.memory_space<vmem>>, vector<1x288x36xbf16>
    %3 = vector.shape_cast %2 : vector<1x288x36xbf16> to vector<288x36xbf16>
    %c0_7 = arith.constant 0 : index
    %c0_8 = arith.constant 0 : index
    %4 = vector.load %arg10[%c0_7, %c0_8] : memref<8x128xf32, #tpu.memory_space<vmem>>, vector<1x32xf32>
    %c0_9 = arith.constant 0 : index
    %c0_10 = arith.constant 0 : index
    %5 = vector.load %arg3[%c0_9, %c0_10] : memref<36x32xbf16, #tpu.memory_space<vmem>>, vector<36x32xbf16>
    %cst = arith.constant dense<0.000000e+00> : vector<288x32xf32>
    %6 = tpu.matmul %3, %5, %cst {dimension_numbers = #tpu.dot_dimension_numbers<[1], [0], [0], [1], [0, 0, 1, 1], [], []>} : vector<288x36xbf16>, vector<36x32xbf16>, vector<288x32xf32> -> vector<288x32xf32>
    %7 = vector.broadcast %4 : vector<1x32xf32> to vector<288x32xf32>
    %8 = arith.addf %6, %7 : vector<288x32xf32>
    %cst_11 = arith.constant 0.000000e+00 : f32
    %9 = vector.broadcast %cst_11 : f32 to vector<288x32xf32>
    %10 = arith.maximumf %8, %9 : vector<288x32xf32>
    %11 = vector.shape_cast %10 : vector<288x32xf32> to vector<1x12x24x32xf32>
    %12 = vector.shape_cast %0 : vector<12x24x1xf32> to vector<1x12x24x1xf32>
    %13 = vector.broadcast %12 : vector<1x12x24x1xf32> to vector<1x12x24x32xf32>
    %14 = arith.mulf %11, %13 : vector<1x12x24x32xf32>
    %15 = arith.truncf %14 : vector<1x12x24x32xf32> to vector<1x12x24x32xbf16>
    %16 = vector.extract_strided_slice %15 {offsets = [0, 0, 0, 0], sizes = [1, 10, 16, 32], strides = [1, 1, 1, 1]} : vector<1x12x24x32xbf16> to vector<1x10x16x32xbf16>
    %17 = vector.extract_strided_slice %15 {offsets = [0, 0, 1, 0], sizes = [1, 10, 16, 32], strides = [1, 1, 1, 1]} : vector<1x12x24x32xbf16> to vector<1x10x16x32xbf16>
    %18 = vector.extract_strided_slice %15 {offsets = [0, 0, 2, 0], sizes = [1, 10, 16, 32], strides = [1, 1, 1, 1]} : vector<1x12x24x32xbf16> to vector<1x10x16x32xbf16>
    %19 = vector.extract_strided_slice %15 {offsets = [0, 1, 0, 0], sizes = [1, 10, 16, 32], strides = [1, 1, 1, 1]} : vector<1x12x24x32xbf16> to vector<1x10x16x32xbf16>
    %20 = vector.extract_strided_slice %15 {offsets = [0, 1, 1, 0], sizes = [1, 10, 16, 32], strides = [1, 1, 1, 1]} : vector<1x12x24x32xbf16> to vector<1x10x16x32xbf16>
    %21 = vector.extract_strided_slice %15 {offsets = [0, 1, 2, 0], sizes = [1, 10, 16, 32], strides = [1, 1, 1, 1]} : vector<1x12x24x32xbf16> to vector<1x10x16x32xbf16>
    %22 = vector.extract_strided_slice %15 {offsets = [0, 2, 0, 0], sizes = [1, 10, 16, 32], strides = [1, 1, 1, 1]} : vector<1x12x24x32xbf16> to vector<1x10x16x32xbf16>
    %23 = vector.extract_strided_slice %15 {offsets = [0, 2, 1, 0], sizes = [1, 10, 16, 32], strides = [1, 1, 1, 1]} : vector<1x12x24x32xbf16> to vector<1x10x16x32xbf16>
    %24 = vector.extract_strided_slice %15 {offsets = [0, 2, 2, 0], sizes = [1, 10, 16, 32], strides = [1, 1, 1, 1]} : vector<1x12x24x32xbf16> to vector<1x10x16x32xbf16>
    %25 = tpu.concatenate %16, %17, %18, %19, %20, %21, %22, %23, %24 in 3 : vector<1x10x16x32xbf16>, vector<1x10x16x32xbf16>, vector<1x10x16x32xbf16>, vector<1x10x16x32xbf16>, vector<1x10x16x32xbf16>, vector<1x10x16x32xbf16>, vector<1x10x16x32xbf16>, vector<1x10x16x32xbf16>, vector<1x10x16x32xbf16> -> vector<1x10x16x288xbf16>
    %26 = vector.shape_cast %25 : vector<1x10x16x288xbf16> to vector<160x288xbf16>
    %c1_12 = arith.constant 1 : index
    %c0_13 = arith.constant 0 : index
    %27 = vector.load %arg10[%c1_12, %c0_13] : memref<8x128xf32, #tpu.memory_space<vmem>>, vector<1x64xf32>
    %c0_14 = arith.constant 0 : index
    %c0_15 = arith.constant 0 : index
    %28 = vector.load %arg4[%c0_14, %c0_15] : memref<288x64xbf16, #tpu.memory_space<vmem>>, vector<288x64xbf16>
    %cst_16 = arith.constant dense<0.000000e+00> : vector<160x64xf32>
    %29 = tpu.matmul %26, %28, %cst_16 {dimension_numbers = #tpu.dot_dimension_numbers<[1], [0], [0], [1], [0, 0, 1, 1], [], []>} : vector<160x288xbf16>, vector<288x64xbf16>, vector<160x64xf32> -> vector<160x64xf32>
    %30 = vector.broadcast %27 : vector<1x64xf32> to vector<160x64xf32>
    %31 = arith.addf %29, %30 : vector<160x64xf32>
    %cst_17 = arith.constant 0.000000e+00 : f32
    %32 = vector.broadcast %cst_17 : f32 to vector<160x64xf32>
    %33 = arith.maximumf %31, %32 : vector<160x64xf32>
    %34 = vector.shape_cast %33 : vector<160x64xf32> to vector<1x10x16x64xf32>
    %35 = vector.shape_cast %1 : vector<10x16x1xf32> to vector<1x10x16x1xf32>
    %36 = vector.broadcast %35 : vector<1x10x16x1xf32> to vector<1x10x16x64xf32>
    %37 = arith.mulf %34, %36 : vector<1x10x16x64xf32>
    %38 = arith.truncf %37 : vector<1x10x16x64xf32> to vector<1x10x16x64xbf16>
    %39 = vector.extract_strided_slice %38 {offsets = [0, 0, 0, 0], sizes = [1, 8, 8, 64], strides = [1, 1, 1, 1]} : vector<1x10x16x64xbf16> to vector<1x8x8x64xbf16>
    %40 = vector.extract_strided_slice %38 {offsets = [0, 0, 1, 0], sizes = [1, 8, 8, 64], strides = [1, 1, 1, 1]} : vector<1x10x16x64xbf16> to vector<1x8x8x64xbf16>
    %41 = vector.extract_strided_slice %38 {offsets = [0, 0, 2, 0], sizes = [1, 8, 8, 64], strides = [1, 1, 1, 1]} : vector<1x10x16x64xbf16> to vector<1x8x8x64xbf16>
    %42 = vector.extract_strided_slice %38 {offsets = [0, 1, 0, 0], sizes = [1, 8, 8, 64], strides = [1, 1, 1, 1]} : vector<1x10x16x64xbf16> to vector<1x8x8x64xbf16>
    %43 = vector.extract_strided_slice %38 {offsets = [0, 1, 1, 0], sizes = [1, 8, 8, 64], strides = [1, 1, 1, 1]} : vector<1x10x16x64xbf16> to vector<1x8x8x64xbf16>
    %44 = vector.extract_strided_slice %38 {offsets = [0, 1, 2, 0], sizes = [1, 8, 8, 64], strides = [1, 1, 1, 1]} : vector<1x10x16x64xbf16> to vector<1x8x8x64xbf16>
    %45 = vector.extract_strided_slice %38 {offsets = [0, 2, 0, 0], sizes = [1, 8, 8, 64], strides = [1, 1, 1, 1]} : vector<1x10x16x64xbf16> to vector<1x8x8x64xbf16>
    %46 = vector.extract_strided_slice %38 {offsets = [0, 2, 1, 0], sizes = [1, 8, 8, 64], strides = [1, 1, 1, 1]} : vector<1x10x16x64xbf16> to vector<1x8x8x64xbf16>
    %47 = vector.extract_strided_slice %38 {offsets = [0, 2, 2, 0], sizes = [1, 8, 8, 64], strides = [1, 1, 1, 1]} : vector<1x10x16x64xbf16> to vector<1x8x8x64xbf16>
    %48 = tpu.concatenate %39, %40, %41, %42, %43, %44, %45, %46, %47 in 3 : vector<1x8x8x64xbf16>, vector<1x8x8x64xbf16>, vector<1x8x8x64xbf16>, vector<1x8x8x64xbf16>, vector<1x8x8x64xbf16>, vector<1x8x8x64xbf16>, vector<1x8x8x64xbf16>, vector<1x8x8x64xbf16>, vector<1x8x8x64xbf16> -> vector<1x8x8x576xbf16>
    %49 = vector.shape_cast %48 : vector<1x8x8x576xbf16> to vector<64x576xbf16>
    %c2 = arith.constant 2 : index
    %c0_18 = arith.constant 0 : index
    %50 = vector.load %arg10[%c2, %c0_18] : memref<8x128xf32, #tpu.memory_space<vmem>>, vector<1x128xf32>
    %c0_19 = arith.constant 0 : index
    %c0_20 = arith.constant 0 : index
    %51 = vector.load %arg5[%c0_19, %c0_20] : memref<576x128xbf16, #tpu.memory_space<vmem>>, vector<576x128xbf16>
    %cst_21 = arith.constant dense<0.000000e+00> : vector<64x128xf32>
    %52 = tpu.matmul %49, %51, %cst_21 {dimension_numbers = #tpu.dot_dimension_numbers<[1], [0], [0], [1], [0, 0, 1, 1], [], []>} : vector<64x576xbf16>, vector<576x128xbf16>, vector<64x128xf32> -> vector<64x128xf32>
    %53 = vector.broadcast %50 : vector<1x128xf32> to vector<64x128xf32>
    %54 = arith.addf %52, %53 : vector<64x128xf32>
    %cst_22 = arith.constant 0.000000e+00 : f32
    %55 = vector.broadcast %cst_22 : f32 to vector<64x128xf32>
    %56 = arith.maximumf %54, %55 : vector<64x128xf32>
    %57 = arith.truncf %56 : vector<64x128xf32> to vector<64x128xbf16>
    %c0_23 = arith.constant 0 : index
    %c0_24 = arith.constant 0 : index
    %58 = vector.load %arg6[%c0_23, %c0_24] : memref<128x8xbf16, #tpu.memory_space<vmem>>, vector<128x8xbf16>
    %cst_25 = arith.constant dense<0.000000e+00> : vector<64x8xf32>
    %59 = tpu.matmul %57, %58, %cst_25 {dimension_numbers = #tpu.dot_dimension_numbers<[1], [0], [0], [1], [0, 0, 1, 1], [], []>} : vector<64x128xbf16>, vector<128x8xbf16>, vector<64x8xf32> -> vector<64x8xf32>
    %c3 = arith.constant 3 : index
    %c0_26 = arith.constant 0 : index
    %60 = vector.load %arg10[%c3, %c0_26] : memref<8x128xf32, #tpu.memory_space<vmem>>, vector<1x8xf32>
    %61 = vector.broadcast %60 : vector<1x8xf32> to vector<64x8xf32>
    %62 = arith.addf %59, %61 : vector<64x8xf32>
    %cst_27 = arith.constant 0.000000e+00 : f32
    %63 = vector.broadcast %cst_27 : f32 to vector<64x8xf32>
    %64 = arith.maximumf %62, %63 : vector<64x8xf32>
    %65 = vector.shape_cast %64 : vector<64x8xf32> to vector<1x64x8xf32>
    %66 = tpu.transpose %65, [0, 2, 1] : vector<1x64x8xf32> -> vector<1x8x64xf32>
    %c4 = arith.constant 4 : index
    %c0_28 = arith.constant 0 : index
    %67 = vector.load %arg10[%c4, %c0_28] : memref<8x128xf32, #tpu.memory_space<vmem>>, vector<1x64xf32>
    %68 = vector.extract_strided_slice %66 {offsets = [0, 0, 0], sizes = [1, 1, 64], strides = [1, 1, 1]} : vector<1x8x64xf32> to vector<1x1x64xf32>
    %69 = vector.shape_cast %68 : vector<1x1x64xf32> to vector<1x64xf32>
    %70 = arith.truncf %69 : vector<1x64xf32> to vector<1x64xbf16>
    %c0_29 = arith.constant 0 : index
    %c0_30 = arith.constant 0 : index
    %c0_31 = arith.constant 0 : index
    %71 = vector.load %arg7[%c0_29, %c0_30, %c0_31] : memref<4x64x64xbf16, #tpu.memory_space<vmem>>, vector<1x64x64xbf16>
    %72 = vector.shape_cast %71 : vector<1x64x64xbf16> to vector<64x64xbf16>
    %cst_32 = arith.constant dense<0.000000e+00> : vector<1x64xf32>
    %73 = tpu.matmul %70, %72, %cst_32 {dimension_numbers = #tpu.dot_dimension_numbers<[1], [0], [0], [1], [0, 0, 1, 1], [], []>} : vector<1x64xbf16>, vector<64x64xbf16>, vector<1x64xf32> -> vector<1x64xf32>
    %74 = arith.addf %67, %73 : vector<1x64xf32>
    %75 = vector.extract_strided_slice %66 {offsets = [0, 1, 0], sizes = [1, 1, 64], strides = [1, 1, 1]} : vector<1x8x64xf32> to vector<1x1x64xf32>
    %76 = vector.shape_cast %75 : vector<1x1x64xf32> to vector<1x64xf32>
    %77 = arith.truncf %76 : vector<1x64xf32> to vector<1x64xbf16>
    %c1_33 = arith.constant 1 : index
    %c0_34 = arith.constant 0 : index
    %c0_35 = arith.constant 0 : index
    %78 = vector.load %arg7[%c1_33, %c0_34, %c0_35] : memref<4x64x64xbf16, #tpu.memory_space<vmem>>, vector<1x64x64xbf16>
    %79 = vector.shape_cast %78 : vector<1x64x64xbf16> to vector<64x64xbf16>
    %cst_36 = arith.constant dense<0.000000e+00> : vector<1x64xf32>
    %80 = tpu.matmul %77, %79, %cst_36 {dimension_numbers = #tpu.dot_dimension_numbers<[1], [0], [0], [1], [0, 0, 1, 1], [], []>} : vector<1x64xbf16>, vector<64x64xbf16>, vector<1x64xf32> -> vector<1x64xf32>
    %81 = arith.addf %74, %80 : vector<1x64xf32>
    %82 = vector.extract_strided_slice %66 {offsets = [0, 2, 0], sizes = [1, 1, 64], strides = [1, 1, 1]} : vector<1x8x64xf32> to vector<1x1x64xf32>
    %83 = vector.shape_cast %82 : vector<1x1x64xf32> to vector<1x64xf32>
    %84 = arith.truncf %83 : vector<1x64xf32> to vector<1x64xbf16>
    %c2_37 = arith.constant 2 : index
    %c0_38 = arith.constant 0 : index
    %c0_39 = arith.constant 0 : index
    %85 = vector.load %arg7[%c2_37, %c0_38, %c0_39] : memref<4x64x64xbf16, #tpu.memory_space<vmem>>, vector<1x64x64xbf16>
    %86 = vector.shape_cast %85 : vector<1x64x64xbf16> to vector<64x64xbf16>
    %cst_40 = arith.constant dense<0.000000e+00> : vector<1x64xf32>
    %87 = tpu.matmul %84, %86, %cst_40 {dimension_numbers = #tpu.dot_dimension_numbers<[1], [0], [0], [1], [0, 0, 1, 1], [], []>} : vector<1x64xbf16>, vector<64x64xbf16>, vector<1x64xf32> -> vector<1x64xf32>
    %88 = arith.addf %81, %87 : vector<1x64xf32>
    %89 = vector.extract_strided_slice %66 {offsets = [0, 3, 0], sizes = [1, 1, 64], strides = [1, 1, 1]} : vector<1x8x64xf32> to vector<1x1x64xf32>
    %90 = vector.shape_cast %89 : vector<1x1x64xf32> to vector<1x64xf32>
    %91 = arith.truncf %90 : vector<1x64xf32> to vector<1x64xbf16>
    %c3_41 = arith.constant 3 : index
    %c0_42 = arith.constant 0 : index
    %c0_43 = arith.constant 0 : index
    %92 = vector.load %arg7[%c3_41, %c0_42, %c0_43] : memref<4x64x64xbf16, #tpu.memory_space<vmem>>, vector<1x64x64xbf16>
    %93 = vector.shape_cast %92 : vector<1x64x64xbf16> to vector<64x64xbf16>
    %cst_44 = arith.constant dense<0.000000e+00> : vector<1x64xf32>
    %94 = tpu.matmul %91, %93, %cst_44 {dimension_numbers = #tpu.dot_dimension_numbers<[1], [0], [0], [1], [0, 0, 1, 1], [], []>} : vector<1x64xbf16>, vector<64x64xbf16>, vector<1x64xf32> -> vector<1x64xf32>
    %95 = arith.addf %88, %94 : vector<1x64xf32>
    %cst_45 = arith.constant dense<0xFF800000> : vector<1xf32>
    %96 = vector.multi_reduction <maximumf>, %95, %cst_45 [1] : vector<1x64xf32> to vector<1xf32>
    %97 = vector.shape_cast %96 : vector<1xf32> to vector<1x1xf32>
    %98 = vector.broadcast %97 : vector<1x1xf32> to vector<1x64xf32>
    %99 = arith.subf %95, %98 : vector<1x64xf32>
    %100 = math.exp %99 : vector<1x64xf32>
    %cst_46 = arith.constant dense<0.000000e+00> : vector<1xf32>
    %101 = vector.multi_reduction <add>, %100, %cst_46 [1] : vector<1x64xf32> to vector<1xf32>
    %102 = vector.shape_cast %101 : vector<1xf32> to vector<1x1xf32>
    %103 = math.log %102 : vector<1x1xf32>
    %104 = vector.broadcast %103 : vector<1x1xf32> to vector<1x64xf32>
    %105 = arith.subf %99, %104 : vector<1x64xf32>
    %c5 = arith.constant 5 : index
    %c0_47 = arith.constant 0 : index
    %106 = vector.load %arg10[%c5, %c0_47] : memref<8x128xf32, #tpu.memory_space<vmem>>, vector<1x64xf32>
    %107 = vector.extract_strided_slice %66 {offsets = [0, 4, 0], sizes = [1, 1, 64], strides = [1, 1, 1]} : vector<1x8x64xf32> to vector<1x1x64xf32>
    %108 = vector.shape_cast %107 : vector<1x1x64xf32> to vector<1x64xf32>
    %109 = arith.truncf %108 : vector<1x64xf32> to vector<1x64xbf16>
    %c0_48 = arith.constant 0 : index
    %c0_49 = arith.constant 0 : index
    %c0_50 = arith.constant 0 : index
    %110 = vector.load %arg8[%c0_48, %c0_49, %c0_50] : memref<2x64x64xbf16, #tpu.memory_space<vmem>>, vector<1x64x64xbf16>
    %111 = vector.shape_cast %110 : vector<1x64x64xbf16> to vector<64x64xbf16>
    %cst_51 = arith.constant dense<0.000000e+00> : vector<1x64xf32>
    %112 = tpu.matmul %109, %111, %cst_51 {dimension_numbers = #tpu.dot_dimension_numbers<[1], [0], [0], [1], [0, 0, 1, 1], [], []>} : vector<1x64xbf16>, vector<64x64xbf16>, vector<1x64xf32> -> vector<1x64xf32>
    %113 = arith.addf %106, %112 : vector<1x64xf32>
    %114 = vector.extract_strided_slice %66 {offsets = [0, 5, 0], sizes = [1, 1, 64], strides = [1, 1, 1]} : vector<1x8x64xf32> to vector<1x1x64xf32>
    %115 = vector.shape_cast %114 : vector<1x1x64xf32> to vector<1x64xf32>
    %116 = arith.truncf %115 : vector<1x64xf32> to vector<1x64xbf16>
    %c1_52 = arith.constant 1 : index
    %c0_53 = arith.constant 0 : index
    %c0_54 = arith.constant 0 : index
    %117 = vector.load %arg8[%c1_52, %c0_53, %c0_54] : memref<2x64x64xbf16, #tpu.memory_space<vmem>>, vector<1x64x64xbf16>
    %118 = vector.shape_cast %117 : vector<1x64x64xbf16> to vector<64x64xbf16>
    %cst_55 = arith.constant dense<0.000000e+00> : vector<1x64xf32>
    %119 = tpu.matmul %116, %118, %cst_55 {dimension_numbers = #tpu.dot_dimension_numbers<[1], [0], [0], [1], [0, 0, 1, 1], [], []>} : vector<1x64xbf16>, vector<64x64xbf16>, vector<1x64xf32> -> vector<1x64xf32>
    %120 = arith.addf %113, %119 : vector<1x64xf32>
    %cst_56 = arith.constant 0.000000e+00 : f32
    %121 = vector.broadcast %cst_56 : f32 to vector<1x64xf32>
    %122 = arith.maximumf %120, %121 : vector<1x64xf32>
    %123 = arith.truncf %122 : vector<1x64xf32> to vector<1x64xbf16>
    %c0_57 = arith.constant 0 : index
    %c0_58 = arith.constant 0 : index
    %124 = vector.load %arg9[%c0_57, %c0_58] : memref<64x64xbf16, #tpu.memory_space<vmem>>, vector<64x64xbf16>
    %cst_59 = arith.constant dense<0.000000e+00> : vector<1x64xf32>
    %125 = tpu.matmul %123, %124, %cst_59 {dimension_numbers = #tpu.dot_dimension_numbers<[1], [0], [0], [1], [0, 0, 1, 1], [], []>} : vector<1x64xbf16>, vector<64x64xbf16>, vector<1x64xf32> -> vector<1x64xf32>
    %c6 = arith.constant 6 : index
    %c0_60 = arith.constant 0 : index
    %126 = vector.load %arg10[%c6, %c0_60] : memref<8x128xf32, #tpu.memory_space<vmem>>, vector<1x64xf32>
    %127 = arith.addf %125, %126 : vector<1x64xf32>
    %128 = math.tanh %127 : vector<1x64xf32>
    %129 = tpu.concatenate %105, %128 in 1 : vector<1x64xf32>, vector<1x64xf32> -> vector<1x128xf32>
    %130 = vector.shape_cast %129 : vector<1x128xf32> to vector<1x1x128xf32>
    %c0_61 = arith.constant 0 : index
    %c0_62 = arith.constant 0 : index
    %c0_63 = arith.constant 0 : index
    %131 = vector.load %arg11[%c0_61, %c0_62, %c0_63] : memref<1x1x128xf32, #tpu.memory_space<vmem>>, vector<1x1x128xf32>
    tpu.vector_store %arg11[%c0_61, %c0_62, %c0_63], %130 {strides = array<i32>} : memref<1x1x128xf32, #tpu.memory_space<vmem>>, vector<1x1x128xf32>,
    return
  }
  func.func @transform_0(%arg0: i32) -> (i32, i32, i32) {
    %c0_i32 = arith.constant 0 : i32
    %c0_i32_0 = arith.constant 0 : i32
    %c0_i32_1 = arith.constant 0 : i32
    return %arg0, %c0_i32, %c0_i32_0 : i32, i32, i32
  }
  func.func @transform_1(%arg0: i32) -> (i32, i32, i32) {
    %c0_i32 = arith.constant 0 : i32
    %c0_i32_0 = arith.constant 0 : i32
    %c0_i32_1 = arith.constant 0 : i32
    %c0_i32_2 = arith.constant 0 : i32
    return %c0_i32, %c0_i32_0, %c0_i32_1 : i32, i32, i32
  }
  func.func @transform_2(%arg0: i32) -> (i32, i32) {
    %c0_i32 = arith.constant 0 : i32
    %c0_i32_0 = arith.constant 0 : i32
    %c0_i32_1 = arith.constant 0 : i32
    return %c0_i32, %c0_i32_0 : i32, i32
  }
  func.func @transform_3(%arg0: i32) -> (i32, i32) {
    %c0_i32 = arith.constant 0 : i32
    %c0_i32_0 = arith.constant 0 : i32
    %c0_i32_1 = arith.constant 0 : i32
    return %c0_i32, %c0_i32_0 : i32, i32
  }
  func.func @transform_4(%arg0: i32) -> (i32, i32) {
    %c0_i32 = arith.constant 0 : i32
    %c0_i32_0 = arith.constant 0 : i32
    %c0_i32_1 = arith.constant 0 : i32
    return %c0_i32, %c0_i32_0 : i32, i32
  }
  func.func @transform_5(%arg0: i32) -> (i32, i32) {
    %c0_i32 = arith.constant 0 : i32
    %c0_i32_0 = arith.constant 0 : i32
    %c0_i32_1 = arith.constant 0 : i32
    return %c0_i32, %c0_i32_0 : i32, i32
  }
  func.func @transform_6(%arg0: i32) -> (i32, i32, i32) {
    %c0_i32 = arith.constant 0 : i32
    %c0_i32_0 = arith.constant 0 : i32
    %c0_i32_1 = arith.constant 0 : i32
    %c0_i32_2 = arith.constant 0 : i32
    return %c0_i32, %c0_i32_0, %c0_i32_1 : i32, i32, i32
  }
  func.func @transform_7(%arg0: i32) -> (i32, i32, i32) {
    %c0_i32 = arith.constant 0 : i32
    %c0_i32_0 = arith.constant 0 : i32
    %c0_i32_1 = arith.constant 0 : i32
    %c0_i32_2 = arith.constant 0 : i32
    return %c0_i32, %c0_i32_0, %c0_i32_1 : i32, i32, i32
  }
  func.func @transform_8(%arg0: i32) -> (i32, i32) {
    %c0_i32 = arith.constant 0 : i32
    %c0_i32_0 = arith.constant 0 : i32
    %c0_i32_1 = arith.constant 0 : i32
    return %c0_i32, %c0_i32_0 : i32, i32
  }
  func.func @transform_9(%arg0: i32) -> (i32, i32) {
    %c0_i32 = arith.constant 0 : i32
    %c0_i32_0 = arith.constant 0 : i32
    %c0_i32_1 = arith.constant 0 : i32
    return %c0_i32, %c0_i32_0 : i32, i32
  }
  func.func @transform_10(%arg0: i32) -> (i32, i32, i32) {
    %c0_i32 = arith.constant 0 : i32
    %c0_i32_0 = arith.constant 0 : i32
    %c0_i32_1 = arith.constant 0 : i32
    return %arg0, %c0_i32, %c0_i32_0 : i32, i32, i32
  }
}

</mosaic_0001>

<llo_original>
// kernel: net_forward.1
$region0: #{net_forward.1}
  #allocation0 [shape = 'u32[]', space=smem, size = 0x4, offset = 0x4, fixed_abs, tag = 'smem constant byte address 0x4 - core index']
  #allocation1 [shape = 'u32[144,128]{1,0:T(1,128)}', space=vmem, size = 0x12000, scoped, tag = 'internal scratch']
  %s0 = inlined_call_operand.vmem [shape: bf16[2,288,36], index: 0, kind: input, shape index: {}]
  %s1 = inlined_call_operand.vmem [shape: f32[12,24,2], index: 1, kind: input, shape index: {}]
  %s2 = inlined_call_operand.vmem [shape: bf16[36,32], index: 2, kind: input, shape index: {}]
  %s3 = inlined_call_operand.vmem [shape: bf16[288,64], index: 3, kind: input, shape index: {}]
  %s4 = inlined_call_operand.vmem [shape: bf16[576,128], index: 4, kind: input, shape index: {}]
  %s5 = inlined_call_operand.vmem [shape: bf16[128,8], index: 5, kind: input, shape index: {}]
  %s6 = inlined_call_operand.vmem [shape: bf16[4,64,64], index: 6, kind: input, shape index: {}]
  %s7 = inlined_call_operand.vmem [shape: bf16[2,64,64], index: 7, kind: input, shape index: {}]
  %s8 = inlined_call_operand.vmem [shape: bf16[64,64], index: 8, kind: input, shape index: {}]
  %s9 = inlined_call_operand.vmem [shape: f32[8,128], index: 9, kind: input, shape index: {}]
  %s10 = inlined_call_operand.vmem [shape: f32[2,1,128], index: 10, kind: output, shape index: {}]
  %s11 = sld [smem:[#allocation0]]
  $region73: #{net_forward.1} parent=0
    _
  %s13 = ssub.s32 1, %s11
  %s14 = scalar_select 0, %s13, %s11
  loop: start=0, step=1, limit=4
  $region2: #{net_forward.1} parent=0 // loop_pre_header
    _
  $region3: #{net_forward.1} parent=0 // loop_header
    %s16 = sphi 0, %s20
    %p17 = scmp.ge.s32.totalorder %s16, 4
    %s26 = sphi 0, %s28
    %s29 = sphi 0, %s26
    %s30 = sphi 0, %s29
    %s46 = sphi 0, %s30
    %s50 = sphi 0, %s50
    %s52 = sphi 0, %s50
    %s53 = sphi 0, %s52
    %s67 = sphi 0, %s53
    %s71 = sphi 0, %s71
    %s73 = sphi 0, %s71
    %s74 = sphi 0, %s73
    %s88 = sphi 0, %s74
    %s92 = sphi 0, %s92
    %s94 = sphi 0, %s92
    %s95 = sphi 0, %s94
    %s109 = sphi 0, %s95
    %s113 = sphi 0, %s113
    %s115 = sphi 0, %s113
    %s116 = sphi 0, %s115
    %s130 = sphi 0, %s116
    %s134 = sphi 0, %s134
    %s136 = sphi 0, %s134
    %s137 = sphi 0, %s136
    %s151 = sphi 0, %s137
    %s155 = sphi 0, %s155
    %s157 = sphi 0, %s155
    %s158 = sphi 0, %s157
    %s172 = sphi 0, %s158
    %s176 = sphi 0, %s176
    %s178 = sphi 0, %s176
    %s179 = sphi 0, %s178
    %s193 = sphi 0, %s179
    %s197 = sphi 0, %s197
    %s199 = sphi 0, %s197
    %s200 = sphi 0, %s199
    %s214 = sphi 0, %s200
    %s218 = sphi 0, %s218
    %s220 = sphi 0, %s218
    %s221 = sphi 0, %s220
    %s235 = sphi 0, %s221
    %s241 = sphi 0, %s243
    %s244 = sphi 0, %s241
    %s245 = sphi 0, %s244
    %s261 = sphi 0, %s245
  $region4: #{net_forward.1} parent=0 // loop_header_branch
    %19 = sbr.rel (%p17) target = $region8
  $region5: #{net_forward.1} parent=0 // loop_body
    %s21 = ssub.s32 %s16, 1
    %s22 = ssub.s32 %s16, 2
    %s23 = sadd.s32 %s16, 1
    %s24 = ssub.s32 %s16, %s23
    %p25 = scmp.eq.s32.totalorder %s24, 0
    %s27 = sadd.s32 %s26, 1
    %s28 = scalar_select %p25, %s26, %s27
    %p31 = pneg %p25
    %p32 = scmp.eq.s32.totalorder %s16, 1
    %p33 = por %p31, %p32
    %p34 = scmp.ne.s32.totalorder %s26, %s29
    %p35 = scmp.eq.s32.totalorder %s16, 0
    %p36 = por %p34, %p35
    %p37 = scmp.ne.s32.totalorder %s26, %s29
    %p38 = scmp.eq.s32.totalorder %s21, 1
    %p39 = por %p37, %p38
    %p40 = scmp.ne.s32.totalorder %s29, %s30
    %p41 = scmp.eq.s32.totalorder %s21, 0
    %p42 = por %p40, %p41
    %p43 = scmp.ne.s32.totalorder %s29, %s30
    %p44 = scmp.eq.s32.totalorder %s22, 1
    %p45 = por %p43, %p44
    %p47 = scmp.ne.s32.totalorder %s30, %s46
    %p48 = scmp.eq.s32.totalorder %s22, 0
    %p49 = por %p47, %p48
    %s51 = sadd.s32 %s50, 1
    %p54 = scmp.eq.s32.totalorder %s16, 1
    %p55 = scmp.ne.s32.totalorder %s50, %s52
    %p56 = scmp.eq.s32.totalorder %s16, 0
    %p57 = por %p55, %p56
    %p58 = scmp.ne.s32.totalorder %s50, %s52
    %p59 = scmp.eq.s32.totalorder %s21, 1
    %p60 = por %p58, %p59
    %p61 = scmp.ne.s32.totalorder %s52, %s53
    %p62 = scmp.eq.s32.totalorder %s21, 0
    %p63 = por %p61, %p62
    %p64 = scmp.ne.s32.totalorder %s52, %s53
    %p65 = scmp.eq.s32.totalorder %s22, 1
    %p66 = por %p64, %p65
    %p68 = scmp.ne.s32.totalorder %s53, %s67
    %p69 = scmp.eq.s32.totalorder %s22, 0
    %p70 = por %p68, %p69
    %s72 = sadd.s32 %s71, 1
    %p75 = scmp.eq.s32.totalorder %s16, 1
    %p76 = scmp.ne.s32.totalorder %s71, %s73
    %p77 = scmp.eq.s32.totalorder %s16, 0
    %p78 = por %p76, %p77
    %p79 = scmp.ne.s32.totalorder %s71, %s73
    %p80 = scmp.eq.s32.totalorder %s21, 1
    %p81 = por %p79, %p80
    %p82 = scmp.ne.s32.totalorder %s73, %s74
    %p83 = scmp.eq.s32.totalorder %s21, 0
    %p84 = por %p82, %p83
    %p85 = scmp.ne.s32.totalorder %s73, %s74
    %p86 = scmp.eq.s32.totalorder %s22, 1
    %p87 = por %p85, %p86
    %p89 = scmp.ne.s32.totalorder %s74, %s88
    %p90 = scmp.eq.s32.totalorder %s22, 0
    %p91 = por %p89, %p90
    %s93 = sadd.s32 %s92, 1
    %p96 = scmp.eq.s32.totalorder %s16, 1
    %p97 = scmp.ne.s32.totalorder %s92, %s94
    %p98 = scmp.eq.s32.totalorder %s16, 0
    %p99 = por %p97, %p98
    %p100 = scmp.ne.s32.totalorder %s92, %s94
    %p101 = scmp.eq.s32.totalorder %s21, 1
    %p102 = por %p100, %p101
    %p103 = scmp.ne.s32.totalorder %s94, %s95
    %p104 = scmp.eq.s32.totalorder %s21, 0
    %p105 = por %p103, %p104
    %p106 = scmp.ne.s32.totalorder %s94, %s95
    %p107 = scmp.eq.s32.totalorder %s22, 1
    %p108 = por %p106, %p107
    %p110 = scmp.ne.s32.totalorder %s95, %s109
    %p111 = scmp.eq.s32.totalorder %s22, 0
    %p112 = por %p110, %p111
    %s114 = sadd.s32 %s113, 1
    %p117 = scmp.eq.s32.totalorder %s16, 1
    %p118 = scmp.ne.s32.totalorder %s113, %s115
    %p119 = scmp.eq.s32.totalorder %s16, 0
    %p120 = por %p118, %p119
    %p121 = scmp.ne.s32.totalorder %s113, %s115
    %p122 = scmp.eq.s32.totalorder %s21, 1
    %p123 = por %p121, %p122
    %p124 = scmp.ne.s32.totalorder %s115, %s116
    %p125 = scmp.eq.s32.totalorder %s21, 0
    %p126 = por %p124, %p125
    %p127 = scmp.ne.s32.totalorder %s115, %s116
    %p128 = scmp.eq.s32.totalorder %s22, 1
    %p129 = por %p127, %p128
    %p131 = scmp.ne.s32.totalorder %s116, %s130
    %p132 = scmp.eq.s32.totalorder %s22, 0
    %p133 = por %p131, %p132
    %s135 = sadd.s32 %s134, 1
    %p138 = scmp.eq.s32.totalorder %s16, 1
    %p139 = scmp.ne.s32.totalorder %s134, %s136
    %p140 = scmp.eq.s32.totalorder %s16, 0
    %p141 = por %p139, %p140
    %p142 = scmp.ne.s32.totalorder %s134, %s136
    %p143 = scmp.eq.s32.totalorder %s21, 1
    %p144 = por %p142, %p143
    %p145 = scmp.ne.s32.totalorder %s136, %s137
    %p146 = scmp.eq.s32.totalorder %s21, 0
    %p147 = por %p145, %p146
    %p148 = scmp.ne.s32.totalorder %s136, %s137
    %p149 = scmp.eq.s32.totalorder %s22, 1
    %p150 = por %p148, %p149
    %p152 = scmp.ne.s32.totalorder %s137, %s151
    %p153 = scmp.eq.s32.totalorder %s22, 0
    %p154 = por %p152, %p153
    %s156 = sadd.s32 %s155, 1
    %p159 = scmp.eq.s32.totalorder %s16, 1
    %p160 = scmp.ne.s32.totalorder %s155, %s157
    %p161 = scmp.eq.s32.totalorder %s16, 0
    %p162 = por %p160, %p161
    %p163 = scmp.ne.s32.totalorder %s155, %s157
    %p164 = scmp.eq.s32.totalorder %s21, 1
    %p165 = por %p163, %p164
    %p166 = scmp.ne.s32.totalorder %s157, %s158
    %p167 = scmp.eq.s32.totalorder %s21, 0
    %p168 = por %p166, %p167
    %p169 = scmp.ne.s32.totalorder %s157, %s158
    %p170 = scmp.eq.s32.totalorder %s22, 1
    %p171 = por %p169, %p170
    %p173 = scmp.ne.s32.totalorder %s158, %s172
    %p174 = scmp.eq.s32.totalorder %s22, 0
    %p175 = por %p173, %p174
    %s177 = sadd.s32 %s176, 1
    %p180 = scmp.eq.s32.totalorder %s16, 1
    %p181 = scmp.ne.s32.totalorder %s176, %s178
    %p182 = scmp.eq.s32.totalorder %s16, 0
    %p183 = por %p181, %p182
    %p184 = scmp.ne.s32.totalorder %s176, %s178
    %p185 = scmp.eq.s32.totalorder %s21, 1
    %p186 = por %p184, %p185
    %p187 = scmp.ne.s32.totalorder %s178, %s179
    %p188 = scmp.eq.s32.totalorder %s21, 0
    %p189 = por %p187, %p188
    %p190 = scmp.ne.s32.totalorder %s178, %s179
    %p191 = scmp.eq.s32.totalorder %s22, 1
    %p192 = por %p190, %p191
    %p194 = scmp.ne.s32.totalorder %s179, %s193
    %p195 = scmp.eq.s32.totalorder %s22, 0
    %p196 = por %p194, %p195
    %s198 = sadd.s32 %s197, 1
    %p201 = scmp.eq.s32.totalorder %s16, 1
    %p202 = scmp.ne.s32.totalorder %s197, %s199
    %p203 = scmp.eq.s32.totalorder %s16, 0
    %p204 = por %p202, %p203
    %p205 = scmp.ne.s32.totalorder %s197, %s199
    %p206 = scmp.eq.s32.totalorder %s21, 1
    %p207 = por %p205, %p206
    %p208 = scmp.ne.s32.totalorder %s199, %s200
    %p209 = scmp.eq.s32.totalorder %s21, 0
    %p210 = por %p208, %p209
    %p211 = scmp.ne.s32.totalorder %s199, %s200
    %p212 = scmp.eq.s32.totalorder %s22, 1
    %p213 = por %p211, %p212
    %p215 = scmp.ne.s32.totalorder %s200, %s214
    %p216 = scmp.eq.s32.totalorder %s22, 0
    %p217 = por %p215, %p216
    %s219 = sadd.s32 %s218, 1
    %p222 = scmp.eq.s32.totalorder %s16, 1
    %p223 = scmp.ne.s32.totalorder %s218, %s220
    %p224 = scmp.eq.s32.totalorder %s16, 0
    %p225 = por %p223, %p224
    %p226 = scmp.ne.s32.totalorder %s218, %s220
    %p227 = scmp.eq.s32.totalorder %s21, 1
    %p228 = por %p226, %p227
    %p229 = scmp.ne.s32.totalorder %s220, %s221
    %p230 = scmp.eq.s32.totalorder %s21, 0
    %p231 = por %p229, %p230
    %p232 = scmp.ne.s32.totalorder %s220, %s221
    %p233 = scmp.eq.s32.totalorder %s22, 1
    %p234 = por %p232, %p233
    %p236 = scmp.ne.s32.totalorder %s221, %s235
    %p237 = scmp.eq.s32.totalorder %s22, 0
    %p238 = por %p236, %p237
    %s239 = ssub.s32 %s16, %s23
    %p240 = scmp.eq.s32.totalorder %s239, 0
    %s242 = sadd.s32 %s241, 1
    %s243 = scalar_select %p240, %s241, %s242
    %p246 = pneg %p240
    %p247 = scmp.eq.s32.totalorder %s16, 1
    %p248 = por %p246, %p247
    %p249 = scmp.ne.s32.totalorder %s241, %s244
    %p250 = scmp.eq.s32.totalorder %s16, 0
    %p251 = por %p249, %p250
    %p252 = scmp.ne.s32.totalorder %s241, %s244
    %p253 = scmp.eq.s32.totalorder %s21, 1
    %p254 = por %p252, %p253
    %p255 = scmp.ne.s32.totalorder %s244, %s245
    %p256 = scmp.eq.s32.totalorder %s21, 0
    %p257 = por %p255, %p256
    %p258 = scmp.ne.s32.totalorder %s244, %s245
    %p259 = scmp.eq.s32.totalorder %s22, 1
    %p260 = por %p258, %p259
    %p262 = scmp.ne.s32.totalorder %s245, %s261
    %p263 = scmp.eq.s32.totalorder %s22, 0
    %p264 = por %p262, %p263
    %p265 = scmp.le.s32.totalorder 1, %s16
    %p266 = scmp.lt.s32.totalorder %s16, 3
    %p267 = pnand %p265, %p266
    %p268 = pneg %p267
    // Predicated region
    $region9: #{net_forward.1} parent=5 // pred_check
      _
    $region10: #{net_forward.1} parent=5 // pred_check_branch
      %270 = sbr.rel (%p267) target = $region12
    $region11: #{net_forward.1} parent=5 // pred_region
      %s271 = ssub.s32 %s16, 1
      // Predicated region
      $region13: #{net_forward.1} parent=11 // pred_check
        %p272 = pneg %p63
      $region14: #{net_forward.1} parent=11 // pred_check_branch
        %274 = sbr.rel (%p272) target = $region16
      $region15: #{net_forward.1} parent=11 // pred_region
        _
      $region16: #{net_forward.1} parent=11 // pred_fallthru
        _
      // Predicated region
      $region17: #{net_forward.1} parent=11 // pred_check
        %p275 = pneg %p84
      $region18: #{net_forward.1} parent=11 // pred_check_branch
        %277 = sbr.rel (%p275) target = $region20
      $region19: #{net_forward.1} parent=11 // pred_region
        _
      $region20: #{net_forward.1} parent=11 // pred_fallthru
        _
      // Predicated region
      $region21: #{net_forward.1} parent=11 // pred_check
        %p278 = pneg %p105
      $region22: #{net_forward.1} parent=11 // pred_check_branch
        %280 = sbr.rel (%p278) target = $region24
      $region23: #{net_forward.1} parent=11 // pred_region
        _
      $region24: #{net_forward.1} parent=11 // pred_fallthru
        _
      // Predicated region
      $region25: #{net_forward.1} parent=11 // pred_check
        %p281 = pneg %p126
      $region26: #{net_forward.1} parent=11 // pred_check_branch
        %283 = sbr.rel (%p281) target = $region28
      $region27: #{net_forward.1} parent=11 // pred_region
        _
      $region28: #{net_forward.1} parent=11 // pred_fallthru
        _
      // Predicated region
      $region29: #{net_forward.1} parent=11 // pred_check
        %p284 = pneg %p147
      $region30: #{net_forward.1} parent=11 // pred_check_branch
        %286 = sbr.rel (%p284) target = $region32
      $region31: #{net_forward.1} parent=11 // pred_region
        _
      $region32: #{net_forward.1} parent=11 // pred_fallthru
        _
      // Predicated region
      $region33: #{net_forward.1} parent=11 // pred_check
        %p287 = pneg %p168
      $region34: #{net_forward.1} parent=11 // pred_check_branch
        %289 = sbr.rel (%p287) target = $region36
      $region35: #{net_forward.1} parent=11 // pred_region
        _
      $region36: #{net_forward.1} parent=11 // pred_fallthru
        _
      // Predicated region
      $region37: #{net_forward.1} parent=11 // pred_check
        %p290 = pneg %p189
      $region38: #{net_forward.1} parent=11 // pred_check_branch
        %292 = sbr.rel (%p290) target = $region40
      $region39: #{net_forward.1} parent=11 // pred_region
        _
      $region40: #{net_forward.1} parent=11 // pred_fallthru
        _
      // Predicated region
      $region41: #{net_forward.1} parent=11 // pred_check
        %p293 = pneg %p210
      $region42: #{net_forward.1} parent=11 // pred_check_branch
        %295 = sbr.rel (%p293) target = $region44
      $region43: #{net_forward.1} parent=11 // pred_region
        _
      $region44: #{net_forward.1} parent=11 // pred_fallthru
        _
      // Predicated region
      $region45: #{net_forward.1} parent=11 // pred_check
        %p296 = pneg %p231
      $region46: #{net_forward.1} parent=11 // pred_check_branch
        %298 = sbr.rel (%p296) target = $region48
      $region47: #{net_forward.1} parent=11 // pred_region
        _
      $region48: #{net_forward.1} parent=11 // pred_fallthru
        _
    $region12: #{net_forward.1} parent=5 // pred_fallthru
      _
    %p299 = scmp.lt.s32.totalorder %s16, 2
    // Predicated region
    $region49: #{net_forward.1} parent=5 // pred_check
      %p300 = pneg %p299
    $region50: #{net_forward.1} parent=5 // pred_check_branch
      %302 = sbr.rel (%p300) target = $region52
    $region51: #{net_forward.1} parent=5 // pred_region
      // Predicated region
      $region53: #{net_forward.1} parent=51 // pred_check
        %p303 = pneg %p36
      $region54: #{net_forward.1} parent=51 // pred_check_branch
        %305 = sbr.rel (%p303) target = $region56
      $region55: #{net_forward.1} parent=51 // pred_region
        %p306 = scmp.lt.s32.totalorder %s16, 1
        %s307 = scalar_select %p306, %s16, 1
        %s308 = smul.addr %s307, 36
        %s309 = smul.addr %s308, 4
        %s310 = scalar_lea.vmem %s0, %s309
      $region56: #{net_forward.1} parent=51 // pred_fallthru
        _
    $region52: #{net_forward.1} parent=5 // pred_fallthru
      _
    %p311 = scmp.le.s32.totalorder 1, %s16
    %p312 = scmp.lt.s32.totalorder %s16, 3
    %p313 = pnand %p311, %p312
    %p314 = pneg %p313
    // Predicated region
    $region57: #{net_forward.1} parent=5 // pred_check
      _
    $region58: #{net_forward.1} parent=5 // pred_check_branch
      %316 = sbr.rel (%p313) target = $region60
    $region59: #{net_forward.1} parent=5 // pred_region
      %s317 = ssub.s32 %s16, 1
      %p318 = scmp.lt.s32.totalorder %s21, 1
      %s319 = scalar_select %p318, %s21, 1
      %s320 = smul.addr %s319, 36
      %s321 = smul.addr %s320, 4
      %s322 = scalar_lea.vmem %s0, %s321
      %p323 = pneg %p42
      %p324 = pneg %p39
      %p325 = pneg %p63
      %p326 = pneg %p60
      %p327 = pneg %p84
      %p328 = pneg %p81
      %p329 = pneg %p105
      %p330 = pneg %p102
      %p331 = pneg %p126
      %p332 = pneg %p123
      %p333 = pneg %p147
      %p334 = pneg %p144
      %p335 = pneg %p168
      %p336 = pneg %p165
      %p337 = pneg %p189
      %p338 = pneg %p186
      %p339 = pneg %p210
      %p340 = pneg %p207
      %p341 = pneg %p231
      %p342 = pneg %p228
      %p343 = pneg %p257
      %p344 = pneg %p254
      %p345 = scmp.lt.s32.totalorder %s21, 1
      %s346 = scalar_select %p345, %s21, 1
      %s347 = scalar_lea.vmem %s10, %s346
      %p348 = scmp.lt.s32.totalorder %s21, 1
      %s349 = scalar_select %p348, %s21, 1
      %s350 = smul.addr %s349, 36
      %s351 = smul.addr %s350, 4
      %s352 = scalar_lea.vmem %s0, %s351
      %p353 = scmp.lt.s32.totalorder %s21, 1
      %s354 = scalar_select %p353, %s21, 1
      %s355 = scalar_lea.vmem %s10, %s354
      %v357 = vld [vmem:[%s1] sm:$0xff]
      %v358 = vld [vmem:[%s1 + $0x8] sm:$0xff]
      %v359 = vld [vmem:[%s1 + $0x10] sm:$0xff]
      %v360 = vld [vmem:[%s1 + $0x18] sm:$0xff]
      %v361 = vld [vmem:[%s1 + $0x20] sm:$0xff]
      %v362 = vld [vmem:[%s1 + $0x28] sm:$0xff]
      %v363 = vld [vmem:[%s1 + $0x30] sm:$0xff]
      %v364 = vld [vmem:[%s1 + $0x38] sm:$0xff]
      %v365 = vld [vmem:[%s1 + $0x40] sm:$0xff]
      %v366 = vld [vmem:[%s1 + $0x48] sm:$0xff]
      %v367 = vld [vmem:[%s1 + $0x50] sm:$0xff]
      %v368 = vld [vmem:[%s1 + $0x58] sm:$0xff]
      %v369 = vld [vmem:[%s1 + $0x60] sm:$0xff]
      %v370 = vld [vmem:[%s1 + $0x68] sm:$0xff]
      %v371 = vld [vmem:[%s1 + $0x70] sm:$0xff]
      %v372 = vld [vmem:[%s1 + $0x78] sm:$0xff]
      %v373 = vld [vmem:[%s1 + $0x80] sm:$0xff]
      %v374 = vld [vmem:[%s1 + $0x88] sm:$0xff]
      %v375 = vld [vmem:[%s1 + $0x90] sm:$0xff]
      %v376 = vld [vmem:[%s1 + $0x98] sm:$0xff]
      %v377 = vld [vmem:[%s1 + $0xa0] sm:$0xff]
      %v378 = vld [vmem:[%s1 + $0xa8] sm:$0xff]
      %v379 = vld [vmem:[%s1 + $0xb0] sm:$0xff]
      %v380 = vld [vmem:[%s1 + $0xb8] sm:$0xff]
      %v381 = vld [vmem:[%s1 + $0xc0] sm:$0xff]
      %v382 = vld [vmem:[%s1 + $0xc8] sm:$0xff]
      %v383 = vld [vmem:[%s1 + $0xd0] sm:$0xff]
      %v384 = vld [vmem:[%s1 + $0xd8] sm:$0xff]
      %v385 = vld [vmem:[%s1 + $0xe0] sm:$0xff]
      %v386 = vld [vmem:[%s1 + $0xe8] sm:$0xff]
      %v387 = vld [vmem:[%s1 + $0xf0] sm:$0xff]
      %v388 = vld [vmem:[%s1 + $0xf8] sm:$0xff]
      %v389 = vld [vmem:[%s1 + $0x100] sm:$0xff]
      %v390 = vld [vmem:[%s1 + $0x108] sm:$0xff]
      %v391 = vld [vmem:[%s1 + $0x110] sm:$0xff]
      %v392 = vld [vmem:[%s1 + $0x118] sm:$0xff]
      %v393 = vld [vmem:[%s352] sm:$0xf]
      %v394 = vld [vmem:[%s352 + $0x4] sm:$0xf]
      %v395 = vld [vmem:[%s352 + $0x8] sm:$0xf]
      %v396 = vld [vmem:[%s352 + $0xc] sm:$0xf]
      %v397 = vld [vmem:[%s352 + $0x10] sm:$0xf]
      %v398 = vld [vmem:[%s352 + $0x14] sm:$0xf]
      %v399 = vld [vmem:[%s352 + $0x18] sm:$0xf]
      %v400 = vld [vmem:[%s352 + $0x1c] sm:$0xf]
      %v401 = vld [vmem:[%s352 + $0x20] sm:$0xf]
      %v402 = vld [vmem:[%s352 + $0x24] sm:$0xf]
      %v403 = vld [vmem:[%s352 + $0x28] sm:$0xf]
      %v404 = vld [vmem:[%s352 + $0x2c] sm:$0xf]
      %v405 = vld [vmem:[%s352 + $0x30] sm:$0xf]
      %v406 = vld [vmem:[%s352 + $0x34] sm:$0xf]
      %v407 = vld [vmem:[%s352 + $0x38] sm:$0xf]
      %v408 = vld [vmem:[%s352 + $0x3c] sm:$0xf]
      %v409 = vld [vmem:[%s352 + $0x40] sm:$0xf]
      %v410 = vld [vmem:[%s352 + $0x44] sm:$0xf]
      %v411 = vld [vmem:[%s352 + $0x48] sm:$0xf]
      %v412 = vld [vmem:[%s352 + $0x4c] sm:$0xf]
      %v413 = vld [vmem:[%s352 + $0x50] sm:$0xf]
      %v414 = vld [vmem:[%s352 + $0x54] sm:$0xf]
      %v415 = vld [vmem:[%s352 + $0x58] sm:$0xf]
      %v416 = vld [vmem:[%s352 + $0x5c] sm:$0xf]
      %v417 = vld [vmem:[%s352 + $0x60] sm:$0xf]
      %v418 = vld [vmem:[%s352 + $0x64] sm:$0xf]
      %v419 = vld [vmem:[%s352 + $0x68] sm:$0xf]
      %v420 = vld [vmem:[%s352 + $0x6c] sm:$0xf]
      %v421 = vld [vmem:[%s352 + $0x70] sm:$0xf]
      %v422 = vld [vmem:[%s352 + $0x74] sm:$0xf]
      %v423 = vld [vmem:[%s352 + $0x78] sm:$0xf]
      %v424 = vld [vmem:[%s352 + $0x7c] sm:$0xf]
      %v425 = vld [vmem:[%s352 + $0x80] sm:$0xf]
      %v426 = vld [vmem:[%s352 + $0x84] sm:$0xf]
      %v427 = vld [vmem:[%s352 + $0x88] sm:$0xf]
      %v428 = vld [vmem:[%s352 + $0x8c] sm:$0xf]
      %v429 = vld [vmem:[%s9] sm:$0x1]
      %v430 = vld [vmem:[%s2] sm:$0xf]
      %v431 = vld [vmem:[%s2 + $0x4] sm:$0xf]
      %v432 = vld [vmem:[%s2 + $0x8] sm:$0xf]
      %v433 = vld [vmem:[%s2 + $0xc] sm:$0xf]
      %v434 = vld [vmem:[%s2 + $0x10] sm:$0x3]
      %v435 = vlaneseq
      %v436 = vshrl.u32 %v435, 7
      %v437 = vsub.s32 0, %v436
      %v438 = vrot.slane %v429, %v437
      %v475 = vunpack.c.l.b16 %v393
      %v476 = vunpack.c.l.b16 %v394
      %v477 = vunpack.c.l.b16 %v395
      %v478 = vunpack.c.l.b16 %v396
      %v479 = vunpack.c.l.b16 %v397
      %v480 = vunpack.c.l.b16 %v398
      %v481 = vunpack.c.l.b16 %v399
      %v482 = vunpack.c.l.b16 %v400
      %v483 = vunpack.c.l.b16 %v401
      %v484 = vunpack.c.l.b16 %v402
      %v485 = vunpack.c.l.b16 %v403
      %v486 = vunpack.c.l.b16 %v404
      %v487 = vunpack.c.l.b16 %v405
      %v488 = vunpack.c.l.b16 %v406
      %v489 = vunpack.c.l.b16 %v407
      %v490 = vunpack.c.l.b16 %v408
      %v491 = vunpack.c.l.b16 %v409
      %v492 = vunpack.c.l.b16 %v410
      %v493 = vunpack.c.l.b16 %v411
      %v494 = vunpack.c.l.b16 %v412
      %v495 = vunpack.c.l.b16 %v413
      %v496 = vunpack.c.l.b16 %v414
      %v497 = vunpack.c.l.b16 %v415
      %v498 = vunpack.c.l.b16 %v416
      %v499 = vunpack.c.l.b16 %v417
      %v500 = vunpack.c.l.b16 %v418
      %v501 = vunpack.c.l.b16 %v419
      %v502 = vunpack.c.l.b16 %v420
      %v503 = vunpack.c.l.b16 %v421
      %v504 = vunpack.c.l.b16 %v422
      %v505 = vunpack.c.l.b16 %v423
      %v506 = vunpack.c.l.b16 %v424
      %v507 = vunpack.c.l.b16 %v425
      %v508 = vunpack.c.l.b16 %v426
      %v509 = vunpack.c.l.b16 %v427
      %v510 = vunpack.c.l.b16 %v428
      %v511 = vpack.c.b16 %v476, %v475
      %v512 = vpack.c.b16 %v478, %v477
      %v513 = vpack.c.b16 %v480, %v479
      %v514 = vpack.c.b16 %v482, %v481
      %v515 = vpack.c.b16 %v484, %v483
      %v516 = vpack.c.b16 %v486, %v485
      %v517 = vpack.c.b16 %v488, %v487
      %v518 = vpack.c.b16 %v490, %v489
      %v519 = vpack.c.b16 %v492, %v491
      %v520 = vpack.c.b16 %v494, %v493
      %v521 = vpack.c.b16 %v496, %v495
      %v522 = vpack.c.b16 %v498, %v497
      %v523 = vpack.c.b16 %v500, %v499
      %v524 = vpack.c.b16 %v502, %v501
      %v525 = vpack.c.b16 %v504, %v503
      %v526 = vpack.c.b16 %v506, %v505
      %v527 = vpack.c.b16 %v508, %v507
      %v528 = vpack.c.b16 %v510, %v509
      %v534 = vunpack.c.l.b16 %v430
      %v535 = vunpack.c.l.b16 %v431
      %v536 = vunpack.c.l.b16 %v432
      %v537 = vunpack.c.l.b16 %v433
      %v538 = vunpack.c.l.b16 %v434
      %v539 = vpack.c.b16 %v535, %v534
      %v540 = vpack.c.b16 %v537, %v536
      %v541 = vpack.c.b16 %v538, %v538
      %vm544 = vcmask 293888
      %v546 = vsel %vm544, %v511, 0
      %v549 = vsel %vm544, %v512, 0
      %v552 = vsel %vm544, %v513, 0
      %v555 = vsel %vm544, %v514, 0
      %v558 = vsel %vm544, %v515, 0
      %v561 = vsel %vm544, %v516, 0
      %v564 = vsel %vm544, %v517, 0
      %v567 = vsel %vm544, %v518, 0
      %v570 = vsel %vm544, %v519, 0
      %v573 = vsel %vm544, %v520, 0
      %v576 = vsel %vm544, %v521, 0
      %v579 = vsel %vm544, %v522, 0
      %v582 = vsel %vm544, %v523, 0
      %v585 = vsel %vm544, %v524, 0
      %v588 = vsel %vm544, %v525, 0
      %v591 = vsel %vm544, %v526, 0
      %v594 = vsel %vm544, %v527, 0
      %v597 = vsel %vm544, %v528, 0
      %vm599 = vcmask 1041408
      %v601 = vsel %vm599, %v541, 0
      %603 = vmatprep.subr.bf16.mxu0 0
      %604 = vmatpush1.bf16.msra.mxu0 %v539
      %605 = vmatprep.subr.bf16.mxu0 0
      %606 = vmatpush1.bf16.msra.mxu0 %v540
      %607 = vmatprep.subr.bf16.mxu0 0
      %608 = vmatpush1.bf16.msra.mxu0 %v601
      %609 = vmatprep.subr.bf16.mxu0 0
      %610 = vmatpush1.bf16.msra.mxu0 0
      %611 = vmatprep.subr.bf16.mxu0 0
      %612 = vmatpush1.bf16.msra.mxu0 0
      %613 = vmatprep.subr.bf16.mxu0 0
      %614 = vmatpush1.bf16.msra.mxu0 0
      %615 = vmatprep.subr.bf16.mxu0 0
      %616 = vmatpush1.bf16.msra.mxu0 0
      %617 = vmatprep.subr.bf16.mxu0 0
      %618 = vmatpush1.bf16.msra.mxu0 0
      %619 = vmatprep.subr.bf16.mxu0 0
      %620 = vmatpush1.bf16.msra.mxu0 0
      %621 = vmatprep.subr.bf16.mxu0 0
      %622 = vmatpush1.bf16.msra.mxu0 0
      %623 = vmatprep.subr.bf16.mxu0 0
      %624 = vmatpush1.bf16.msra.mxu0 0
      %625 = vmatprep.subr.bf16.mxu0 0
      %626 = vmatpush1.bf16.msra.mxu0 0
      %627 = vmatprep.subr.bf16.mxu0 0
      %628 = vmatpush1.bf16.msra.mxu0 0
      %629 = vmatprep.subr.bf16.mxu0 0
      %630 = vmatpush1.bf16.msra.mxu0 0
      %631 = vmatprep.subr.bf16.mxu0 0
      %632 = vmatpush1.bf16.msra.mxu0 0
      %633 = vmatprep.subr.bf16.mxu0 0
      %634 = vmatpush1.bf16.msra.mxu0 0
      %635 = vmatprep.mubr.bf16.mxu0 0
      %636 = vmatmul.mubr.bf16.gmra.mrb[0].mxu0 %v546
      %v637 = vpop.f32.mrb[0].mxu0
      %v638 = vadd.f32 %v438, %v637
      %v639 = vpop.f32.mrb[0].mxu0
      %v640 = vpop.f32.mrb[0].mxu0
      %v641 = vadd.f32 %v438, %v640
      %v642 = vpop.f32.mrb[0].mxu0
      %643 = vmatprep.mubr.bf16.mxu0 0
      %644 = vmatmul.mubr.bf16.gmra.mrb[0].mxu0 %v549
      %v645 = vpop.f32.mrb[0].mxu0
      %v646 = vadd.f32 %v438, %v645
      %v647 = vpop.f32.mrb[0].mxu0
      %v648 = vpop.f32.mrb[0].mxu0
      %v649 = vadd.f32 %v438, %v648
      %v650 = vpop.f32.mrb[0].mxu0
      %651 = vmatprep.mubr.bf16.mxu0 0
      %652 = vmatmul.mubr.bf16.gmra.mrb[0].mxu0 %v552
      %v653 = vpop.f32.mrb[0].mxu0
      %v654 = vadd.f32 %v438, %v653
      %v655 = vpop.f32.mrb[0].mxu0
      %v656 = vpop.f32.mrb[0].mxu0
      %v657 = vadd.f32 %v438, %v656
      %v658 = vpop.f32.mrb[0].mxu0
      %659 = vmatprep.mubr.bf16.mxu0 0
      %660 = vmatmul.mubr.bf16.gmra.mrb[0].mxu0 %v555
      %v661 = vpop.f32.mrb[0].mxu0
      %v662 = vadd.f32 %v438, %v661
      %v663 = vpop.f32.mrb[0].mxu0
      %v664 = vpop.f32.mrb[0].mxu0
      %v665 = vadd.f32 %v438, %v664
      %v666 = vpop.f32.mrb[0].mxu0
      %667 = vmatprep.mubr.bf16.mxu0 0
      %668 = vmatmul.mubr.bf16.gmra.mrb[0].mxu0 %v558
      %v669 = vpop.f32.mrb[0].mxu0
      %v670 = vadd.f32 %v438, %v669
      %v671 = vpop.f32.mrb[0].mxu0
      %v672 = vpop.f32.mrb[0].mxu0
      %v673 = vadd.f32 %v438, %v672
      %v674 = vpop.f32.mrb[0].mxu0
      %675 = vmatprep.mubr.bf16.mxu0 0
      %676 = vmatmul.mubr.bf16.gmra.mrb[0].mxu0 %v561
      %v677 = vpop.f32.mrb[0].mxu0
      %v678 = vadd.f32 %v438, %v677
      %v679 = vpop.f32.mrb[0].mxu0
      %v680 = vpop.f32.mrb[0].mxu0
      %v681 = vadd.f32 %v438, %v680
      %v682 = vpop.f32.mrb[0].mxu0
      %683 = vmatprep.mubr.bf16.mxu0 0
      %684 = vmatmul.mubr.bf16.gmra.mrb[0].mxu0 %v564
      %v685 = vpop.f32.mrb[0].mxu0
      %v686 = vadd.f32 %v438, %v685
      %v687 = vpop.f32.mrb[0].mxu0
      %v688 = vpop.f32.mrb[0].mxu0
      %v689 = vadd.f32 %v438, %v688
      %v690 = vpop.f32.mrb[0].mxu0
      %691 = vmatprep.mubr.bf16.mxu0 0
      %692 = vmatmul.mubr.bf16.gmra.mrb[0].mxu0 %v567
      %v693 = vpop.f32.mrb[0].mxu0
      %v694 = vadd.f32 %v438, %v693
      %v695 = vpop.f32.mrb[0].mxu0
      %v696 = vpop.f32.mrb[0].mxu0
      %v697 = vadd.f32 %v438, %v696
      %v698 = vpop.f32.mrb[0].mxu0
      %699 = vmatprep.mubr.bf16.mxu0 0
      %700 = vmatmul.mubr.bf16.gmra.mrb[0].mxu0 %v570
      %v701 = vpop.f32.mrb[0].mxu0
      %v702 = vadd.f32 %v438, %v701
      %v703 = vpop.f32.mrb[0].mxu0
      %v704 = vpop.f32.mrb[0].mxu0
      %v705 = vadd.f32 %v438, %v704
      %v706 = vpop.f32.mrb[0].mxu0
      %707 = vmatprep.mubr.bf16.mxu0 0
      %708 = vmatmul.mubr.bf16.gmra.mrb[0].mxu0 %v573
      %v709 = vpop.f32.mrb[0].mxu0
      %v710 = vadd.f32 %v438, %v709
      %v711 = vpop.f32.mrb[0].mxu0
      %v712 = vpop.f32.mrb[0].mxu0
      %v713 = vadd.f32 %v438, %v712
      %v714 = vpop.f32.mrb[0].mxu0
      %715 = vmatprep.mubr.bf16.mxu0 0
      %716 = vmatmul.mubr.bf16.gmra.mrb[0].mxu0 %v576
      %v717 = vpop.f32.mrb[0].mxu0
      %v718 = vadd.f32 %v438, %v717
      %v719 = vpop.f32.mrb[0].mxu0
      %v720 = vpop.f32.mrb[0].mxu0
      %v721 = vadd.f32 %v438, %v720
      %v722 = vpop.f32.mrb[0].mxu0
      %723 = vmatprep.mubr.bf16.mxu0 0
      %724 = vmatmul.mubr.bf16.gmra.mrb[0].mxu0 %v579
      %v725 = vpop.f32.mrb[0].mxu0
      %v726 = vadd.f32 %v438, %v725
      %v727 = vpop.f32.mrb[0].mxu0
      %v728 = vpop.f32.mrb[0].mxu0
      %v729 = vadd.f32 %v438, %v728
      %v730 = vpop.f32.mrb[0].mxu0
      %731 = vmatprep.mubr.bf16.mxu0 0
      %732 = vmatmul.mubr.bf16.gmra.mrb[0].mxu0 %v582
      %v733 = vpop.f32.mrb[0].mxu0
      %v734 = vadd.f32 %v438, %v733
      %v735 = vpop.f32.mrb[0].mxu0
      %v736 = vpop.f32.mrb[0].mxu0
      %v737 = vadd.f32 %v438, %v736
      %v738 = vpop.f32.mrb[0].mxu0
      %739 = vmatprep.mubr.bf16.mxu0 0
      %740 = vmatmul.mubr.bf16.gmra.mrb[0].mxu0 %v585
      %v741 = vpop.f32.mrb[0].mxu0
      %v742 = vadd.f32 %v438, %v741
      %v743 = vpop.f32.mrb[0].mxu0
      %v744 = vpop.f32.mrb[0].mxu0
      %v745 = vadd.f32 %v438, %v744
      %v746 = vpop.f32.mrb[0].mxu0
      %747 = vmatprep.mubr.bf16.mxu0 0
      %748 = vmatmul.mubr.bf16.gmra.mrb[0].mxu0 %v588
      %v749 = vpop.f32.mrb[0].mxu0
      %v750 = vadd.f32 %v438, %v749
      %v751 = vpop.f32.mrb[0].mxu0
      %v752 = vpop.f32.mrb[0].mxu0
      %v753 = vadd.f32 %v438, %v752
      %v754 = vpop.f32.mrb[0].mxu0
      %755 = vmatprep.mubr.bf16.mxu0 0
      %756 = vmatmul.mubr.bf16.gmra.mrb[0].mxu0 %v591
      %v757 = vpop.f32.mrb[0].mxu0
      %v758 = vadd.f32 %v438, %v757
      %v759 = vpop.f32.mrb[0].mxu0
      %v760 = vpop.f32.mrb[0].mxu0
      %v761 = vadd.f32 %v438, %v760
      %v762 = vpop.f32.mrb[0].mxu0
      %763 = vmatprep.mubr.bf16.mxu0 0
      %764 = vmatmul.mubr.bf16.gmra.mrb[0].mxu0 %v594
      %v765 = vpop.f32.mrb[0].mxu0
      %v766 = vadd.f32 %v438, %v765
      %v767 = vpop.f32.mrb[0].mxu0
      %v768 = vpop.f32.mrb[0].mxu0
      %v769 = vadd.f32 %v438, %v768
      %v770 = vpop.f32.mrb[0].mxu0
      %771 = vmatprep.mubr.bf16.mxu0 0
      %772 = vmatmul.mubr.bf16.gmra.mrb[0].mxu0 %v597
      %v773 = vpop.f32.mrb[0].mxu0
      %v774 = vadd.f32 %v438, %v773
      %v775 = vpop.f32.mrb[0].mxu0
      %v776 = vpop.f32.mrb[0].mxu0
      %v777 = vadd.f32 %v438, %v776
      %v778 = vpop.f32.mrb[0].mxu0
      %779 = vdwg.mxu0
      %v780 = vmax.f32 %v638, 0.0
      %v781 = vmax.f32 %v641, 0.0
      %v782 = vmax.f32 %v646, 0.0
      %v783 = vmax.f32 %v649, 0.0
      %v784 = vmax.f32 %v654, 0.0
      %v785 = vmax.f32 %v657, 0.0
      %v786 = vmax.f32 %v662, 0.0
      %v787 = vmax.f32 %v665, 0.0
      %v788 = vmax.f32 %v670, 0.0
      %v789 = vmax.f32 %v673, 0.0
      %v790 = vmax.f32 %v678, 0.0
      %v791 = vmax.f32 %v681, 0.0
      %v792 = vmax.f32 %v686, 0.0
      %v793 = vmax.f32 %v689, 0.0
      %v794 = vmax.f32 %v694, 0.0
      %v795 = vmax.f32 %v697, 0.0
      %v796 = vmax.f32 %v702, 0.0
      %v797 = vmax.f32 %v705, 0.0
      %v798 = vmax.f32 %v710, 0.0
      %v799 = vmax.f32 %v713, 0.0
      %v800 = vmax.f32 %v718, 0.0
      %v801 = vmax.f32 %v721, 0.0
      %v802 = vmax.f32 %v726, 0.0
      %v803 = vmax.f32 %v729, 0.0
      %v804 = vmax.f32 %v734, 0.0
      %v805 = vmax.f32 %v737, 0.0
      %v806 = vmax.f32 %v742, 0.0
      %v807 = vmax.f32 %v745, 0.0
      %v808 = vmax.f32 %v750, 0.0
      %v809 = vmax.f32 %v753, 0.0
      %v810 = vmax.f32 %v758, 0.0
      %v811 = vmax.f32 %v761, 0.0
      %v812 = vmax.f32 %v766, 0.0
      %v813 = vmax.f32 %v769, 0.0
      %v814 = vmax.f32 %v774, 0.0
      %v815 = vmax.f32 %v777, 0.0
      %817 = vset.pattern.permute.xlu0 0
      %818 = vperm.xlu0 %817, %v357
      %v819 = vpop.permute.xlu0 %818
      %822 = vset.pattern.permute.xlu0 0
      %823 = vperm.xlu0 %822, %v358
      %v824 = vpop.permute.xlu0 %823
      %827 = vset.pattern.permute.xlu0 0
      %828 = vperm.xlu0 %827, %v359
      %v829 = vpop.permute.xlu0 %828
      %832 = vset.pattern.permute.xlu0 0
      %833 = vperm.xlu0 %832, %v360
      %v834 = vpop.permute.xlu0 %833
      %837 = vset.pattern.permute.xlu0 0
      %838 = vperm.xlu0 %837, %v361
      %v839 = vpop.permute.xlu0 %838
      %842 = vset.pattern.permute.xlu0 0
      %843 = vperm.xlu0 %842, %v362
      %v844 = vpop.permute.xlu0 %843
      %847 = vset.pattern.permute.xlu0 0
      %848 = vperm.xlu0 %847, %v363
      %v849 = vpop.permute.xlu0 %848
      %852 = vset.pattern.permute.xlu0 0
      %853 = vperm.xlu0 %852, %v364
      %v854 = vpop.permute.xlu0 %853
      %857 = vset.pattern.permute.xlu0 0
      %858 = vperm.xlu0 %857, %v365
      %v859 = vpop.permute.xlu0 %858
      %862 = vset.pattern.permute.xlu0 0
      %863 = vperm.xlu0 %862, %v366
      %v864 = vpop.permute.xlu0 %863
      %867 = vset.pattern.permute.xlu0 0
      %868 = vperm.xlu0 %867, %v367
      %v869 = vpop.permute.xlu0 %868
      %872 = vset.pattern.permute.xlu0 0
      %873 = vperm.xlu0 %872, %v368
      %v874 = vpop.permute.xlu0 %873
      %877 = vset.pattern.permute.xlu0 0
      %878 = vperm.xlu0 %877, %v369
      %v879 = vpop.permute.xlu0 %878
      %882 = vset.pattern.permute.xlu0 0
      %883 = vperm.xlu0 %882, %v370
      %v884 = vpop.permute.xlu0 %883
      %887 = vset.pattern.permute.xlu0 0
      %888 = vperm.xlu0 %887, %v371
      %v889 = vpop.permute.xlu0 %888
      %892 = vset.pattern.permute.xlu0 0
      %893 = vperm.xlu0 %892, %v372
      %v894 = vpop.permute.xlu0 %893
      %897 = vset.pattern.permute.xlu0 0
      %898 = vperm.xlu0 %897, %v373
      %v899 = vpop.permute.xlu0 %898
      %902 = vset.pattern.permute.xlu0 0
      %903 = vperm.xlu0 %902, %v374
      %v904 = vpop.permute.xlu0 %903
      %907 = vset.pattern.permute.xlu0 0
      %908 = vperm.xlu0 %907, %v375
      %v909 = vpop.permute.xlu0 %908
      %912 = vset.pattern.permute.xlu0 0
      %913 = vperm.xlu0 %912, %v376
      %v914 = vpop.permute.xlu0 %913
      %917 = vset.pattern.permute.xlu0 0
      %918 = vperm.xlu0 %917, %v377
      %v919 = vpop.permute.xlu0 %918
      %922 = vset.pattern.permute.xlu0 0
      %923 = vperm.xlu0 %922, %v378
      %v924 = vpop.permute.xlu0 %923
      %927 = vset.pattern.permute.xlu0 0
      %928 = vperm.xlu0 %927, %v379
      %v929 = vpop.permute.xlu0 %928
      %932 = vset.pattern.permute.xlu0 0
      %933 = vperm.xlu0 %932, %v380
      %v934 = vpop.permute.xlu0 %933
      %937 = vset.pattern.permute.xlu0 0
      %938 = vperm.xlu0 %937, %v381
      %v939 = vpop.permute.xlu0 %938
      %942 = vset.pattern.permute.xlu0 0
      %943 = vperm.xlu0 %942, %v382
      %v944 = vpop.permute.xlu0 %943
      %947 = vset.pattern.permute.xlu0 0
      %948 = vperm.xlu0 %947, %v383
      %v949 = vpop.permute.xlu0 %948
      %952 = vset.pattern.permute.xlu0 0
      %953 = vperm.xlu0 %952, %v384
      %v954 = vpop.permute.xlu0 %953
      %957 = vset.pattern.permute.xlu0 0
      %958 = vperm.xlu0 %957, %v385
      %v959 = vpop.permute.xlu0 %958
      %962 = vset.pattern.permute.xlu0 0
      %963 = vperm.xlu0 %962, %v386
      %v964 = vpop.permute.xlu0 %963
      %967 = vset.pattern.permute.xlu0 0
      %968 = vperm.xlu0 %967, %v387
      %v969 = vpop.permute.xlu0 %968
      %972 = vset.pattern.permute.xlu0 0
      %973 = vperm.xlu0 %972, %v388
      %v974 = vpop.permute.xlu0 %973
      %977 = vset.pattern.permute.xlu0 0
      %978 = vperm.xlu0 %977, %v389
      %v979 = vpop.permute.xlu0 %978
      %982 = vset.pattern.permute.xlu0 0
      %983 = vperm.xlu0 %982, %v390
      %v984 = vpop.permute.xlu0 %983
      %987 = vset.pattern.permute.xlu0 0
      %988 = vperm.xlu0 %987, %v391
      %v989 = vpop.permute.xlu0 %988
      %992 = vset.pattern.permute.xlu0 0
      %993 = vperm.xlu0 %992, %v392
      %v994 = vpop.permute.xlu0 %993
      %v996 = vmul.f32 %v780, %v819
      %v997 = vmul.f32 %v781, %v824
      %v998 = vmul.f32 %v782, %v829
      %v999 = vmul.f32 %v783, %v834
      %v1000 = vmul.f32 %v784, %v839
      %v1001 = vmul.f32 %v785, %v844
      %v1002 = vmul.f32 %v786, %v849
      %v1003 = vmul.f32 %v787, %v854
      %v1004 = vmul.f32 %v788, %v859
      %v1005 = vmul.f32 %v789, %v864
      %v1006 = vmul.f32 %v790, %v869
      %v1007 = vmul.f32 %v791, %v874
      %v1008 = vmul.f32 %v792, %v879
      %v1009 = vmul.f32 %v793, %v884
      %v1010 = vmul.f32 %v794, %v889
      %v1011 = vmul.f32 %v795, %v894
      %v1012 = vmul.f32 %v796, %v899
      %v1013 = vmul.f32 %v797, %v904
      %v1014 = vmul.f32 %v798, %v909
      %v1015 = vmul.f32 %v799, %v914
      %v1016 = vmul.f32 %v800, %v919
      %v1017 = vmul.f32 %v801, %v924
      %v1018 = vmul.f32 %v802, %v929
      %v1019 = vmul.f32 %v803, %v934
      %v1020 = vmul.f32 %v804, %v939
      %v1021 = vmul.f32 %v805, %v944
      %v1022 = vmul.f32 %v806, %v949
      %v1023 = vmul.f32 %v807, %v954
      %v1024 = vmul.f32 %v808, %v959
      %v1025 = vmul.f32 %v809, %v964
      %v1026 = vmul.f32 %v810, %v969
      %v1027 = vmul.f32 %v811, %v974
      %v1028 = vmul.f32 %v812, %v979
      %v1029 = vmul.f32 %v813, %v984
      %v1030 = vmul.f32 %v814, %v989
      %v1031 = vmul.f32 %v815, %v994
      %v1032 = vpack.c.bf16 %v997, %v996
      %v1033 = vpack.c.bf16 %v998, %v998
      %v1034 = vpack.c.bf16 %v1000, %v999
      %v1035 = vpack.c.bf16 %v1001, %v1001
      %v1036 = vpack.c.bf16 %v1003, %v1002
      %v1037 = vpack.c.bf16 %v1004, %v1004
      %v1038 = vpack.c.bf16 %v1006, %v1005
      %v1039 = vpack.c.bf16 %v1007, %v1007
      %v1040 = vpack.c.bf16 %v1009, %v1008
      %v1041 = vpack.c.bf16 %v1010, %v1010
      %v1042 = vpack.c.bf16 %v1012, %v1011
      %v1043 = vpack.c.bf16 %v1013, %v1013
      %v1044 = vpack.c.bf16 %v1015, %v1014
      %v1045 = vpack.c.bf16 %v1016, %v1016
      %v1046 = vpack.c.bf16 %v1018, %v1017
      %v1047 = vpack.c.bf16 %v1019, %v1019
      %v1048 = vpack.c.bf16 %v1021, %v1020
      %v1049 = vpack.c.bf16 %v1022, %v1022
      %v1050 = vpack.c.bf16 %v1024, %v1023
      %v1051 = vpack.c.bf16 %v1025, %v1025
      %v1052 = vpack.c.bf16 %v1027, %v1026
      %v1053 = vpack.c.bf16 %v1028, %v1028
      %v1054 = vpack.c.bf16 %v1030, %v1029
      %v1055 = vpack.c.bf16 %v1031, %v1031
      %vm1056 = vsmask.f32 7424
      %v1058 = vshrl.u32 %v1032, 16
      %v1060 = vshll.u32 %v1032, 16
      %v1062 = vrot.slane %v1060, 1
      %v1063 = vor.u32 %v1058, %v1062
      %v1065 = vshll.u32 %v1033, 16
      %v1067 = vrot.slane %v1065, 1
      %v1068 = vsel %vm1056, %v1063, %v1067
      %v1070 = vshrl.u32 %v1034, 16
      %v1072 = vshll.u32 %v1034, 16
      %v1074 = vrot.slane %v1072, 1
      %v1075 = vor.u32 %v1070, %v1074
      %v1077 = vshll.u32 %v1035, 16
      %v1079 = vrot.slane %v1077, 1
      %v1080 = vsel %vm1056, %v1075, %v1079
      %v1082 = vshrl.u32 %v1036, 16
      %v1084 = vshll.u32 %v1036, 16
      %v1086 = vrot.slane %v1084, 1
      %v1087 = vor.u32 %v1082, %v1086
      %v1089 = vshll.u32 %v1037, 16
      %v1091 = vrot.slane %v1089, 1
      %v1092 = vsel %vm1056, %v1087, %v1091
      %v1094 = vshrl.u32 %v1038, 16
      %v1096 = vshll.u32 %v1038, 16
      %v1098 = vrot.slane %v1096, 1
      %v1099 = vor.u32 %v1094, %v1098
      %v1101 = vshll.u32 %v1039, 16
      %v1103 = vrot.slane %v1101, 1
      %v1104 = vsel %vm1056, %v1099, %v1103
      %v1106 = vshrl.u32 %v1040, 16
      %v1108 = vshll.u32 %v1040, 16
      %v1110 = vrot.slane %v1108, 1
      %v1111 = vor.u32 %v1106, %v1110
      %v1113 = vshll.u32 %v1041, 16
      %v1115 = vrot.slane %v1113, 1
      %v1116 = vsel %vm1056, %v1111, %v1115
      %v1118 = vshrl.u32 %v1042, 16
      %v1120 = vshll.u32 %v1042, 16
      %v1122 = vrot.slane %v1120, 1
      %v1123 = vor.u32 %v1118, %v1122
      %v1125 = vshll.u32 %v1043, 16
      %v1127 = vrot.slane %v1125, 1
      %v1128 = vsel %vm1056, %v1123, %v1127
      %v1130 = vshrl.u32 %v1044, 16
      %v1132 = vshll.u32 %v1044, 16
      %v1134 = vrot.slane %v1132, 1
      %v1135 = vor.u32 %v1130, %v1134
      %v1137 = vshll.u32 %v1045, 16
      %v1139 = vrot.slane %v1137, 1
      %v1140 = vsel %vm1056, %v1135, %v1139
      %v1142 = vshrl.u32 %v1046, 16
      %v1144 = vshll.u32 %v1046, 16
      %v1146 = vrot.slane %v1144, 1
      %v1147 = vor.u32 %v1142, %v1146
      %v1149 = vshll.u32 %v1047, 16
      %v1151 = vrot.slane %v1149, 1
      %v1152 = vsel %vm1056, %v1147, %v1151
      %v1154 = vshrl.u32 %v1048, 16
      %v1156 = vshll.u32 %v1048, 16
      %v1158 = vrot.slane %v1156, 1
      %v1159 = vor.u32 %v1154, %v1158
      %v1161 = vshll.u32 %v1049, 16
      %v1163 = vrot.slane %v1161, 1
      %v1164 = vsel %vm1056, %v1159, %v1163
      %v1166 = vshrl.u32 %v1050, 16
      %v1168 = vshll.u32 %v1050, 16
      %v1170 = vrot.slane %v1168, 1
      %v1171 = vor.u32 %v1166, %v1170
      %v1173 = vshll.u32 %v1051, 16
      %v1175 = vrot.slane %v1173, 1
      %v1176 = vsel %vm1056, %v1171, %v1175
      %1177 = vrot.lane.b32.xlu0 %v1068, 32
      %v1178 = vpop.permute.xlu0 %1177
      %1179 = vrot.lane.b32.xlu0 %v1080, 32
      %v1180 = vpop.permute.xlu0 %1179
      %1181 = vrot.lane.b32.xlu0 %v1092, 32
      %v1182 = vpop.permute.xlu0 %1181
      %1183 = vrot.lane.b32.xlu0 %v1104, 32
      %v1184 = vpop.permute.xlu0 %1183
      %1185 = vrot.lane.b32.xlu0 %v1116, 32
      %v1186 = vpop.permute.xlu0 %1185
      %1187 = vrot.lane.b32.xlu0 %v1128, 32
      %v1188 = vpop.permute.xlu0 %1187
      %1189 = vrot.lane.b32.xlu0 %v1140, 32
      %v1190 = vpop.permute.xlu0 %1189
      %1191 = vrot.lane.b32.xlu0 %v1152, 32
      %v1192 = vpop.permute.xlu0 %1191
      %1193 = vrot.lane.b32.xlu0 %v1164, 32
      %v1194 = vpop.permute.xlu0 %1193
      %1195 = vrot.lane.b32.xlu0 %v1176, 32
      %v1196 = vpop.permute.xlu0 %1195
      %vm1217 = vcmask 1046528
      %v1218 = vrot.slane %v1032, 1
      %v1219 = vrot.slane %v1033, 1
      %v1220 = vsel %vm1217, %v1218, %v1219
      %v1221 = vrot.slane %v1034, 1
      %v1222 = vrot.slane %v1035, 1
      %v1223 = vsel %vm1217, %v1221, %v1222
      %v1224 = vrot.slane %v1036, 1
      %v1225 = vrot.slane %v1037, 1
      %v1226 = vsel %vm1217, %v1224, %v1225
      %v1227 = vrot.slane %v1038, 1
      %v1228 = vrot.slane %v1039, 1
      %v1229 = vsel %vm1217, %v1227, %v1228
      %v1230 = vrot.slane %v1040, 1
      %v1231 = vrot.slane %v1041, 1
      %v1232 = vsel %vm1217, %v1230, %v1231
      %v1233 = vrot.slane %v1042, 1
      %v1234 = vrot.slane %v1043, 1
      %v1235 = vsel %vm1217, %v1233, %v1234
      %v1236 = vrot.slane %v1044, 1
      %v1237 = vrot.slane %v1045, 1
      %v1238 = vsel %vm1217, %v1236, %v1237
      %v1239 = vrot.slane %v1046, 1
      %v1240 = vrot.slane %v1047, 1
      %v1241 = vsel %vm1217, %v1239, %v1240
      %v1242 = vrot.slane %v1048, 1
      %v1243 = vrot.slane %v1049, 1
      %v1244 = vsel %vm1217, %v1242, %v1243
      %v1245 = vrot.slane %v1050, 1
      %v1246 = vrot.slane %v1051, 1
      %v1247 = vsel %vm1217, %v1245, %v1246
      %1248 = vrot.lane.b32.xlu0 %v1220, 64
      %v1249 = vpop.permute.xlu0 %1248
      %1250 = vrot.lane.b32.xlu0 %v1223, 64
      %v1251 = vpop.permute.xlu0 %1250
      %1252 = vrot.lane.b32.xlu0 %v1226, 64
      %v1253 = vpop.permute.xlu0 %1252
      %1254 = vrot.lane.b32.xlu0 %v1229, 64
      %v1255 = vpop.permute.xlu0 %1254
      %1256 = vrot.lane.b32.xlu0 %v1232, 64
      %v1257 = vpop.permute.xlu0 %1256
      %1258 = vrot.lane.b32.xlu0 %v1235, 64
      %v1259 = vpop.permute.xlu0 %1258
      %1260 = vrot.lane.b32.xlu0 %v1238, 64
      %v1261 = vpop.permute.xlu0 %1260
      %1262 = vrot.lane.b32.xlu0 %v1241, 64
      %v1263 = vpop.permute.xlu0 %1262
      %1264 = vrot.lane.b32.xlu0 %v1244, 64
      %v1265 = vpop.permute.xlu0 %1264
      %1266 = vrot.lane.b32.xlu0 %v1247, 64
      %v1267 = vpop.permute.xlu0 %1266
      %1269 = vrot.lane.b32.xlu0 %v1034, 96
      %v1270 = vpop.permute.xlu0 %1269
      %1271 = vrot.lane.b32.xlu0 %v1036, 96
      %v1272 = vpop.permute.xlu0 %1271
      %1273 = vrot.lane.b32.xlu0 %v1038, 96
      %v1274 = vpop.permute.xlu0 %1273
      %1275 = vrot.lane.b32.xlu0 %v1040, 96
      %v1276 = vpop.permute.xlu0 %1275
      %1277 = vrot.lane.b32.xlu0 %v1042, 96
      %v1278 = vpop.permute.xlu0 %1277
      %1279 = vrot.lane.b32.xlu0 %v1044, 96
      %v1280 = vpop.permute.xlu0 %1279
      %1281 = vrot.lane.b32.xlu0 %v1046, 96
      %v1282 = vpop.permute.xlu0 %1281
      %1283 = vrot.lane.b32.xlu0 %v1048, 96
      %v1284 = vpop.permute.xlu0 %1283
      %1285 = vrot.lane.b32.xlu0 %v1050, 96
      %v1286 = vpop.permute.xlu0 %1285
      %1287 = vrot.lane.b32.xlu0 %v1052, 96
      %v1288 = vpop.permute.xlu0 %1287
      %v1290 = vshrl.u32 %v1052, 16
      %v1292 = vshll.u32 %v1052, 16
      %v1294 = vrot.slane %v1292, 1
      %v1295 = vor.u32 %v1290, %v1294
      %v1297 = vshll.u32 %v1053, 16
      %v1299 = vrot.slane %v1297, 1
      %v1300 = vsel %vm1056, %v1295, %v1299
      %v1302 = vrot.slane %v1052, 1
      %v1303 = vrot.slane %v1053, 1
      %v1304 = vsel %vm1217, %v1302, %v1303
      %1305 = vrot.lane.b32.xlu0 %v1223, 32
      %v1306 = vpop.permute.xlu0 %1305
      %1307 = vrot.lane.b32.xlu0 %v1226, 32
      %v1308 = vpop.permute.xlu0 %1307
      %1309 = vrot.lane.b32.xlu0 %v1229, 32
      %v1310 = vpop.permute.xlu0 %1309
      %1311 = vrot.lane.b32.xlu0 %v1232, 32
      %v1312 = vpop.permute.xlu0 %1311
      %1313 = vrot.lane.b32.xlu0 %v1235, 32
      %v1314 = vpop.permute.xlu0 %1313
      %1315 = vrot.lane.b32.xlu0 %v1238, 32
      %v1316 = vpop.permute.xlu0 %1315
      %1317 = vrot.lane.b32.xlu0 %v1241, 32
      %v1318 = vpop.permute.xlu0 %1317
      %1319 = vrot.lane.b32.xlu0 %v1244, 32
      %v1320 = vpop.permute.xlu0 %1319
      %1321 = vrot.lane.b32.xlu0 %v1247, 32
      %v1322 = vpop.permute.xlu0 %1321
      %1323 = vrot.lane.b32.xlu0 %v1304, 32
      %v1324 = vpop.permute.xlu0 %1323
      %1326 = vrot.lane.b32.xlu0 %v1036, 64
      %v1327 = vpop.permute.xlu0 %1326
      %1328 = vrot.lane.b32.xlu0 %v1038, 64
      %v1329 = vpop.permute.xlu0 %1328
      %1330 = vrot.lane.b32.xlu0 %v1040, 64
      %v1331 = vpop.permute.xlu0 %1330
      %1332 = vrot.lane.b32.xlu0 %v1042, 64
      %v1333 = vpop.permute.xlu0 %1332
      %1334 = vrot.lane.b32.xlu0 %v1044, 64
      %v1335 = vpop.permute.xlu0 %1334
      %1336 = vrot.lane.b32.xlu0 %v1046, 64
      %v1337 = vpop.permute.xlu0 %1336
      %1338 = vrot.lane.b32.xlu0 %v1048, 64
      %v1339 = vpop.permute.xlu0 %1338
      %1340 = vrot.lane.b32.xlu0 %v1050, 64
      %v1341 = vpop.permute.xlu0 %1340
      %1342 = vrot.lane.b32.xlu0 %v1052, 64
      %v1343 = vpop.permute.xlu0 %1342
      %1344 = vrot.lane.b32.xlu0 %v1054, 64
      %v1345 = vpop.permute.xlu0 %1344
      %v1347 = vshrl.u32 %v1054, 16
      %v1349 = vshll.u32 %v1054, 16
      %v1351 = vrot.slane %v1349, 1
      %v1352 = vor.u32 %v1347, %v1351
      %v1354 = vshll.u32 %v1055, 16
      %v1356 = vrot.slane %v1354, 1
      %v1357 = vsel %vm1056, %v1352, %v1356
      %1358 = vrot.lane.b32.xlu0 %v1092, 96
      %v1359 = vpop.permute.xlu0 %1358
      %1360 = vrot.lane.b32.xlu0 %v1104, 96
      %v1361 = vpop.permute.xlu0 %1360
      %1362 = vrot.lane.b32.xlu0 %v1116, 96
      %v1363 = vpop.permute.xlu0 %1362
      %1364 = vrot.lane.b32.xlu0 %v1128, 96
      %v1365 = vpop.permute.xlu0 %1364
      %1366 = vrot.lane.b32.xlu0 %v1140, 96
      %v1367 = vpop.permute.xlu0 %1366
      %1368 = vrot.lane.b32.xlu0 %v1152, 96
      %v1369 = vpop.permute.xlu0 %1368
      %1370 = vrot.lane.b32.xlu0 %v1164, 96
      %v1371 = vpop.permute.xlu0 %1370
      %1372 = vrot.lane.b32.xlu0 %v1176, 96
      %v1373 = vpop.permute.xlu0 %1372
      %1374 = vrot.lane.b32.xlu0 %v1300, 96
      %v1375 = vpop.permute.xlu0 %1374
      %1376 = vrot.lane.b32.xlu0 %v1357, 96
      %v1377 = vpop.permute.xlu0 %1376
      %v1379 = vrot.slane %v1054, 1
      %v1380 = vrot.slane %v1055, 1
      %v1381 = vsel %vm1217, %v1379, %v1380
      %vm1382 = vcmask 261120
      %v1384 = vsel %vm1382, %v1032, %v1178
      %v1386 = vsel %vm1382, %v1034, %v1180
      %v1388 = vsel %vm1382, %v1036, %v1182
      %v1390 = vsel %vm1382, %v1038, %v1184
      %v1392 = vsel %vm1382, %v1040, %v1186
      %v1394 = vsel %vm1382, %v1042, %v1188
      %v1396 = vsel %vm1382, %v1044, %v1190
      %v1398 = vsel %vm1382, %v1046, %v1192
      %v1400 = vsel %vm1382, %v1048, %v1194
      %v1402 = vsel %vm1382, %v1050, %v1196
      %vm1403 = vcmask 523264
      %v1405 = vsel %vm1403, %v1384, %v1249
      %v1407 = vsel %vm1403, %v1386, %v1251
      %v1409 = vsel %vm1403, %v1388, %v1253
      %v1411 = vsel %vm1403, %v1390, %v1255
      %v1413 = vsel %vm1403, %v1392, %v1257
      %v1415 = vsel %vm1403, %v1394, %v1259
      %v1417 = vsel %vm1403, %v1396, %v1261
      %v1419 = vsel %vm1403, %v1398, %v1263
      %v1421 = vsel %vm1403, %v1400, %v1265
      %v1423 = vsel %vm1403, %v1402, %v1267
      %vm1424 = vcmask 785408
      %v1426 = vsel %vm1424, %v1405, %v1270
      %v1429 = vsel %vm1424, %v1407, %v1272
      %v1432 = vsel %vm1424, %v1409, %v1274
      %v1435 = vsel %vm1424, %v1411, %v1276
      %v1438 = vsel %vm1424, %v1413, %v1278
      %v1441 = vsel %vm1424, %v1415, %v1280
      %v1444 = vsel %vm1424, %v1417, %v1282
      %v1447 = vsel %vm1424, %v1419, %v1284
      %v1450 = vsel %vm1424, %v1421, %v1286
      %v1453 = vsel %vm1424, %v1423, %v1288
      %v1457 = vsel %vm1382, %v1080, %v1306
      %v1460 = vsel %vm1382, %v1092, %v1308
      %v1463 = vsel %vm1382, %v1104, %v1310
      %v1466 = vsel %vm1382, %v1116, %v1312
      %v1469 = vsel %vm1382, %v1128, %v1314
      %v1472 = vsel %vm1382, %v1140, %v1316
      %v1475 = vsel %vm1382, %v1152, %v1318
      %v1478 = vsel %vm1382, %v1164, %v1320
      %v1481 = vsel %vm1382, %v1176, %v1322
      %v1484 = vsel %vm1382, %v1300, %v1324
      %v1486 = vsel %vm1403, %v1457, %v1327
      %v1488 = vsel %vm1403, %v1460, %v1329
      %v1490 = vsel %vm1403, %v1463, %v1331
      %v1492 = vsel %vm1403, %v1466, %v1333
      %v1494 = vsel %vm1403, %v1469, %v1335
      %v1496 = vsel %vm1403, %v1472, %v1337
      %v1498 = vsel %vm1403, %v1475, %v1339
      %v1500 = vsel %vm1403, %v1478, %v1341
      %v1502 = vsel %vm1403, %v1481, %v1343
      %v1504 = vsel %vm1403, %v1484, %v1345
      %v1506 = vsel %vm1424, %v1486, %v1359
      %v1509 = vsel %vm1424, %v1488, %v1361
      %v1512 = vsel %vm1424, %v1490, %v1363
      %v1515 = vsel %vm1424, %v1492, %v1365
      %v1518 = vsel %vm1424, %v1494, %v1367
      %v1521 = vsel %vm1424, %v1496, %v1369
      %v1524 = vsel %vm1424, %v1498, %v1371
      %v1527 = vsel %vm1424, %v1500, %v1373
      %v1530 = vsel %vm1424, %v1502, %v1375
      %v1533 = vsel %vm1424, %v1504, %v1377
      %v1535 = vld [vmem:[%s9 + $0x1] sm:$0x1]
      %v1536 = vld [vmem:[%s3] sm:$0xf]
      %v1537 = vld [vmem:[%s3 + $0x4] sm:$0xf]
      %v1538 = vld [vmem:[%s3 + $0x8] sm:$0xf]
      %v1539 = vld [vmem:[%s3 + $0xc] sm:$0xf]
      %v1540 = vld [vmem:[%s3 + $0x10] sm:$0xf]
      %v1541 = vld [vmem:[%s3 + $0x14] sm:$0xf]
      %v1542 = vld [vmem:[%s3 + $0x18] sm:$0xf]
      %v1543 = vld [vmem:[%s3 + $0x1c] sm:$0xf]
      %v1544 = vld [vmem:[%s3 + $0x20] sm:$0xf]
      %v1545 = vld [vmem:[%s3 + $0x24] sm:$0xf]
      %v1546 = vld [vmem:[%s3 + $0x28] sm:$0xf]
      %v1547 = vld [vmem:[%s3 + $0x2c] sm:$0xf]
      %v1548 = vld [vmem:[%s3 + $0x30] sm:$0xf]
      %v1549 = vld [vmem:[%s3 + $0x34] sm:$0xf]
      %v1550 = vld [vmem:[%s3 + $0x38] sm:$0xf]
      %v1551 = vld [vmem:[%s3 + $0x3c] sm:$0xf]
      %v1552 = vld [vmem:[%s3 + $0x40] sm:$0xf]
      %v1553 = vld [vmem:[%s3 + $0x44] sm:$0xf]
      %v1554 = vld [vmem:[%s3 + $0x48] sm:$0xf]
      %v1555 = vld [vmem:[%s3 + $0x4c] sm:$0xf]
      %v1556 = vld [vmem:[%s3 + $0x50] sm:$0xf]
      %v1557 = vld [vmem:[%s3 + $0x54] sm:$0xf]
      %v1558 = vld [vmem:[%s3 + $0x58] sm:$0xf]
      %v1559 = vld [vmem:[%s3 + $0x5c] sm:$0xf]
      %v1560 = vld [vmem:[%s3 + $0x60] sm:$0xf]
      %v1561 = vld [vmem:[%s3 + $0x64] sm:$0xf]
      %v1562 = vld [vmem:[%s3 + $0x68] sm:$0xf]
      %v1563 = vld [vmem:[%s3 + $0x6c] sm:$0xf]
      %v1564 = vld [vmem:[%s3 + $0x70] sm:$0xf]
      %v1565 = vld [vmem:[%s3 + $0x74] sm:$0xf]
      %v1566 = vld [vmem:[%s3 + $0x78] sm:$0xf]
      %v1567 = vld [vmem:[%s3 + $0x7c] sm:$0xf]
      %v1568 = vld [vmem:[%s3 + $0x80] sm:$0xf]
      %v1569 = vld [vmem:[%s3 + $0x84] sm:$0xf]
      %v1570 = vld [vmem:[%s3 + $0x88] sm:$0xf]
      %v1571 = vld [vmem:[%s3 + $0x8c] sm:$0xf]
      %v1572 = vlaneseq
      %v1573 = vshrl.u32 %v1572, 7
      %v1574 = vsub.s32 0, %v1573
      %v1575 = vrot.slane %v1535, %v1574
      %v1612 = vunpack.c.l.b16 %v1536
      %v1613 = vunpack.c.l.b16 %v1537
      %v1614 = vunpack.c.l.b16 %v1538
      %v1615 = vunpack.c.l.b16 %v1539
      %v1616 = vunpack.c.l.b16 %v1540
      %v1617 = vunpack.c.l.b16 %v1541
      %v1618 = vunpack.c.l.b16 %v1542
      %v1619 = vunpack.c.l.b16 %v1543
      %v1620 = vunpack.c.l.b16 %v1544
      %v1621 = vunpack.c.l.b16 %v1545
      %v1622 = vunpack.c.l.b16 %v1546
      %v1623 = vunpack.c.l.b16 %v1547
      %v1624 = vunpack.c.l.b16 %v1548
      %v1625 = vunpack.c.l.b16 %v1549
      %v1626 = vunpack.c.l.b16 %v1550
      %v1627 = vunpack.c.l.b16 %v1551
      %v1628 = vunpack.c.l.b16 %v1552
      %v1629 = vunpack.c.l.b16 %v1553
      %v1630 = vunpack.c.l.b16 %v1554
      %v1631 = vunpack.c.l.b16 %v1555
      %v1632 = vunpack.c.l.b16 %v1556
      %v1633 = vunpack.c.l.b16 %v1557
      %v1634 = vunpack.c.l.b16 %v1558
      %v1635 = vunpack.c.l.b16 %v1559
      %v1636 = vunpack.c.l.b16 %v1560
      %v1637 = vunpack.c.l.b16 %v1561
      %v1638 = vunpack.c.l.b16 %v1562
      %v1639 = vunpack.c.l.b16 %v1563
      %v1640 = vunpack.c.l.b16 %v1564
      %v1641 = vunpack.c.l.b16 %v1565
      %v1642 = vunpack.c.l.b16 %v1566
      %v1643 = vunpack.c.l.b16 %v1567
      %v1644 = vunpack.c.l.b16 %v1568
      %v1645 = vunpack.c.l.b16 %v1569
      %v1646 = vunpack.c.l.b16 %v1570
      %v1647 = vunpack.c.l.b16 %v1571
      %v1648 = vpack.c.b16 %v1613, %v1612
      %v1649 = vpack.c.b16 %v1615, %v1614
      %v1650 = vpack.c.b16 %v1617, %v1616
      %v1651 = vpack.c.b16 %v1619, %v1618
      %v1652 = vpack.c.b16 %v1621, %v1620
      %v1653 = vpack.c.b16 %v1623, %v1622
      %v1654 = vpack.c.b16 %v1625, %v1624
      %v1655 = vpack.c.b16 %v1627, %v1626
      %v1656 = vpack.c.b16 %v1629, %v1628
      %v1657 = vpack.c.b16 %v1631, %v1630
      %v1658 = vpack.c.b16 %v1633, %v1632
      %v1659 = vpack.c.b16 %v1635, %v1634
      %v1660 = vpack.c.b16 %v1637, %v1636
      %v1661 = vpack.c.b16 %v1639, %v1638
      %v1662 = vpack.c.b16 %v1641, %v1640
      %v1663 = vpack.c.b16 %v1643, %v1642
      %v1664 = vpack.c.b16 %v1645, %v1644
      %v1665 = vpack.c.b16 %v1647, %v1646
      %v1685 = vsel %vm1382, %v1226, 0
      %v1688 = vsel %vm1382, %v1229, 0
      %v1691 = vsel %vm1382, %v1232, 0
      %v1694 = vsel %vm1382, %v1235, 0
      %v1697 = vsel %vm1382, %v1238, 0
      %v1700 = vsel %vm1382, %v1241, 0
      %v1703 = vsel %vm1382, %v1244, 0
      %v1706 = vsel %vm1382, %v1247, 0
      %v1709 = vsel %vm1382, %v1304, 0
      %v1712 = vsel %vm1382, %v1381, 0
      %1714 = vmatprep.subr.bf16.mxu0 0
      %1715 = vmatpush1.bf16.msra.mxu0 %v1648
      %1716 = vmatprep.subr.bf16.mxu0 0
      %1717 = vmatpush1.bf16.msra.mxu0 %v1649
      %1718 = vmatprep.subr.bf16.mxu0 0
      %1719 = vmatpush1.bf16.msra.mxu0 %v1650
      %1720 = vmatprep.subr.bf16.mxu0 0
      %1721 = vmatpush1.bf16.msra.mxu0 %v1651
      %1722 = vmatprep.subr.bf16.mxu0 0
      %1723 = vmatpush1.bf16.msra.mxu0 %v1652
      %1724 = vmatprep.subr.bf16.mxu0 0
      %1725 = vmatpush1.bf16.msra.mxu0 %v1653
      %1726 = vmatprep.subr.bf16.mxu0 0
      %1727 = vmatpush1.bf16.msra.mxu0 %v1654
      %1728 = vmatprep.subr.bf16.mxu0 0
      %1729 = vmatpush1.bf16.msra.mxu0 %v1655
      %1730 = vmatprep.subr.bf16.mxu0 0
      %1731 = vmatpush1.bf16.msra.mxu0 %v1656
      %1732 = vmatprep.subr.bf16.mxu0 0
      %1733 = vmatpush1.bf16.msra.mxu0 %v1657
      %1734 = vmatprep.subr.bf16.mxu0 0
      %1735 = vmatpush1.bf16.msra.mxu0 %v1658
      %1736 = vmatprep.subr.bf16.mxu0 0
      %1737 = vmatpush1.bf16.msra.mxu0 %v1659
      %1738 = vmatprep.subr.bf16.mxu0 0
      %1739 = vmatpush1.bf16.msra.mxu0 %v1660
      %1740 = vmatprep.subr.bf16.mxu0 0
      %1741 = vmatpush1.bf16.msra.mxu0 %v1661
      %1742 = vmatprep.subr.bf16.mxu0 0
      %1743 = vmatpush1.bf16.msra.mxu0 %v1662
      %1744 = vmatprep.subr.bf16.mxu0 0
      %1745 = vmatpush1.bf16.msra.mxu0 %v1663
      %1746 = vmatprep.mubr.bf16.mxu0 %v1506
      %1747 = vmatmul.mubr.bf16.gmra.mrb[0].mxu0 %v1426
      %v1748 = vpop.f32.mrb[0].mxu0
      %v1749 = vadd.f32 %v1575, %v1748
      %v1750 = vpop.f32.mrb[0].mxu0
      %v1751 = vpop.f32.mrb[0].mxu0
      %v1752 = vadd.f32 %v1575, %v1751
      %v1753 = vpop.f32.mrb[0].mxu0
      %1754 = vmatprep.mubr.bf16.mxu0 %v1509
      %1755 = vmatmul.mubr.bf16.gmra.mrb[0].mxu0 %v1429
      %v1756 = vpop.f32.mrb[0].mxu0
      %v1757 = vadd.f32 %v1575, %v1756
      %v1758 = vpop.f32.mrb[0].mxu0
      %v1759 = vpop.f32.mrb[0].mxu0
      %v1760 = vadd.f32 %v1575, %v1759
      %v1761 = vpop.f32.mrb[0].mxu0
      %1762 = vmatprep.mubr.bf16.mxu0 %v1512
      %1763 = vmatmul.mubr.bf16.gmra.mrb[0].mxu0 %v1432
      %v1764 = vpop.f32.mrb[0].mxu0
      %v1765 = vadd.f32 %v1575, %v1764
      %v1766 = vpop.f32.mrb[0].mxu0
      %v1767 = vpop.f32.mrb[0].mxu0
      %v1768 = vadd.f32 %v1575, %v1767
      %v1769 = vpop.f32.mrb[0].mxu0
      %1770 = vmatprep.mubr.bf16.mxu0 %v1515
      %1771 = vmatmul.mubr.bf16.gmra.mrb[0].mxu0 %v1435
      %v1772 = vpop.f32.mrb[0].mxu0
      %v1773 = vadd.f32 %v1575, %v1772
      %v1774 = vpop.f32.mrb[0].mxu0
      %v1775 = vpop.f32.mrb[0].mxu0
      %v1776 = vadd.f32 %v1575, %v1775
      %v1777 = vpop.f32.mrb[0].mxu0
      %1778 = vmatprep.mubr.bf16.mxu0 %v1518
      %1779 = vmatmul.mubr.bf16.gmra.mrb[0].mxu0 %v1438
      %v1780 = vpop.f32.mrb[0].mxu0
      %v1781 = vadd.f32 %v1575, %v1780
      %v1782 = vpop.f32.mrb[0].mxu0
      %v1783 = vpop.f32.mrb[0].mxu0
      %v1784 = vadd.f32 %v1575, %v1783
      %v1785 = vpop.f32.mrb[0].mxu0
      %1786 = vmatprep.mubr.bf16.mxu0 %v1521
      %1787 = vmatmul.mubr.bf16.gmra.mrb[0].mxu0 %v1441
      %v1788 = vpop.f32.mrb[0].mxu0
      %v1789 = vadd.f32 %v1575, %v1788
      %v1790 = vpop.f32.mrb[0].mxu0
      %v1791 = vpop.f32.mrb[0].mxu0
      %v1792 = vadd.f32 %v1575, %v1791
      %v1793 = vpop.f32.mrb[0].mxu0
      %1794 = vmatprep.mubr.bf16.mxu0 %v1524
      %1795 = vmatmul.mubr.bf16.gmra.mrb[0].mxu0 %v1444
      %v1796 = vpop.f32.mrb[0].mxu0
      %v1797 = vadd.f32 %v1575, %v1796
      %v1798 = vpop.f32.mrb[0].mxu0
      %v1799 = vpop.f32.mrb[0].mxu0
      %v1800 = vadd.f32 %v1575, %v1799
      %v1801 = vpop.f32.mrb[0].mxu0
      %1802 = vmatprep.mubr.bf16.mxu0 %v1527
      %1803 = vmatmul.mubr.bf16.gmra.mrb[0].mxu0 %v1447
      %v1804 = vpop.f32.mrb[0].mxu0
      %v1805 = vadd.f32 %v1575, %v1804
      %v1806 = vpop.f32.mrb[0].mxu0
      %v1807 = vpop.f32.mrb[0].mxu0
      %v1808 = vadd.f32 %v1575, %v1807
      %v1809 = vpop.f32.mrb[0].mxu0
      %1810 = vmatprep.mubr.bf16.mxu0 %v1530
      %1811 = vmatmul.mubr.bf16.gmra.mrb[0].mxu0 %v1450
      %v1812 = vpop.f32.mrb[0].mxu0
      %v1813 = vadd.f32 %v1575, %v1812
      %v1814 = vpop.f32.mrb[0].mxu0
      %v1815 = vpop.f32.mrb[0].mxu0
      %v1816 = vadd.f32 %v1575, %v1815
      %v1817 = vpop.f32.mrb[0].mxu0
      %1818 = vmatprep.mubr.bf16.mxu0 %v1533
      %1819 = vmatmul.mubr.bf16.gmra.mrb[0].mxu0 %v1453
      %v1820 = vpop.f32.mrb[0].mxu0
      %v1821 = vadd.f32 %v1575, %v1820
      %v1822 = vpop.f32.mrb[0].mxu0
      %v1823 = vpop.f32.mrb[0].mxu0
      %v1824 = vadd.f32 %v1575, %v1823
      %v1825 = vpop.f32.mrb[0].mxu0
      %1826 = vdwg.mxu0
      %1827 = vmatprep.subr.bf16.mxu0 0
      %1828 = vmatpush1.bf16.msra.mxu0 %v1664
      %1829 = vmatprep.subr.bf16.mxu0 0
      %1830 = vmatpush1.bf16.msra.mxu0 %v1665
      %1831 = vmatprep.subr.bf16.mxu0 0
      %1832 = vmatpush1.bf16.msra.mxu0 0
      %1833 = vmatprep.subr.bf16.mxu0 0
      %1834 = vmatpush1.bf16.msra.mxu0 0
      %1835 = vmatprep.subr.bf16.mxu0 0
      %1836 = vmatpush1.bf16.msra.mxu0 0
      %1837 = vmatprep.subr.bf16.mxu0 0
      %1838 = vmatpush1.bf16.msra.mxu0 0
      %1839 = vmatprep.subr.bf16.mxu0 0
      %1840 = vmatpush1.bf16.msra.mxu0 0
      %1841 = vmatprep.subr.bf16.mxu0 0
      %1842 = vmatpush1.bf16.msra.mxu0 0
      %1843 = vmatprep.subr.bf16.mxu0 0
      %1844 = vmatpush1.bf16.msra.mxu0 0
      %1845 = vmatprep.subr.bf16.mxu0 0
      %1846 = vmatpush1.bf16.msra.mxu0 0
      %1847 = vmatprep.subr.bf16.mxu0 0
      %1848 = vmatpush1.bf16.msra.mxu0 0
      %1849 = vmatprep.subr.bf16.mxu0 0
      %1850 = vmatpush1.bf16.msra.mxu0 0
      %1851 = vmatprep.subr.bf16.mxu0 0
      %1852 = vmatpush1.bf16.msra.mxu0 0
      %1853 = vmatprep.subr.bf16.mxu0 0
      %1854 = vmatpush1.bf16.msra.mxu0 0
      %1855 = vmatprep.subr.bf16.mxu0 0
      %1856 = vmatpush1.bf16.msra.mxu0 0
      %1857 = vmatprep.subr.bf16.mxu0 0
      %1858 = vmatpush1.bf16.msra.mxu0 0
      %1859 = vmatprep.mubr.bf16.mxu0 0
      %1860 = vmatmul.mubr.bf16.gmra.mrb[0].mxu0 %v1685
      %v1861 = vpop.f32.mrb[0].mxu0
      %v1862 = vadd.f32 %v1749, %v1861
      %v1863 = vpop.f32.mrb[0].mxu0
      %v1864 = vpop.f32.mrb[0].mxu0
      %v1865 = vadd.f32 %v1752, %v1864
      %v1866 = vpop.f32.mrb[0].mxu0
      %1867 = vmatprep.mubr.bf16.mxu0 0
      %1868 = vmatmul.mubr.bf16.gmra.mrb[0].mxu0 %v1688
      %v1869 = vpop.f32.mrb[0].mxu0
      %v1870 = vadd.f32 %v1757, %v1869
      %v1871 = vpop.f32.mrb[0].mxu0
      %v1872 = vpop.f32.mrb[0].mxu0
      %v1873 = vadd.f32 %v1760, %v1872
      %v1874 = vpop.f32.mrb[0].mxu0
      %1875 = vmatprep.mubr.bf16.mxu0 0
      %1876 = vmatmul.mubr.bf16.gmra.mrb[0].mxu0 %v1691
      %v1877 = vpop.f32.mrb[0].mxu0
      %v1878 = vadd.f32 %v1765, %v1877
      %v1879 = vpop.f32.mrb[0].mxu0
      %v1880 = vpop.f32.mrb[0].mxu0
      %v1881 = vadd.f32 %v1768, %v1880
      %v1882 = vpop.f32.mrb[0].mxu0
      %1883 = vmatprep.mubr.bf16.mxu0 0
      %1884 = vmatmul.mubr.bf16.gmra.mrb[0].mxu0 %v1694
      %v1885 = vpop.f32.mrb[0].mxu0
      %v1886 = vadd.f32 %v1773, %v1885
      %v1887 = vpop.f32.mrb[0].mxu0
      %v1888 = vpop.f32.mrb[0].mxu0
      %v1889 = vadd.f32 %v1776, %v1888
      %v1890 = vpop.f32.mrb[0].mxu0
      %1891 = vmatprep.mubr.bf16.mxu0 0
      %1892 = vmatmul.mubr.bf16.gmra.mrb[0].mxu0 %v1697
      %v1893 = vpop.f32.mrb[0].mxu0
      %v1894 = vadd.f32 %v1781, %v1893
      %v1895 = vpop.f32.mrb[0].mxu0
      %v1896 = vpop.f32.mrb[0].mxu0
      %v1897 = vadd.f32 %v1784, %v1896
      %v1898 = vpop.f32.mrb[0].mxu0
      %1899 = vmatprep.mubr.bf16.mxu0 0
      %1900 = vmatmul.mubr.bf16.gmra.mrb[0].mxu0 %v1700
      %v1901 = vpop.f32.mrb[0].mxu0
      %v1902 = vadd.f32 %v1789, %v1901
      %v1903 = vpop.f32.mrb[0].mxu0
      %v1904 = vpop.f32.mrb[0].mxu0
      %v1905 = vadd.f32 %v1792, %v1904
      %v1906 = vpop.f32.mrb[0].mxu0
      %1907 = vmatprep.mubr.bf16.mxu0 0
      %1908 = vmatmul.mubr.bf16.gmra.mrb[0].mxu0 %v1703
      %v1909 = vpop.f32.mrb[0].mxu0
      %v1910 = vadd.f32 %v1797, %v1909
      %v1911 = vpop.f32.mrb[0].mxu0
      %v1912 = vpop.f32.mrb[0].mxu0
      %v1913 = vadd.f32 %v1800, %v1912
      %v1914 = vpop.f32.mrb[0].mxu0
      %1915 = vmatprep.mubr.bf16.mxu0 0
      %1916 = vmatmul.mubr.bf16.gmra.mrb[0].mxu0 %v1706
      %v1917 = vpop.f32.mrb[0].mxu0
      %v1918 = vadd.f32 %v1805, %v1917
      %v1919 = vpop.f32.mrb[0].mxu0
      %v1920 = vpop.f32.mrb[0].mxu0
      %v1921 = vadd.f32 %v1808, %v1920
      %v1922 = vpop.f32.mrb[0].mxu0
      %1923 = vmatprep.mubr.bf16.mxu0 0
      %1924 = vmatmul.mubr.bf16.gmra.mrb[0].mxu0 %v1709
      %v1925 = vpop.f32.mrb[0].mxu0
      %v1926 = vadd.f32 %v1813, %v1925
      %v1927 = vpop.f32.mrb[0].mxu0
      %v1928 = vpop.f32.mrb[0].mxu0
      %v1929 = vadd.f32 %v1816, %v1928
      %v1930 = vpop.f32.mrb[0].mxu0
      %1931 = vmatprep.mubr.bf16.mxu0 0
      %1932 = vmatmul.mubr.bf16.gmra.mrb[0].mxu0 %v1712
      %v1933 = vpop.f32.mrb[0].mxu0
      %v1934 = vadd.f32 %v1821, %v1933
      %v1935 = vpop.f32.mrb[0].mxu0
      %v1936 = vpop.f32.mrb[0].mxu0
      %v1937 = vadd.f32 %v1824, %v1936
      %v1938 = vpop.f32.mrb[0].mxu0
      %1939 = vdwg.mxu0
      %v1940 = vmax.f32 %v1862, 0.0
      %v1941 = vmax.f32 %v1865, 0.0
      %v1942 = vmax.f32 %v1870, 0.0
      %v1943 = vmax.f32 %v1873, 0.0
      %v1944 = vmax.f32 %v1878, 0.0
      %v1945 = vmax.f32 %v1881, 0.0
      %v1946 = vmax.f32 %v1886, 0.0
      %v1947 = vmax.f32 %v1889, 0.0
      %v1948 = vmax.f32 %v1894, 0.0
      %v1949 = vmax.f32 %v1897, 0.0
      %v1950 = vmax.f32 %v1902, 0.0
      %v1951 = vmax.f32 %v1905, 0.0
      %v1952 = vmax.f32 %v1910, 0.0
      %v1953 = vmax.f32 %v1913, 0.0
      %v1954 = vmax.f32 %v1918, 0.0
      %v1955 = vmax.f32 %v1921, 0.0
      %v1956 = vmax.f32 %v1926, 0.0
      %v1957 = vmax.f32 %v1929, 0.0
      %v1958 = vmax.f32 %v1934, 0.0
      %v1959 = vmax.f32 %v1937, 0.0
      %1960 = vset.pattern.permute.xlu0 1
      %1961 = vperm.xlu0 %1960, %v357
      %v1962 = vpop.permute.xlu0 %1961
      %1964 = vset.pattern.permute.xlu0 1
      %1965 = vperm.xlu0 %1964, %v358
      %v1966 = vpop.permute.xlu0 %1965
      %1968 = vset.pattern.permute.xlu0 1
      %1969 = vperm.xlu0 %1968, %v360
      %v1970 = vpop.permute.xlu0 %1969
      %1972 = vset.pattern.permute.xlu0 1
      %1973 = vperm.xlu0 %1972, %v361
      %v1974 = vpop.permute.xlu0 %1973
      %1976 = vset.pattern.permute.xlu0 1
      %1977 = vperm.xlu0 %1976, %v363
      %v1978 = vpop.permute.xlu0 %1977
      %1980 = vset.pattern.permute.xlu0 1
      %1981 = vperm.xlu0 %1980, %v364
      %v1982 = vpop.permute.xlu0 %1981
      %1984 = vset.pattern.permute.xlu0 1
      %1985 = vperm.xlu0 %1984, %v366
      %v1986 = vpop.permute.xlu0 %1985
      %1988 = vset.pattern.permute.xlu0 1
      %1989 = vperm.xlu0 %1988, %v367
      %v1990 = vpop.permute.xlu0 %1989
      %1992 = vset.pattern.permute.xlu0 1
      %1993 = vperm.xlu0 %1992, %v369
      %v1994 = vpop.permute.xlu0 %1993
      %1996 = vset.pattern.permute.xlu0 1
      %1997 = vperm.xlu0 %1996, %v370
      %v1998 = vpop.permute.xlu0 %1997
      %2000 = vset.pattern.permute.xlu0 1
      %2001 = vperm.xlu0 %2000, %v372
      %v2002 = vpop.permute.xlu0 %2001
      %2004 = vset.pattern.permute.xlu0 1
      %2005 = vperm.xlu0 %2004, %v373
      %v2006 = vpop.permute.xlu0 %2005
      %2008 = vset.pattern.permute.xlu0 1
      %2009 = vperm.xlu0 %2008, %v375
      %v2010 = vpop.permute.xlu0 %2009
      %2012 = vset.pattern.permute.xlu0 1
      %2013 = vperm.xlu0 %2012, %v376
      %v2014 = vpop.permute.xlu0 %2013
      %2016 = vset.pattern.permute.xlu0 1
      %2017 = vperm.xlu0 %2016, %v378
      %v2018 = vpop.permute.xlu0 %2017
      %2020 = vset.pattern.permute.xlu0 1
      %2021 = vperm.xlu0 %2020, %v379
      %v2022 = vpop.permute.xlu0 %2021
      %2024 = vset.pattern.permute.xlu0 1
      %2025 = vperm.xlu0 %2024, %v381
      %v2026 = vpop.permute.xlu0 %2025
      %2028 = vset.pattern.permute.xlu0 1
      %2029 = vperm.xlu0 %2028, %v382
      %v2030 = vpop.permute.xlu0 %2029
      %2032 = vset.pattern.permute.xlu0 1
      %2033 = vperm.xlu0 %2032, %v384
      %v2034 = vpop.permute.xlu0 %2033
      %2036 = vset.pattern.permute.xlu0 1
      %2037 = vperm.xlu0 %2036, %v385
      %v2038 = vpop.permute.xlu0 %2037
      %v2040 = vmul.f32 %v1940, %v1962
      %v2041 = vmul.f32 %v1941, %v1966
      %v2042 = vmul.f32 %v1942, %v1970
      %v2043 = vmul.f32 %v1943, %v1974
      %v2044 = vmul.f32 %v1944, %v1978
      %v2045 = vmul.f32 %v1945, %v1982
      %v2046 = vmul.f32 %v1946, %v1986
      %v2047 = vmul.f32 %v1947, %v1990
      %v2048 = vmul.f32 %v1948, %v1994
      %v2049 = vmul.f32 %v1949, %v1998
      %v2050 = vmul.f32 %v1950, %v2002
      %v2051 = vmul.f32 %v1951, %v2006
      %v2052 = vmul.f32 %v1952, %v2010
      %v2053 = vmul.f32 %v1953, %v2014
      %v2054 = vmul.f32 %v1954, %v2018
      %v2055 = vmul.f32 %v1955, %v2022
      %v2056 = vmul.f32 %v1956, %v2026
      %v2057 = vmul.f32 %v1957, %v2030
      %v2058 = vmul.f32 %v1958, %v2034
      %v2059 = vmul.f32 %v1959, %v2038
      %v2060 = vpack.c.bf16 %v2041, %v2040
      %v2061 = vpack.c.bf16 %v2043, %v2042
      %v2062 = vpack.c.bf16 %v2045, %v2044
      %v2063 = vpack.c.bf16 %v2047, %v2046
      %v2064 = vpack.c.bf16 %v2049, %v2048
      %v2065 = vpack.c.bf16 %v2051, %v2050
      %v2066 = vpack.c.bf16 %v2053, %v2052
      %v2067 = vpack.c.bf16 %v2055, %v2054
      %v2068 = vpack.c.bf16 %v2057, %v2056
      %v2069 = vpack.c.bf16 %v2059, %v2058
      %v2071 = vshrl.u32 %v2060, 16
      %v2073 = vshll.u32 %v2060, 16
      %v2075 = vrot.slane %v2073, 1
      %v2076 = vor.u32 %v2071, %v2075
      %v2078 = vshrl.u32 %v2061, 16
      %v2080 = vshll.u32 %v2061, 16
      %v2082 = vrot.slane %v2080, 1
      %v2083 = vor.u32 %v2078, %v2082
      %v2085 = vshrl.u32 %v2062, 16
      %v2087 = vshll.u32 %v2062, 16
      %v2089 = vrot.slane %v2087, 1
      %v2090 = vor.u32 %v2085, %v2089
      %v2092 = vshrl.u32 %v2063, 16
      %v2094 = vshll.u32 %v2063, 16
      %v2096 = vrot.slane %v2094, 1
      %v2097 = vor.u32 %v2092, %v2096
      %v2099 = vshrl.u32 %v2064, 16
      %v2101 = vshll.u32 %v2064, 16
      %v2103 = vrot.slane %v2101, 1
      %v2104 = vor.u32 %v2099, %v2103
      %v2106 = vshrl.u32 %v2065, 16
      %v2108 = vshll.u32 %v2065, 16
      %v2110 = vrot.slane %v2108, 1
      %v2111 = vor.u32 %v2106, %v2110
      %v2113 = vshrl.u32 %v2066, 16
      %v2115 = vshll.u32 %v2066, 16
      %v2117 = vrot.slane %v2115, 1
      %v2118 = vor.u32 %v2113, %v2117
      %v2120 = vshrl.u32 %v2067, 16
      %v2122 = vshll.u32 %v2067, 16
      %v2124 = vrot.slane %v2122, 1
      %v2125 = vor.u32 %v2120, %v2124
      %2126 = vrot.lane.b32.xlu0 %v2076, 64
      %v2127 = vpop.permute.xlu0 %2126
      %2128 = vrot.lane.b32.xlu0 %v2083, 64
      %v2129 = vpop.permute.xlu0 %2128
      %2130 = vrot.lane.b32.xlu0 %v2090, 64
      %v2131 = vpop.permute.xlu0 %2130
      %2132 = vrot.lane.b32.xlu0 %v2097, 64
      %v2133 = vpop.permute.xlu0 %2132
      %2134 = vrot.lane.b32.xlu0 %v2104, 64
      %v2135 = vpop.permute.xlu0 %2134
      %2136 = vrot.lane.b32.xlu0 %v2111, 64
      %v2137 = vpop.permute.xlu0 %2136
      %2138 = vrot.lane.b32.xlu0 %v2118, 64
      %v2139 = vpop.permute.xlu0 %2138
      %2140 = vrot.lane.b32.xlu0 %v2125, 64
      %v2141 = vpop.permute.xlu0 %2140
      %v2150 = vrot.slane %v2060, 1
      %v2151 = vrot.slane %v2061, 1
      %v2152 = vrot.slane %v2062, 1
      %v2153 = vrot.slane %v2063, 1
      %v2154 = vrot.slane %v2064, 1
      %v2155 = vrot.slane %v2065, 1
      %v2156 = vrot.slane %v2066, 1
      %v2157 = vrot.slane %v2067, 1
      %2159 = vrot.lane.b32.xlu0 %v2061, 64
      %v2160 = vpop.permute.xlu0 %2159
      %2161 = vrot.lane.b32.xlu0 %v2062, 64
      %v2162 = vpop.permute.xlu0 %2161
      %2163 = vrot.lane.b32.xlu0 %v2063, 64
      %v2164 = vpop.permute.xlu0 %2163
      %2165 = vrot.lane.b32.xlu0 %v2064, 64
      %v2166 = vpop.permute.xlu0 %2165
      %2167 = vrot.lane.b32.xlu0 %v2065, 64
      %v2168 = vpop.permute.xlu0 %2167
      %2169 = vrot.lane.b32.xlu0 %v2066, 64
      %v2170 = vpop.permute.xlu0 %2169
      %2171 = vrot.lane.b32.xlu0 %v2067, 64
      %v2172 = vpop.permute.xlu0 %2171
      %2173 = vrot.lane.b32.xlu0 %v2068, 64
      %v2174 = vpop.permute.xlu0 %2173
      %v2176 = vshrl.u32 %v2068, 16
      %v2178 = vshll.u32 %v2068, 16
      %v2180 = vrot.slane %v2178, 1
      %v2181 = vor.u32 %v2176, %v2180
      %v2182 = vrot.slane %v2068, 1
      %2183 = vrot.lane.b32.xlu0 %v2151, 64
      %v2184 = vpop.permute.xlu0 %2183
      %2185 = vrot.lane.b32.xlu0 %v2152, 64
      %v2186 = vpop.permute.xlu0 %2185
      %2187 = vrot.lane.b32.xlu0 %v2153, 64
      %v2188 = vpop.permute.xlu0 %2187
      %2189 = vrot.lane.b32.xlu0 %v2154, 64
      %v2190 = vpop.permute.xlu0 %2189
      %2191 = vrot.lane.b32.xlu0 %v2155, 64
      %v2192 = vpop.permute.xlu0 %2191
      %2193 = vrot.lane.b32.xlu0 %v2156, 64
      %v2194 = vpop.permute.xlu0 %2193
      %2195 = vrot.lane.b32.xlu0 %v2157, 64
      %v2196 = vpop.permute.xlu0 %2195
      %2197 = vrot.lane.b32.xlu0 %v2182, 64
      %v2198 = vpop.permute.xlu0 %2197
      %v2200 = vshrl.u32 %v2069, 16
      %v2202 = vshll.u32 %v2069, 16
      %v2204 = vrot.slane %v2202, 1
      %v2205 = vor.u32 %v2200, %v2204
      %2206 = vrot.lane.b32.xlu0 %v2181, 64
      %v2207 = vpop.permute.xlu0 %2206
      %2208 = vrot.lane.b32.xlu0 %v2205, 64
      %v2209 = vpop.permute.xlu0 %2208
      %v2211 = vrot.slane %v2069, 1
      %v2213 = vsel %vm1403, %v2060, %v2127
      %v2215 = vsel %vm1403, %v2061, %v2129
      %v2217 = vsel %vm1403, %v2062, %v2131
      %v2219 = vsel %vm1403, %v2063, %v2133
      %v2221 = vsel %vm1403, %v2064, %v2135
      %v2223 = vsel %vm1403, %v2065, %v2137
      %v2225 = vsel %vm1403, %v2066, %v2139
      %v2227 = vsel %vm1403, %v2067, %v2141
      %v2230 = vsel %vm1403, %v2150, %v2160
      %v2233 = vsel %vm1403, %v2151, %v2162
      %v2236 = vsel %vm1403, %v2152, %v2164
      %v2239 = vsel %vm1403, %v2153, %v2166
      %v2242 = vsel %vm1403, %v2154, %v2168
      %v2245 = vsel %vm1403, %v2155, %v2170
      %v2248 = vsel %vm1403, %v2156, %v2172
      %v2251 = vsel %vm1403, %v2157, %v2174
      %v2254 = vsel %vm1403, %v2083, %v2184
      %v2257 = vsel %vm1403, %v2090, %v2186
      %v2260 = vsel %vm1403, %v2097, %v2188
      %v2263 = vsel %vm1403, %v2104, %v2190
      %v2266 = vsel %vm1403, %v2111, %v2192
      %v2269 = vsel %vm1403, %v2118, %v2194
      %v2272 = vsel %vm1403, %v2125, %v2196
      %v2275 = vsel %vm1403, %v2181, %v2198
      %v2277 = vsel %vm1403, %v2068, %v2207
      %v2279 = vsel %vm1403, %v2069, %v2209
      %v2306 = vunpack.c.l.b16 %v2213
      %v2307 = vunpack.c.l.b16 %v2230
      %v2308 = vunpack.c.l.b16 %v2254
      %v2309 = vunpack.c.l.b16 %v2217
      %v2310 = vunpack.c.l.b16 %v2152
      %v2311 = vunpack.c.l.b16 %v2215
      %v2312 = vunpack.c.l.b16 %v2233
      %v2313 = vunpack.c.l.b16 %v2257
      %v2314 = vunpack.c.l.b16 %v2219
      %v2315 = vunpack.c.l.b16 %v2153
      %v2316 = vunpack.c.l.b16 %v2236
      %v2317 = vunpack.c.l.b16 %v2260
      %v2318 = vunpack.c.l.b16 %v2221
      %v2319 = vunpack.c.l.b16 %v2154
      %v2320 = vunpack.c.l.b16 %v2239
      %v2321 = vunpack.c.l.b16 %v2263
      %v2322 = vunpack.c.l.b16 %v2223
      %v2323 = vunpack.c.l.b16 %v2155
      %v2324 = vunpack.c.l.b16 %v2242
      %v2325 = vunpack.c.l.b16 %v2266
      %v2326 = vunpack.c.l.b16 %v2225
      %v2327 = vunpack.c.l.b16 %v2156
      %v2328 = vunpack.c.l.b16 %v2245
      %v2329 = vunpack.c.l.b16 %v2269
      %v2330 = vunpack.c.l.b16 %v2227
      %v2331 = vunpack.c.l.b16 %v2157
      %v2332 = vunpack.c.l.b16 %v2248
      %v2333 = vunpack.c.l.b16 %v2272
      %v2334 = vunpack.c.l.b16 %v2277
      %v2335 = vunpack.c.l.b16 %v2182
      %v2336 = vunpack.c.l.b16 %v2251
      %v2337 = vunpack.c.l.b16 %v2275
      %v2338 = vunpack.c.l.b16 %v2279
      %v2339 = vunpack.c.l.b16 %v2211
      %v2340 = vld [vmem:[%s9 + $0x2] sm:$0x1]
      %v2341 = vld [vmem:[%s4] sm:$0xf]
      %v2342 = vld [vmem:[%s4 + $0x4] sm:$0xf]
      %v2343 = vld [vmem:[%s4 + $0x8] sm:$0xf]
      %v2344 = vld [vmem:[%s4 + $0xc] sm:$0xf]
      %v2345 = vld [vmem:[%s4 + $0x10] sm:$0xf]
      %v2346 = vld [vmem:[%s4 + $0x14] sm:$0xf]
      %v2347 = vld [vmem:[%s4 + $0x18] sm:$0xf]
      %v2348 = vld [vmem:[%s4 + $0x1c] sm:$0xf]
      %v2349 = vld [vmem:[%s4 + $0x20] sm:$0xf]
      %v2350 = vld [vmem:[%s4 + $0x24] sm:$0xf]
      %v2351 = vld [vmem:[%s4 + $0x28] sm:$0xf]
      %v2352 = vld [vmem:[%s4 + $0x2c] sm:$0xf]
      %v2353 = vld [vmem:[%s4 + $0x30] sm:$0xf]
      %v2354 = vld [vmem:[%s4 + $0x34] sm:$0xf]
      %v2355 = vld [vmem:[%s4 + $0x38] sm:$0xf]
      %v2356 = vld [vmem:[%s4 + $0x3c] sm:$0xf]
      %v2357 = vld [vmem:[%s4 + $0x40] sm:$0xf]
      %v2358 = vld [vmem:[%s4 + $0x44] sm:$0xf]
      %v2359 = vld [vmem:[%s4 + $0x48] sm:$0xf]
      %v2360 = vld [vmem:[%s4 + $0x4c] sm:$0xf]
      %v2361 = vld [vmem:[%s4 + $0x50] sm:$0xf]
      %v2362 = vld [vmem:[%s4 + $0x54] sm:$0xf]
      %v2363 = vld [vmem:[%s4 + $0x58] sm:$0xf]
      %v2364 = vld [vmem:[%s4 + $0x5c] sm:$0xf]
      %v2365 = vld [vmem:[%s4 + $0x60] sm:$0xf]
      %v2366 = vld [vmem:[%s4 + $0x64] sm:$0xf]
      %v2367 = vld [vmem:[%s4 + $0x68] sm:$0xf]
      %v2368 = vld [vmem:[%s4 + $0x6c] sm:$0xf]
      %v2369 = vld [vmem:[%s4 + $0x70] sm:$0xf]
      %v2370 = vld [vmem:[%s4 + $0x74] sm:$0xf]
      %v2371 = vld [vmem:[%s4 + $0x78] sm:$0xf]
      %v2372 = vld [vmem:[%s4 + $0x7c] sm:$0xf]
      %v2373 = vld [vmem:[%s4 + $0x80] sm:$0xf]
      %v2374 = vld [vmem:[%s4 + $0x84] sm:$0xf]
      %v2375 = vld [vmem:[%s4 + $0x88] sm:$0xf]
      %v2376 = vld [vmem:[%s4 + $0x8c] sm:$0xf]
      %v2377 = vld [vmem:[%s4 + $0x90] sm:$0xf]
      %v2378 = vld [vmem:[%s4 + $0x94] sm:$0xf]
      %v2379 = vld [vmem:[%s4 + $0x98] sm:$0xf]
      %v2380 = vld [vmem:[%s4 + $0x9c] sm:$0xf]
      %v2381 = vld [vmem:[%s4 + $0xa0] sm:$0xf]
      %v2382 = vld [vmem:[%s4 + $0xa4] sm:$0xf]
      %v2383 = vld [vmem:[%s4 + $0xa8] sm:$0xf]
      %v2384 = vld [vmem:[%s4 + $0xac] sm:$0xf]
      %v2385 = vld [vmem:[%s4 + $0xb0] sm:$0xf]
      %v2386 = vld [vmem:[%s4 + $0xb4] sm:$0xf]
      %v2387 = vld [vmem:[%s4 + $0xb8] sm:$0xf]
      %v2388 = vld [vmem:[%s4 + $0xbc] sm:$0xf]
      %v2389 = vld [vmem:[%s4 + $0xc0] sm:$0xf]
      %v2390 = vld [vmem:[%s4 + $0xc4] sm:$0xf]
      %v2391 = vld [vmem:[%s4 + $0xc8] sm:$0xf]
      %v2392 = vld [vmem:[%s4 + $0xcc] sm:$0xf]
      %v2393 = vld [vmem:[%s4 + $0xd0] sm:$0xf]
      %v2394 = vld [vmem:[%s4 + $0xd4] sm:$0xf]
      %v2395 = vld [vmem:[%s4 + $0xd8] sm:$0xf]
      %v2396 = vld [vmem:[%s4 + $0xdc] sm:$0xf]
      %v2397 = vld [vmem:[%s4 + $0xe0] sm:$0xf]
      %v2398 = vld [vmem:[%s4 + $0xe4] sm:$0xf]
      %v2399 = vld [vmem:[%s4 + $0xe8] sm:$0xf]
      %v2400 = vld [vmem:[%s4 + $0xec] sm:$0xf]
      %v2401 = vld [vmem:[%s4 + $0xf0] sm:$0xf]
      %v2402 = vld [vmem:[%s4 + $0xf4] sm:$0xf]
      %v2403 = vld [vmem:[%s4 + $0xf8] sm:$0xf]
      %v2404 = vld [vmem:[%s4 + $0xfc] sm:$0xf]
      %v2405 = vld [vmem:[%s4 + $0x100] sm:$0xf]
      %v2406 = vld [vmem:[%s4 + $0x104] sm:$0xf]
      %v2407 = vld [vmem:[%s4 + $0x108] sm:$0xf]
      %v2408 = vld [vmem:[%s4 + $0x10c] sm:$0xf]
      %v2409 = vld [vmem:[%s4 + $0x110] sm:$0xf]
      %v2410 = vld [vmem:[%s4 + $0x114] sm:$0xf]
      %v2411 = vld [vmem:[%s4 + $0x118] sm:$0xf]
      %v2412 = vld [vmem:[%s4 + $0x11c] sm:$0xf]
      %v2413 = vlaneseq
      %v2414 = vshrl.u32 %v2413, 7
      %v2415 = vsub.s32 0, %v2414
      %v2416 = vrot.slane %v2340, %v2415
      %v2417 = vpack.c.b16 %v2311, %v2306
      %v2418 = vpack.c.b16 %v2312, %v2307
      %v2419 = vpack.c.b16 %v2313, %v2308
      %v2420 = vpack.c.b16 %v2314, %v2309
      %v2421 = vpack.c.b16 %v2315, %v2310
      %v2422 = vpack.c.b16 %v2320, %v2316
      %v2423 = vpack.c.b16 %v2321, %v2317
      %v2424 = vpack.c.b16 %v2322, %v2318
      %v2425 = vpack.c.b16 %v2323, %v2319
      %v2426 = vpack.c.b16 %v2328, %v2324
      %v2427 = vpack.c.b16 %v2329, %v2325
      %v2428 = vpack.c.b16 %v2330, %v2326
      %v2429 = vpack.c.b16 %v2331, %v2327
      %v2430 = vpack.c.b16 %v2336, %v2332
      %v2431 = vpack.c.b16 %v2337, %v2333
      %v2432 = vpack.c.b16 %v2338, %v2334
      %v2433 = vpack.c.b16 %v2339, %v2335
      %v2519 = vunpack.c.l.b16 %v2341
      %v2520 = vunpack.c.l.b16 %v2342
      %v2521 = vunpack.c.l.b16 %v2343
      %v2522 = vunpack.c.l.b16 %v2344
      %v2523 = vunpack.c.l.b16 %v2345
      %v2524 = vunpack.c.l.b16 %v2346
      %v2525 = vunpack.c.l.b16 %v2347
      %v2526 = vunpack.c.l.b16 %v2348
      %v2527 = vunpack.c.l.b16 %v2349
      %v2528 = vunpack.c.l.b16 %v2350
      %v2529 = vunpack.c.l.b16 %v2351
      %v2530 = vunpack.c.l.b16 %v2352
      %v2531 = vunpack.c.l.b16 %v2353
      %v2532 = vunpack.c.l.b16 %v2354
      %v2533 = vunpack.c.l.b16 %v2355
      %v2534 = vunpack.c.l.b16 %v2356
      %v2535 = vunpack.c.l.b16 %v2357
      %v2536 = vunpack.c.l.b16 %v2358
      %v2537 = vunpack.c.l.b16 %v2359
      %v2538 = vunpack.c.l.b16 %v2360
      %v2539 = vunpack.c.l.b16 %v2361
      %v2540 = vunpack.c.l.b16 %v2362
      %v2541 = vunpack.c.l.b16 %v2363
      %v2542 = vunpack.c.l.b16 %v2364
      %v2543 = vunpack.c.l.b16 %v2365
      %v2544 = vunpack.c.l.b16 %v2366
      %v2545 = vunpack.c.l.b16 %v2367
      %v2546 = vunpack.c.l.b16 %v2368
      %v2547 = vunpack.c.l.b16 %v2369
      %v2548 = vunpack.c.l.b16 %v2370
      %v2549 = vunpack.c.l.b16 %v2371
      %v2550 = vunpack.c.l.b16 %v2372
      %v2551 = vunpack.c.l.b16 %v2373
      %v2552 = vunpack.c.l.b16 %v2374
      %v2553 = vunpack.c.l.b16 %v2375
      %v2554 = vunpack.c.l.b16 %v2376
      %v2555 = vunpack.c.l.b16 %v2377
      %v2556 = vunpack.c.l.b16 %v2378
      %v2557 = vunpack.c.l.b16 %v2379
      %v2558 = vunpack.c.l.b16 %v2380
      %v2559 = vunpack.c.l.b16 %v2381
      %v2560 = vunpack.c.l.b16 %v2382
      %v2561 = vunpack.c.l.b16 %v2383
      %v2562 = vunpack.c.l.b16 %v2384
      %v2563 = vunpack.c.l.b16 %v2385
      %v2564 = vunpack.c.l.b16 %v2386
      %v2565 = vunpack.c.l.b16 %v2387
      %v2566 = vunpack.c.l.b16 %v2388
      %v2567 = vunpack.c.l.b16 %v2389
      %v2568 = vunpack.c.l.b16 %v2390
      %v2569 = vunpack.c.l.b16 %v2391
      %v2570 = vunpack.c.l.b16 %v2392
      %v2571 = vunpack.c.l.b16 %v2393
      %v2572 = vunpack.c.l.b16 %v2394
      %v2573 = vunpack.c.l.b16 %v2395
      %v2574 = vunpack.c.l.b16 %v2396
      %v2575 = vunpack.c.l.b16 %v2397
      %v2576 = vunpack.c.l.b16 %v2398
      %v2577 = vunpack.c.l.b16 %v2399
      %v2578 = vunpack.c.l.b16 %v2400
      %v2579 = vunpack.c.l.b16 %v2401
      %v2580 = vunpack.c.l.b16 %v2402
      %v2581 = vunpack.c.l.b16 %v2403
      %v2582 = vunpack.c.l.b16 %v2404
      %v2583 = vunpack.c.l.b16 %v2405
      %v2584 = vunpack.c.l.b16 %v2406
      %v2585 = vunpack.c.l.b16 %v2407
      %v2586 = vunpack.c.l.b16 %v2408
      %v2587 = vunpack.c.l.b16 %v2409
      %v2588 = vunpack.c.l.b16 %v2410
      %v2589 = vunpack.c.l.b16 %v2411
      %v2590 = vunpack.c.l.b16 %v2412
      %v2591 = vpack.c.b16 %v2520, %v2519
      %v2592 = vpack.c.b16 %v2522, %v2521
      %v2593 = vpack.c.b16 %v2524, %v2523
      %v2594 = vpack.c.b16 %v2526, %v2525
      %v2595 = vpack.c.b16 %v2528, %v2527
      %v2596 = vpack.c.b16 %v2530, %v2529
      %v2597 = vpack.c.b16 %v2532, %v2531
      %v2598 = vpack.c.b16 %v2534, %v2533
      %v2599 = vpack.c.b16 %v2536, %v2535
      %v2600 = vpack.c.b16 %v2538, %v2537
      %v2601 = vpack.c.b16 %v2540, %v2539
      %v2602 = vpack.c.b16 %v2542, %v2541
      %v2603 = vpack.c.b16 %v2544, %v2543
      %v2604 = vpack.c.b16 %v2546, %v2545
      %v2605 = vpack.c.b16 %v2548, %v2547
      %v2606 = vpack.c.b16 %v2550, %v2549
      %v2607 = vpack.c.b16 %v2552, %v2551
      %v2608 = vpack.c.b16 %v2554, %v2553
      %v2609 = vpack.c.b16 %v2556, %v2555
      %v2610 = vpack.c.b16 %v2558, %v2557
      %v2611 = vpack.c.b16 %v2560, %v2559
      %v2612 = vpack.c.b16 %v2562, %v2561
      %v2613 = vpack.c.b16 %v2564, %v2563
      %v2614 = vpack.c.b16 %v2566, %v2565
      %v2615 = vpack.c.b16 %v2568, %v2567
      %v2616 = vpack.c.b16 %v2570, %v2569
      %v2617 = vpack.c.b16 %v2572, %v2571
      %v2618 = vpack.c.b16 %v2574, %v2573
      %v2619 = vpack.c.b16 %v2576, %v2575
      %v2620 = vpack.c.b16 %v2578, %v2577
      %v2621 = vpack.c.b16 %v2580, %v2579
      %v2622 = vpack.c.b16 %v2582, %v2581
      %v2623 = vpack.c.b16 %v2584, %v2583
      %v2624 = vpack.c.b16 %v2586, %v2585
      %v2625 = vpack.c.b16 %v2588, %v2587
      %v2626 = vpack.c.b16 %v2590, %v2589
      %v2664 = vsel %vm1403, %v2421, 0
      %v2667 = vsel %vm1403, %v2425, 0
      %v2670 = vsel %vm1403, %v2429, 0
      %v2673 = vsel %vm1403, %v2433, 0
      %2675 = vmatprep.subr.bf16.mxu0 0
      %2676 = vmatpush1.bf16.msra.mxu0 %v2591
      %2677 = vmatprep.subr.bf16.mxu0 0
      %2678 = vmatpush1.bf16.msra.mxu0 %v2592
      %2679 = vmatprep.subr.bf16.mxu0 0
      %2680 = vmatpush1.bf16.msra.mxu0 %v2593
      %2681 = vmatprep.subr.bf16.mxu0 0
      %2682 = vmatpush1.bf16.msra.mxu0 %v2594
      %2683 = vmatprep.subr.bf16.mxu0 0
      %2684 = vmatpush1.bf16.msra.mxu0 %v2595
      %2685 = vmatprep.subr.bf16.mxu0 0
      %2686 = vmatpush1.bf16.msra.mxu0 %v2596
      %2687 = vmatprep.subr.bf16.mxu0 0
      %2688 = vmatpush1.bf16.msra.mxu0 %v2597
      %2689 = vmatprep.subr.bf16.mxu0 0
      %2690 = vmatpush1.bf16.msra.mxu0 %v2598
      %2691 = vmatprep.subr.bf16.mxu0 0
      %2692 = vmatpush1.bf16.msra.mxu0 %v2599
      %2693 = vmatprep.subr.bf16.mxu0 0
      %2694 = vmatpush1.bf16.msra.mxu0 %v2600
      %2695 = vmatprep.subr.bf16.mxu0 0
      %2696 = vmatpush1.bf16.msra.mxu0 %v2601
      %2697 = vmatprep.subr.bf16.mxu0 0
      %2698 = vmatpush1.bf16.msra.mxu0 %v2602
      %2699 = vmatprep.subr.bf16.mxu0 0
      %2700 = vmatpush1.bf16.msra.mxu0 %v2603
      %2701 = vmatprep.subr.bf16.mxu0 0
      %2702 = vmatpush1.bf16.msra.mxu0 %v2604
      %2703 = vmatprep.subr.bf16.mxu0 0
      %2704 = vmatpush1.bf16.msra.mxu0 %v2605
      %2705 = vmatprep.subr.bf16.mxu0 0
      %2706 = vmatpush1.bf16.msra.mxu0 %v2606
      %2707 = vmatprep.mubr.bf16.mxu0 %v2418
      %2708 = vmatmul.mubr.bf16.gmra.mrb[0].mxu0 %v2417
      %v2709 = vpop.f32.mrb[0].mxu0
      %v2710 = vadd.f32 %v2416, %v2709
      %v2711 = vpop.f32.mrb[0].mxu0
      %v2712 = vpop.f32.mrb[0].mxu0
      %v2713 = vadd.f32 %v2416, %v2712
      %v2714 = vpop.f32.mrb[0].mxu0
      %2715 = vmatprep.mubr.bf16.mxu0 %v2422
      %2716 = vmatmul.mubr.bf16.gmra.mrb[0].mxu0 %v2420
      %v2717 = vpop.f32.mrb[0].mxu0
      %v2718 = vadd.f32 %v2416, %v2717
      %v2719 = vpop.f32.mrb[0].mxu0
      %v2720 = vpop.f32.mrb[0].mxu0
      %v2721 = vadd.f32 %v2416, %v2720
      %v2722 = vpop.f32.mrb[0].mxu0
      %2723 = vmatprep.mubr.bf16.mxu0 %v2426
      %2724 = vmatmul.mubr.bf16.gmra.mrb[0].mxu0 %v2424
      %v2725 = vpop.f32.mrb[0].mxu0
      %v2726 = vadd.f32 %v2416, %v2725
      %v2727 = vpop.f32.mrb[0].mxu0
      %v2728 = vpop.f32.mrb[0].mxu0
      %v2729 = vadd.f32 %v2416, %v2728
      %v2730 = vpop.f32.mrb[0].mxu0
      %2731 = vmatprep.mubr.bf16.mxu0 %v2430
      %2732 = vmatmul.mubr.bf16.gmra.mrb[0].mxu0 %v2428
      %v2733 = vpop.f32.mrb[0].mxu0
      %v2734 = vadd.f32 %v2416, %v2733
      %v2735 = vpop.f32.mrb[0].mxu0
      %v2736 = vpop.f32.mrb[0].mxu0
      %v2737 = vadd.f32 %v2416, %v2736
      %v2738 = vpop.f32.mrb[0].mxu0
      %2739 = vdwg.mxu0
      %2740 = vmatprep.subr.bf16.mxu0 0
      %2741 = vmatpush1.bf16.msra.mxu0 %v2607
      %2742 = vmatprep.subr.bf16.mxu0 0
      %2743 = vmatpush1.bf16.msra.mxu0 %v2608
      %2744 = vmatprep.subr.bf16.mxu0 0
      %2745 = vmatpush1.bf16.msra.mxu0 %v2609
      %2746 = vmatprep.subr.bf16.mxu0 0
      %2747 = vmatpush1.bf16.msra.mxu0 %v2610
      %2748 = vmatprep.subr.bf16.mxu0 0
      %2749 = vmatpush1.bf16.msra.mxu0 %v2611
      %2750 = vmatprep.subr.bf16.mxu0 0
      %2751 = vmatpush1.bf16.msra.mxu0 %v2612
      %2752 = vmatprep.subr.bf16.mxu0 0
      %2753 = vmatpush1.bf16.msra.mxu0 %v2613
      %2754 = vmatprep.subr.bf16.mxu0 0
      %2755 = vmatpush1.bf16.msra.mxu0 %v2614
      %2756 = vmatprep.subr.bf16.mxu0 0
      %2757 = vmatpush1.bf16.msra.mxu0 %v2615
      %2758 = vmatprep.subr.bf16.mxu0 0
      %2759 = vmatpush1.bf16.msra.mxu0 %v2616
      %2760 = vmatprep.subr.bf16.mxu0 0
      %2761 = vmatpush1.bf16.msra.mxu0 %v2617
      %2762 = vmatprep.subr.bf16.mxu0 0
      %2763 = vmatpush1.bf16.msra.mxu0 %v2618
      %2764 = vmatprep.subr.bf16.mxu0 0
      %2765 = vmatpush1.bf16.msra.mxu0 %v2619
      %2766 = vmatprep.subr.bf16.mxu0 0
      %2767 = vmatpush1.bf16.msra.mxu0 %v2620
      %2768 = vmatprep.subr.bf16.mxu0 0
      %2769 = vmatpush1.bf16.msra.mxu0 %v2621
      %2770 = vmatprep.subr.bf16.mxu0 0
      %2771 = vmatpush1.bf16.msra.mxu0 %v2622
      %2772 = vmatprep.mubr.bf16.mxu0 %v2420
      %2773 = vmatmul.mubr.bf16.gmra.mrb[0].mxu0 %v2419
      %v2774 = vpop.f32.mrb[0].mxu0
      %v2775 = vadd.f32 %v2710, %v2774
      %v2776 = vpop.f32.mrb[0].mxu0
      %v2777 = vpop.f32.mrb[0].mxu0
      %v2778 = vadd.f32 %v2713, %v2777
      %v2779 = vpop.f32.mrb[0].mxu0
      %2780 = vmatprep.mubr.bf16.mxu0 %v2424
      %2781 = vmatmul.mubr.bf16.gmra.mrb[0].mxu0 %v2423
      %v2782 = vpop.f32.mrb[0].mxu0
      %v2783 = vadd.f32 %v2718, %v2782
      %v2784 = vpop.f32.mrb[0].mxu0
      %v2785 = vpop.f32.mrb[0].mxu0
      %v2786 = vadd.f32 %v2721, %v2785
      %v2787 = vpop.f32.mrb[0].mxu0
      %2788 = vmatprep.mubr.bf16.mxu0 %v2428
      %2789 = vmatmul.mubr.bf16.gmra.mrb[0].mxu0 %v2427
      %v2790 = vpop.f32.mrb[0].mxu0
      %v2791 = vadd.f32 %v2726, %v2790
      %v2792 = vpop.f32.mrb[0].mxu0
      %v2793 = vpop.f32.mrb[0].mxu0
      %v2794 = vadd.f32 %v2729, %v2793
      %v2795 = vpop.f32.mrb[0].mxu0
      %2796 = vmatprep.mubr.bf16.mxu0 %v2432
      %2797 = vmatmul.mubr.bf16.gmra.mrb[0].mxu0 %v2431
      %v2798 = vpop.f32.mrb[0].mxu0
      %v2799 = vadd.f32 %v2734, %v2798
      %v2800 = vpop.f32.mrb[0].mxu0
      %v2801 = vpop.f32.mrb[0].mxu0
      %v2802 = vadd.f32 %v2737, %v2801
      %v2803 = vpop.f32.mrb[0].mxu0
      %2804 = vdwg.mxu0
      %2805 = vmatprep.subr.bf16.mxu0 0
      %2806 = vmatpush1.bf16.msra.mxu0 %v2623
      %2807 = vmatprep.subr.bf16.mxu0 0
      %2808 = vmatpush1.bf16.msra.mxu0 %v2624
      %2809 = vmatprep.subr.bf16.mxu0 0
      %2810 = vmatpush1.bf16.msra.mxu0 %v2625
      %2811 = vmatprep.subr.bf16.mxu0 0
      %2812 = vmatpush1.bf16.msra.mxu0 %v2626
      %2813 = vmatprep.subr.bf16.mxu0 0
      %2814 = vmatpush1.bf16.msra.mxu0 0
      %2815 = vmatprep.subr.bf16.mxu0 0
      %2816 = vmatpush1.bf16.msra.mxu0 0
      %2817 = vmatprep.subr.bf16.mxu0 0
      %2818 = vmatpush1.bf16.msra.mxu0 0
      %2819 = vmatprep.subr.bf16.mxu0 0
      %2820 = vmatpush1.bf16.msra.mxu0 0
      %2821 = vmatprep.subr.bf16.mxu0 0
      %2822 = vmatpush1.bf16.msra.mxu0 0
      %2823 = vmatprep.subr.bf16.mxu0 0
      %2824 = vmatpush1.bf16.msra.mxu0 0
      %2825 = vmatprep.subr.bf16.mxu0 0
      %2826 = vmatpush1.bf16.msra.mxu0 0
      %2827 = vmatprep.subr.bf16.mxu0 0
      %2828 = vmatpush1.bf16.msra.mxu0 0
      %2829 = vmatprep.subr.bf16.mxu0 0
      %2830 = vmatpush1.bf16.msra.mxu0 0
      %2831 = vmatprep.subr.bf16.mxu0 0
      %2832 = vmatpush1.bf16.msra.mxu0 0
      %2833 = vmatprep.subr.bf16.mxu0 0
      %2834 = vmatpush1.bf16.msra.mxu0 0
      %2835 = vmatprep.subr.bf16.mxu0 0
      %2836 = vmatpush1.bf16.msra.mxu0 0
      %2837 = vmatprep.mubr.bf16.mxu0 0
      %2838 = vmatmul.mubr.bf16.gmra.mrb[0].mxu0 %v2664
      %v2839 = vpop.f32.mrb[0].mxu0
      %v2840 = vadd.f32 %v2775, %v2839
      %v2841 = vpop.f32.mrb[0].mxu0
      %v2842 = vpop.f32.mrb[0].mxu0
      %v2843 = vadd.f32 %v2778, %v2842
      %v2844 = vpop.f32.mrb[0].mxu0
      %2845 = vmatprep.mubr.bf16.mxu0 0
      %2846 = vmatmul.mubr.bf16.gmra.mrb[0].mxu0 %v2667
      %v2847 = vpop.f32.mrb[0].mxu0
      %v2848 = vadd.f32 %v2783, %v2847
      %v2849 = vpop.f32.mrb[0].mxu0
      %v2850 = vpop.f32.mrb[0].mxu0
      %v2851 = vadd.f32 %v2786, %v2850
      %v2852 = vpop.f32.mrb[0].mxu0
      %2853 = vmatprep.mubr.bf16.mxu0 0
      %2854 = vmatmul.mubr.bf16.gmra.mrb[0].mxu0 %v2670
      %v2855 = vpop.f32.mrb[0].mxu0
      %v2856 = vadd.f32 %v2791, %v2855
      %v2857 = vpop.f32.mrb[0].mxu0
      %v2858 = vpop.f32.mrb[0].mxu0
      %v2859 = vadd.f32 %v2794, %v2858
      %v2860 = vpop.f32.mrb[0].mxu0
      %2861 = vmatprep.mubr.bf16.mxu0 0
      %2862 = vmatmul.mubr.bf16.gmra.mrb[0].mxu0 %v2673
      %v2863 = vpop.f32.mrb[0].mxu0
      %v2864 = vadd.f32 %v2799, %v2863
      %v2865 = vpop.f32.mrb[0].mxu0
      %v2866 = vpop.f32.mrb[0].mxu0
      %v2867 = vadd.f32 %v2802, %v2866
      %v2868 = vpop.f32.mrb[0].mxu0
      %2869 = vdwg.mxu0
      %v2870 = vmax.f32 %v2840, 0.0
      %v2871 = vmax.f32 %v2843, 0.0
      %v2872 = vmax.f32 %v2848, 0.0
      %v2873 = vmax.f32 %v2851, 0.0
      %v2874 = vmax.f32 %v2856, 0.0
      %v2875 = vmax.f32 %v2859, 0.0
      %v2876 = vmax.f32 %v2864, 0.0
      %v2877 = vmax.f32 %v2867, 0.0
      %v2878 = vpack.c.bf16 %v2871, %v2870
      %v2879 = vpack.c.bf16 %v2873, %v2872
      %v2880 = vpack.c.bf16 %v2875, %v2874
      %v2881 = vpack.c.bf16 %v2877, %v2876
      %v2882 = vld [vmem:[%s5] sm:$0xf]
      %v2883 = vld [vmem:[%s5 + $0x4] sm:$0xf]
      %v2884 = vld [vmem:[%s5 + $0x8] sm:$0xf]
      %v2885 = vld [vmem:[%s5 + $0xc] sm:$0xf]
      %v2886 = vld [vmem:[%s5 + $0x10] sm:$0xf]
      %v2887 = vld [vmem:[%s5 + $0x14] sm:$0xf]
      %v2888 = vld [vmem:[%s5 + $0x18] sm:$0xf]
      %v2889 = vld [vmem:[%s5 + $0x1c] sm:$0xf]
      %v2890 = vld [vmem:[%s5 + $0x20] sm:$0xf]
      %v2891 = vld [vmem:[%s5 + $0x24] sm:$0xf]
      %v2892 = vld [vmem:[%s5 + $0x28] sm:$0xf]
      %v2893 = vld [vmem:[%s5 + $0x2c] sm:$0xf]
      %v2894 = vld [vmem:[%s5 + $0x30] sm:$0xf]
      %v2895 = vld [vmem:[%s5 + $0x34] sm:$0xf]
      %v2896 = vld [vmem:[%s5 + $0x38] sm:$0xf]
      %v2897 = vld [vmem:[%s5 + $0x3c] sm:$0xf]
      %v2898 = vld [vmem:[%s9 + $0x3] sm:$0x1]
      %v2899 = vlaneseq
      %v2900 = vshrl.u32 %v2899, 7
      %v2901 = vsub.s32 0, %v2900
      %v2902 = vrot.slane %v2898, %v2901
      %v2919 = vunpack.c.l.b16 %v2882
      %v2920 = vunpack.c.l.b16 %v2883
      %v2921 = vunpack.c.l.b16 %v2884
      %v2922 = vunpack.c.l.b16 %v2885
      %v2923 = vunpack.c.l.b16 %v2886
      %v2924 = vunpack.c.l.b16 %v2887
      %v2925 = vunpack.c.l.b16 %v2888
      %v2926 = vunpack.c.l.b16 %v2889
      %v2927 = vunpack.c.l.b16 %v2890
      %v2928 = vunpack.c.l.b16 %v2891
      %v2929 = vunpack.c.l.b16 %v2892
      %v2930 = vunpack.c.l.b16 %v2893
      %v2931 = vunpack.c.l.b16 %v2894
      %v2932 = vunpack.c.l.b16 %v2895
      %v2933 = vunpack.c.l.b16 %v2896
      %v2934 = vunpack.c.l.b16 %v2897
      %v2935 = vpack.c.b16 %v2920, %v2919
      %v2936 = vpack.c.b16 %v2922, %v2921
      %v2937 = vpack.c.b16 %v2924, %v2923
      %v2938 = vpack.c.b16 %v2926, %v2925
      %v2939 = vpack.c.b16 %v2928, %v2927
      %v2940 = vpack.c.b16 %v2930, %v2929
      %v2941 = vpack.c.b16 %v2932, %v2931
      %v2942 = vpack.c.b16 %v2934, %v2933
      %2951 = vmatprep.subr.bf16.mxu0 0
      %2952 = vmatpush1.bf16.msra.mxu0 %v2935
      %2953 = vmatprep.subr.bf16.mxu0 0
      %2954 = vmatpush1.bf16.msra.mxu0 %v2936
      %2955 = vmatprep.subr.bf16.mxu0 0
      %2956 = vmatpush1.bf16.msra.mxu0 %v2937
      %2957 = vmatprep.subr.bf16.mxu0 0
      %2958 = vmatpush1.bf16.msra.mxu0 %v2938
      %2959 = vmatprep.subr.bf16.mxu0 0
      %2960 = vmatpush1.bf16.msra.mxu0 %v2939
      %2961 = vmatprep.subr.bf16.mxu0 0
      %2962 = vmatpush1.bf16.msra.mxu0 %v2940
      %2963 = vmatprep.subr.bf16.mxu0 0
      %2964 = vmatpush1.bf16.msra.mxu0 %v2941
      %2965 = vmatprep.subr.bf16.mxu0 0
      %2966 = vmatpush1.bf16.msra.mxu0 %v2942
      %2967 = vmatprep.subr.bf16.mxu0 0
      %2968 = vmatpush1.bf16.msra.mxu0 0
      %2969 = vmatprep.subr.bf16.mxu0 0
      %2970 = vmatpush1.bf16.msra.mxu0 0
      %2971 = vmatprep.subr.bf16.mxu0 0
      %2972 = vmatpush1.bf16.msra.mxu0 0
      %2973 = vmatprep.subr.bf16.mxu0 0
      %2974 = vmatpush1.bf16.msra.mxu0 0
      %2975 = vmatprep.subr.bf16.mxu0 0
      %2976 = vmatpush1.bf16.msra.mxu0 0
      %2977 = vmatprep.subr.bf16.mxu0 0
      %2978 = vmatpush1.bf16.msra.mxu0 0
      %2979 = vmatprep.subr.bf16.mxu0 0
      %2980 = vmatpush1.bf16.msra.mxu0 0
      %2981 = vmatprep.subr.bf16.mxu0 0
      %2982 = vmatpush1.bf16.msra.mxu0 0
      %2983 = vmatprep.mubr.bf16.mxu0 0
      %2984 = vmatmul.mubr.bf16.gmra.mrb[0].mxu0 %v2878
      %v2985 = vpop.f32.mrb[0].mxu0
      %v2986 = vadd.f32 %v2902, %v2985
      %v2987 = vpop.f32.mrb[0].mxu0
      %v2988 = vpop.f32.mrb[0].mxu0
      %v2989 = vadd.f32 %v2902, %v2988
      %v2990 = vpop.f32.mrb[0].mxu0
      %2991 = vmatprep.mubr.bf16.mxu0 0
      %2992 = vmatmul.mubr.bf16.gmra.mrb[0].mxu0 %v2879
      %v2993 = vpop.f32.mrb[0].mxu0
      %v2994 = vadd.f32 %v2902, %v2993
      %v2995 = vpop.f32.mrb[0].mxu0
      %v2996 = vpop.f32.mrb[0].mxu0
      %v2997 = vadd.f32 %v2902, %v2996
      %v2998 = vpop.f32.mrb[0].mxu0
      %2999 = vmatprep.mubr.bf16.mxu0 0
      %3000 = vmatmul.mubr.bf16.gmra.mrb[0].mxu0 %v2880
      %v3001 = vpop.f32.mrb[0].mxu0
      %v3002 = vadd.f32 %v2902, %v3001
      %v3003 = vpop.f32.mrb[0].mxu0
      %v3004 = vpop.f32.mrb[0].mxu0
      %v3005 = vadd.f32 %v2902, %v3004
      %v3006 = vpop.f32.mrb[0].mxu0
      %3007 = vmatprep.mubr.bf16.mxu0 0
      %3008 = vmatmul.mubr.bf16.gmra.mrb[0].mxu0 %v2881
      %v3009 = vpop.f32.mrb[0].mxu0
      %v3010 = vadd.f32 %v2902, %v3009
      %v3011 = vpop.f32.mrb[0].mxu0
      %v3012 = vpop.f32.mrb[0].mxu0
      %v3013 = vadd.f32 %v2902, %v3012
      %v3014 = vpop.f32.mrb[0].mxu0
      %3015 = vdwg.mxu0
      %v3016 = vmax.f32 %v2986, 0.0
      %v3017 = vmax.f32 %v2989, 0.0
      %v3018 = vmax.f32 %v2994, 0.0
      %v3019 = vmax.f32 %v2997, 0.0
      %v3020 = vmax.f32 %v3002, 0.0
      %v3021 = vmax.f32 %v3005, 0.0
      %v3022 = vmax.f32 %v3010, 0.0
      %v3023 = vmax.f32 %v3013, 0.0
      %3024 = vxpose.xlu0.b32.start [1/16] %v3016, 128
      %3025 = vxpose.xlu0.b32.cont [2/16] %v3017, 128
      %3026 = vxpose.xlu0.b32.cont [3/16] %v3018, 128
      %3027 = vxpose.xlu0.b32.cont [4/16] %v3019, 128
      %3028 = vxpose.xlu0.b32.cont [5/16] %v3020, 128
      %3029 = vxpose.xlu0.b32.cont [6/16] %v3021, 128
      %3030 = vxpose.xlu0.b32.cont [7/16] %v3022, 128
      %3031 = vxpose.xlu0.b32.cont [8/16] %v3023, 128
      %3032 = vxpose.xlu0.b32.cont [9/16] 0.0, 128
      %3033 = vxpose.xlu0.b32.cont [10/16] 0.0, 128
      %3034 = vxpose.xlu0.b32.cont [11/16] 0.0, 128
      %3035 = vxpose.xlu0.b32.cont [12/16] 0.0, 128
      %3036 = vxpose.xlu0.b32.cont [13/16] 0.0, 128
      %3037 = vxpose.xlu0.b32.cont [14/16] 0.0, 128
      %3038 = vxpose.xlu0.b32.cont [15/16] 0.0, 128
      %3039 = vxpose.xlu0.b32.end [16/16] 0.0, 128
      %v3040 = vpop.trf.xlu0
      %v3041 = vpop.trf.xlu0
      %v3042 = vpop.trf.xlu0
      %v3043 = vpop.trf.xlu0
      %v3044 = vpop.trf.xlu0
      %v3045 = vpop.trf.xlu0
      %v3046 = vpop.trf.xlu0
      %v3047 = vpop.trf.xlu0
      %v3048 = vpop.trf.xlu0
      %v3049 = vpop.trf.xlu0
      %v3050 = vpop.trf.xlu0
      %v3051 = vpop.trf.xlu0
      %v3052 = vpop.trf.xlu0
      %v3053 = vpop.trf.xlu0
      %v3054 = vpop.trf.xlu0
      %v3055 = vpop.trf.xlu0
      %v3056 = vld [vmem:[%s9 + $0x4] sm:$0x1]
      %v3057 = vpack.c.bf16 %v3040, %v3040
      %v3058 = vld [vmem:[%s6] sm:$0xf]
      %v3059 = vld [vmem:[%s6 + $0x4] sm:$0xf]
      %v3060 = vld [vmem:[%s6 + $0x8] sm:$0xf]
      %v3061 = vld [vmem:[%s6 + $0xc] sm:$0xf]
      %v3062 = vld [vmem:[%s6 + $0x10] sm:$0xf]
      %v3063 = vld [vmem:[%s6 + $0x14] sm:$0xf]
      %v3064 = vld [vmem:[%s6 + $0x18] sm:$0xf]
      %v3065 = vld [vmem:[%s6 + $0x1c] sm:$0xf]
      %v3074 = vunpack.c.l.b16 %v3058
      %v3075 = vunpack.c.l.b16 %v3059
      %v3076 = vunpack.c.l.b16 %v3060
      %v3077 = vunpack.c.l.b16 %v3061
      %v3078 = vunpack.c.l.b16 %v3062
      %v3079 = vunpack.c.l.b16 %v3063
      %v3080 = vunpack.c.l.b16 %v3064
      %v3081 = vunpack.c.l.b16 %v3065
      %v3082 = vpack.c.b16 %v3075, %v3074
      %v3083 = vpack.c.b16 %v3077, %v3076
      %v3084 = vpack.c.b16 %v3079, %v3078
      %v3085 = vpack.c.b16 %v3081, %v3080
      %v3091 = vsel %vm1403, %v3057, 0
      %3093 = vmatprep.subr.bf16.mxu0 0
      %3094 = vmatpush1.bf16.msra.mxu0 %v3082
      %3095 = vmatprep.subr.bf16.mxu0 0
      %3096 = vmatpush1.bf16.msra.mxu0 %v3083
      %3097 = vmatprep.subr.bf16.mxu0 0
      %3098 = vmatpush1.bf16.msra.mxu0 %v3084
      %3099 = vmatprep.subr.bf16.mxu0 0
      %3100 = vmatpush1.bf16.msra.mxu0 %v3085
      %3101 = vmatprep.subr.bf16.mxu0 0
      %3102 = vmatpush1.bf16.msra.mxu0 0
      %3103 = vmatprep.subr.bf16.mxu0 0
      %3104 = vmatpush1.bf16.msra.mxu0 0
      %3105 = vmatprep.subr.bf16.mxu0 0
      %3106 = vmatpush1.bf16.msra.mxu0 0
      %3107 = vmatprep.subr.bf16.mxu0 0
      %3108 = vmatpush1.bf16.msra.mxu0 0
      %3109 = vmatprep.subr.bf16.mxu0 0
      %3110 = vmatpush1.bf16.msra.mxu0 0
      %3111 = vmatprep.subr.bf16.mxu0 0
      %3112 = vmatpush1.bf16.msra.mxu0 0
      %3113 = vmatprep.subr.bf16.mxu0 0
      %3114 = vmatpush1.bf16.msra.mxu0 0
      %3115 = vmatprep.subr.bf16.mxu0 0
      %3116 = vmatpush1.bf16.msra.mxu0 0
      %3117 = vmatprep.subr.bf16.mxu0 0
      %3118 = vmatpush1.bf16.msra.mxu0 0
      %3119 = vmatprep.subr.bf16.mxu0 0
      %3120 = vmatpush1.bf16.msra.mxu0 0
      %3121 = vmatprep.subr.bf16.mxu0 0
      %3122 = vmatpush1.bf16.msra.mxu0 0
      %3123 = vmatprep.subr.bf16.mxu0 0
      %3124 = vmatpush1.bf16.msra.mxu0 0
      %3125 = vmatprep.mubr.bf16.mxu0 0
      %3126 = vmatmul.mubr.bf16.gmra.mrb[0].mxu0 %v3091
      %v3127 = vpop.f32.mrb[0].mxu0
      %v3128 = vadd.f32 0.0, %v3127
      %v3129 = vpop.f32.mrb[0].mxu0
      %v3130 = vpop.f32.mrb[0].mxu0
      %v3131 = vpop.f32.mrb[0].mxu0
      %3132 = vdwg.mxu0
      %v3133 = vadd.f32 %v3056, %v3128
      %s3134 = scalar_lea.vmem %s6, 32
      %v3135 = vld [vmem:[%s3134] sm:$0xf]
      %v3136 = vld [vmem:[%s3134 + $0x4] sm:$0xf]
      %v3137 = vld [vmem:[%s3134 + $0x8] sm:$0xf]
      %v3138 = vld [vmem:[%s3134 + $0xc] sm:$0xf]
      %v3139 = vld [vmem:[%s3134 + $0x10] sm:$0xf]
      %v3140 = vld [vmem:[%s3134 + $0x14] sm:$0xf]
      %v3141 = vld [vmem:[%s3134 + $0x18] sm:$0xf]
      %v3142 = vld [vmem:[%s3134 + $0x1c] sm:$0xf]
      %v3143 = vshrl.u32 %v3057, 16
      %v3153 = vunpack.c.l.b16 %v3135
      %v3154 = vunpack.c.l.b16 %v3136
      %v3155 = vunpack.c.l.b16 %v3137
      %v3156 = vunpack.c.l.b16 %v3138
      %v3157 = vunpack.c.l.b16 %v3139
      %v3158 = vunpack.c.l.b16 %v3140
      %v3159 = vunpack.c.l.b16 %v3141
      %v3160 = vunpack.c.l.b16 %v3142
      %v3161 = vpack.c.b16 %v3154, %v3153
      %v3162 = vpack.c.b16 %v3156, %v3155
      %v3163 = vpack.c.b16 %v3158, %v3157
      %v3164 = vpack.c.b16 %v3160, %v3159
      %v3170 = vsel %vm1403, %v3143, 0
      %3172 = vmatprep.subr.bf16.mxu0 0
      %3173 = vmatpush1.bf16.msra.mxu0 %v3161
      %3174 = vmatprep.subr.bf16.mxu0 0
      %3175 = vmatpush1.bf16.msra.mxu0 %v3162
      %3176 = vmatprep.subr.bf16.mxu0 0
      %3177 = vmatpush1.bf16.msra.mxu0 %v3163
      %3178 = vmatprep.subr.bf16.mxu0 0
      %3179 = vmatpush1.bf16.msra.mxu0 %v3164
      %3180 = vmatprep.subr.bf16.mxu0 0
      %3181 = vmatpush1.bf16.msra.mxu0 0
      %3182 = vmatprep.subr.bf16.mxu0 0
      %3183 = vmatpush1.bf16.msra.mxu0 0
      %3184 = vmatprep.subr.bf16.mxu0 0
      %3185 = vmatpush1.bf16.msra.mxu0 0
      %3186 = vmatprep.subr.bf16.mxu0 0
      %3187 = vmatpush1.bf16.msra.mxu0 0
      %3188 = vmatprep.subr.bf16.mxu0 0
      %3189 = vmatpush1.bf16.msra.mxu0 0
      %3190 = vmatprep.subr.bf16.mxu0 0
      %3191 = vmatpush1.bf16.msra.mxu0 0
      %3192 = vmatprep.subr.bf16.mxu0 0
      %3193 = vmatpush1.bf16.msra.mxu0 0
      %3194 = vmatprep.subr.bf16.mxu0 0
      %3195 = vmatpush1.bf16.msra.mxu0 0
      %3196 = vmatprep.subr.bf16.mxu0 0
      %3197 = vmatpush1.bf16.msra.mxu0 0
      %3198 = vmatprep.subr.bf16.mxu0 0
      %3199 = vmatpush1.bf16.msra.mxu0 0
      %3200 = vmatprep.subr.bf16.mxu0 0
      %3201 = vmatpush1.bf16.msra.mxu0 0
      %3202 = vmatprep.subr.bf16.mxu0 0
      %3203 = vmatpush1.bf16.msra.mxu0 0
      %3204 = vmatprep.mubr.bf16.mxu0 0
      %3205 = vmatmul.mubr.bf16.gmra.mrb[0].mxu0 %v3170
      %v3206 = vpop.f32.mrb[0].mxu0
      %v3207 = vadd.f32 0.0, %v3206
      %v3208 = vpop.f32.mrb[0].mxu0
      %v3209 = vpop.f32.mrb[0].mxu0
      %v3210 = vpop.f32.mrb[0].mxu0
      %3211 = vdwg.mxu0
      %v3212 = vadd.f32 %v3133, %v3207
      %s3213 = scalar_lea.vmem %s6, 64
      %v3214 = vld [vmem:[%s3213] sm:$0xf]
      %v3215 = vld [vmem:[%s3213 + $0x4] sm:$0xf]
      %v3216 = vld [vmem:[%s3213 + $0x8] sm:$0xf]
      %v3217 = vld [vmem:[%s3213 + $0xc] sm:$0xf]
      %v3218 = vld [vmem:[%s3213 + $0x10] sm:$0xf]
      %v3219 = vld [vmem:[%s3213 + $0x14] sm:$0xf]
      %v3220 = vld [vmem:[%s3213 + $0x18] sm:$0xf]
      %v3221 = vld [vmem:[%s3213 + $0x1c] sm:$0xf]
      %v3223 = vrot.slane %v3057, 1
      %v3232 = vunpack.c.l.b16 %v3214
      %v3233 = vunpack.c.l.b16 %v3215
      %v3234 = vunpack.c.l.b16 %v3216
      %v3235 = vunpack.c.l.b16 %v3217
      %v3236 = vunpack.c.l.b16 %v3218
      %v3237 = vunpack.c.l.b16 %v3219
      %v3238 = vunpack.c.l.b16 %v3220
      %v3239 = vunpack.c.l.b16 %v3221
      %v3240 = vpack.c.b16 %v3233, %v3232
      %v3241 = vpack.c.b16 %v3235, %v3234
      %v3242 = vpack.c.b16 %v3237, %v3236
      %v3243 = vpack.c.b16 %v3239, %v3238
      %v3249 = vsel %vm1403, %v3223, 0
      %3251 = vmatprep.subr.bf16.mxu0 0
      %3252 = vmatpush1.bf16.msra.mxu0 %v3240
      %3253 = vmatprep.subr.bf16.mxu0 0
      %3254 = vmatpush1.bf16.msra.mxu0 %v3241
      %3255 = vmatprep.subr.bf16.mxu0 0
      %3256 = vmatpush1.bf16.msra.mxu0 %v3242
      %3257 = vmatprep.subr.bf16.mxu0 0
      %3258 = vmatpush1.bf16.msra.mxu0 %v3243
      %3259 = vmatprep.subr.bf16.mxu0 0
      %3260 = vmatpush1.bf16.msra.mxu0 0
      %3261 = vmatprep.subr.bf16.mxu0 0
      %3262 = vmatpush1.bf16.msra.mxu0 0
      %3263 = vmatprep.subr.bf16.mxu0 0
      %3264 = vmatpush1.bf16.msra.mxu0 0
      %3265 = vmatprep.subr.bf16.mxu0 0
      %3266 = vmatpush1.bf16.msra.mxu0 0
      %3267 = vmatprep.subr.bf16.mxu0 0
      %3268 = vmatpush1.bf16.msra.mxu0 0
      %3269 = vmatprep.subr.bf16.mxu0 0
      %3270 = vmatpush1.bf16.msra.mxu0 0
      %3271 = vmatprep.subr.bf16.mxu0 0
      %3272 = vmatpush1.bf16.msra.mxu0 0
      %3273 = vmatprep.subr.bf16.mxu0 0
      %3274 = vmatpush1.bf16.msra.mxu0 0
      %3275 = vmatprep.subr.bf16.mxu0 0
      %3276 = vmatpush1.bf16.msra.mxu0 0
      %3277 = vmatprep.subr.bf16.mxu0 0
      %3278 = vmatpush1.bf16.msra.mxu0 0
      %3279 = vmatprep.subr.bf16.mxu0 0
      %3280 = vmatpush1.bf16.msra.mxu0 0
      %3281 = vmatprep.subr.bf16.mxu0 0
      %3282 = vmatpush1.bf16.msra.mxu0 0
      %3283 = vmatprep.mubr.bf16.mxu0 0
      %3284 = vmatmul.mubr.bf16.gmra.mrb[0].mxu0 %v3249
      %v3285 = vpop.f32.mrb[0].mxu0
      %v3286 = vadd.f32 0.0, %v3285
      %v3287 = vpop.f32.mrb[0].mxu0
      %v3288 = vpop.f32.mrb[0].mxu0
      %v3289 = vpop.f32.mrb[0].mxu0
      %3290 = vdwg.mxu0
      %v3291 = vadd.f32 %v3212, %v3286
      %s3292 = scalar_lea.vmem %s6, 96
      %v3293 = vld [vmem:[%s3292] sm:$0xf]
      %v3294 = vld [vmem:[%s3292 + $0x4] sm:$0xf]
      %v3295 = vld [vmem:[%s3292 + $0x8] sm:$0xf]
      %v3296 = vld [vmem:[%s3292 + $0xc] sm:$0xf]
      %v3297 = vld [vmem:[%s3292 + $0x10] sm:$0xf]
      %v3298 = vld [vmem:[%s3292 + $0x14] sm:$0xf]
      %v3299 = vld [vmem:[%s3292 + $0x18] sm:$0xf]
      %v3300 = vld [vmem:[%s3292 + $0x1c] sm:$0xf]
      %v3301 = vrot.slane %v3143, 1
      %v3310 = vunpack.c.l.b16 %v3293
      %v3311 = vunpack.c.l.b16 %v3294
      %v3312 = vunpack.c.l.b16 %v3295
      %v3313 = vunpack.c.l.b16 %v3296
      %v3314 = vunpack.c.l.b16 %v3297
      %v3315 = vunpack.c.l.b16 %v3298
      %v3316 = vunpack.c.l.b16 %v3299
      %v3317 = vunpack.c.l.b16 %v3300
      %v3318 = vpack.c.b16 %v3311, %v3310
      %v3319 = vpack.c.b16 %v3313, %v3312
      %v3320 = vpack.c.b16 %v3315, %v3314
      %v3321 = vpack.c.b16 %v3317, %v3316
      %v3327 = vsel %vm1403, %v3301, 0
      %3329 = vmatprep.subr.bf16.mxu0 0
      %3330 = vmatpush1.bf16.msra.mxu0 %v3318
      %3331 = vmatprep.subr.bf16.mxu0 0
      %3332 = vmatpush1.bf16.msra.mxu0 %v3319
      %3333 = vmatprep.subr.bf16.mxu0 0
      %3334 = vmatpush1.bf16.msra.mxu0 %v3320
      %3335 = vmatprep.subr.bf16.mxu0 0
      %3336 = vmatpush1.bf16.msra.mxu0 %v3321
      %3337 = vmatprep.subr.bf16.mxu0 0
      %3338 = vmatpush1.bf16.msra.mxu0 0
      %3339 = vmatprep.subr.bf16.mxu0 0
      %3340 = vmatpush1.bf16.msra.mxu0 0
      %3341 = vmatprep.subr.bf16.mxu0 0
      %3342 = vmatpush1.bf16.msra.mxu0 0
      %3343 = vmatprep.subr.bf16.mxu0 0
      %3344 = vmatpush1.bf16.msra.mxu0 0
      %3345 = vmatprep.subr.bf16.mxu0 0
      %3346 = vmatpush1.bf16.msra.mxu0 0
      %3347 = vmatprep.subr.bf16.mxu0 0
      %3348 = vmatpush1.bf16.msra.mxu0 0
      %3349 = vmatprep.subr.bf16.mxu0 0
      %3350 = vmatpush1.bf16.msra.mxu0 0
      %3351 = vmatprep.subr.bf16.mxu0 0
      %3352 = vmatpush1.bf16.msra.mxu0 0
      %3353 = vmatprep.subr.bf16.mxu0 0
      %3354 = vmatpush1.bf16.msra.mxu0 0
      %3355 = vmatprep.subr.bf16.mxu0 0
      %3356 = vmatpush1.bf16.msra.mxu0 0
      %3357 = vmatprep.subr.bf16.mxu0 0
      %3358 = vmatpush1.bf16.msra.mxu0 0
      %3359 = vmatprep.subr.bf16.mxu0 0
      %3360 = vmatpush1.bf16.msra.mxu0 0
      %3361 = vmatprep.mubr.bf16.mxu0 0
      %3362 = vmatmul.mubr.bf16.gmra.mrb[0].mxu0 %v3327
      %v3363 = vpop.f32.mrb[0].mxu0
      %v3364 = vadd.f32 0.0, %v3363
      %v3365 = vpop.f32.mrb[0].mxu0
      %v3366 = vpop.f32.mrb[0].mxu0
      %v3367 = vpop.f32.mrb[0].mxu0
      %3368 = vdwg.mxu0
      %v3369 = vadd.f32 %v3291, %v3364
      %vm3370 = vcmask 516096
      %v3371 = vsel %vm3370, %v3369, -inf
      %3372 = vmax.xlane.f32.xlu0 %v3371
      %v3373 = vpop.xlane.xlu0 %3372
      %v3374 = vsub.f32 %v3369, %v3373
      %v3375 = vmul.f32 %v3374, 1.442695
      %v3376 = vpow.pop %v3375
      %v3377 = vsel %vm3370, %v3376, 0.0
      %3378 = vadd.xlane.f32.xlu0 %v3377
      %v3379 = vpop.xlane.xlu0 %3378
      %v3380 = vlog2.pop %v3379
      %v3381 = vmul.f32 %v3380, 0.6931472
      %v3382 = vsub.f32 %v3374, %v3381
      %v3383 = vld [vmem:[%s9 + $0x5] sm:$0x1]
      %v3384 = vld [vmem:[%s7] sm:$0xf]
      %v3385 = vld [vmem:[%s7 + $0x4] sm:$0xf]
      %v3386 = vld [vmem:[%s7 + $0x8] sm:$0xf]
      %v3387 = vld [vmem:[%s7 + $0xc] sm:$0xf]
      %v3388 = vld [vmem:[%s7 + $0x10] sm:$0xf]
      %v3389 = vld [vmem:[%s7 + $0x14] sm:$0xf]
      %v3390 = vld [vmem:[%s7 + $0x18] sm:$0xf]
      %v3391 = vld [vmem:[%s7 + $0x1c] sm:$0xf]
      %v3392 = vrot.slane %v3057, 2
      %v3401 = vunpack.c.l.b16 %v3384
      %v3402 = vunpack.c.l.b16 %v3385
      %v3403 = vunpack.c.l.b16 %v3386
      %v3404 = vunpack.c.l.b16 %v3387
      %v3405 = vunpack.c.l.b16 %v3388
      %v3406 = vunpack.c.l.b16 %v3389
      %v3407 = vunpack.c.l.b16 %v3390
      %v3408 = vunpack.c.l.b16 %v3391
      %v3409 = vpack.c.b16 %v3402, %v3401
      %v3410 = vpack.c.b16 %v3404, %v3403
      %v3411 = vpack.c.b16 %v3406, %v3405
      %v3412 = vpack.c.b16 %v3408, %v3407
      %v3418 = vsel %vm1403, %v3392, 0
      %3420 = vmatprep.subr.bf16.mxu0 0
      %3421 = vmatpush1.bf16.msra.mxu0 %v3409
      %3422 = vmatprep.subr.bf16.mxu0 0
      %3423 = vmatpush1.bf16.msra.mxu0 %v3410
      %3424 = vmatprep.subr.bf16.mxu0 0
      %3425 = vmatpush1.bf16.msra.mxu0 %v3411
      %3426 = vmatprep.subr.bf16.mxu0 0
      %3427 = vmatpush1.bf16.msra.mxu0 %v3412
      %3428 = vmatprep.subr.bf16.mxu0 0
      %3429 = vmatpush1.bf16.msra.mxu0 0
      %3430 = vmatprep.subr.bf16.mxu0 0
      %3431 = vmatpush1.bf16.msra.mxu0 0
      %3432 = vmatprep.subr.bf16.mxu0 0
      %3433 = vmatpush1.bf16.msra.mxu0 0
      %3434 = vmatprep.subr.bf16.mxu0 0
      %3435 = vmatpush1.bf16.msra.mxu0 0
      %3436 = vmatprep.subr.bf16.mxu0 0
      %3437 = vmatpush1.bf16.msra.mxu0 0
      %3438 = vmatprep.subr.bf16.mxu0 0
      %3439 = vmatpush1.bf16.msra.mxu0 0
      %3440 = vmatprep.subr.bf16.mxu0 0
      %3441 = vmatpush1.bf16.msra.mxu0 0
      %3442 = vmatprep.subr.bf16.mxu0 0
      %3443 = vmatpush1.bf16.msra.mxu0 0
      %3444 = vmatprep.subr.bf16.mxu0 0
      %3445 = vmatpush1.bf16.msra.mxu0 0
      %3446 = vmatprep.subr.bf16.mxu0 0
      %3447 = vmatpush1.bf16.msra.mxu0 0
      %3448 = vmatprep.subr.bf16.mxu0 0
      %3449 = vmatpush1.bf16.msra.mxu0 0
      %3450 = vmatprep.subr.bf16.mxu0 0
      %3451 = vmatpush1.bf16.msra.mxu0 0
      %3452 = vmatprep.mubr.bf16.mxu0 0
      %3453 = vmatmul.mubr.bf16.gmra.mrb[0].mxu0 %v3418
      %v3454 = vpop.f32.mrb[0].mxu0
      %v3455 = vadd.f32 0.0, %v3454
      %v3456 = vpop.f32.mrb[0].mxu0
      %v3457 = vpop.f32.mrb[0].mxu0
      %v3458 = vpop.f32.mrb[0].mxu0
      %3459 = vdwg.mxu0
      %v3460 = vadd.f32 %v3383, %v3455
      %s3461 = scalar_lea.vmem %s7, 32
      %v3462 = vld [vmem:[%s3461] sm:$0xf]
      %v3463 = vld [vmem:[%s3461 + $0x4] sm:$0xf]
      %v3464 = vld [vmem:[%s3461 + $0x8] sm:$0xf]
      %v3465 = vld [vmem:[%s3461 + $0xc] sm:$0xf]
      %v3466 = vld [vmem:[%s3461 + $0x10] sm:$0xf]
      %v3467 = vld [vmem:[%s3461 + $0x14] sm:$0xf]
      %v3468 = vld [vmem:[%s3461 + $0x18] sm:$0xf]
      %v3469 = vld [vmem:[%s3461 + $0x1c] sm:$0xf]
      %v3470 = vrot.slane %v3143, 2
      %v3479 = vunpack.c.l.b16 %v3462
      %v3480 = vunpack.c.l.b16 %v3463
      %v3481 = vunpack.c.l.b16 %v3464
      %v3482 = vunpack.c.l.b16 %v3465
      %v3483 = vunpack.c.l.b16 %v3466
      %v3484 = vunpack.c.l.b16 %v3467
      %v3485 = vunpack.c.l.b16 %v3468
      %v3486 = vunpack.c.l.b16 %v3469
      %v3487 = vpack.c.b16 %v3480, %v3479
      %v3488 = vpack.c.b16 %v3482, %v3481
      %v3489 = vpack.c.b16 %v3484, %v3483
      %v3490 = vpack.c.b16 %v3486, %v3485
      %v3496 = vsel %vm1403, %v3470, 0
      %3498 = vmatprep.subr.bf16.mxu0 0
      %3499 = vmatpush1.bf16.msra.mxu0 %v3487
      %3500 = vmatprep.subr.bf16.mxu0 0
      %3501 = vmatpush1.bf16.msra.mxu0 %v3488
      %3502 = vmatprep.subr.bf16.mxu0 0
      %3503 = vmatpush1.bf16.msra.mxu0 %v3489
      %3504 = vmatprep.subr.bf16.mxu0 0
      %3505 = vmatpush1.bf16.msra.mxu0 %v3490
      %3506 = vmatprep.subr.bf16.mxu0 0
      %3507 = vmatpush1.bf16.msra.mxu0 0
      %3508 = vmatprep.subr.bf16.mxu0 0
      %3509 = vmatpush1.bf16.msra.mxu0 0
      %3510 = vmatprep.subr.bf16.mxu0 0
      %3511 = vmatpush1.bf16.msra.mxu0 0
      %3512 = vmatprep.subr.bf16.mxu0 0
      %3513 = vmatpush1.bf16.msra.mxu0 0
      %3514 = vmatprep.subr.bf16.mxu0 0
      %3515 = vmatpush1.bf16.msra.mxu0 0
      %3516 = vmatprep.subr.bf16.mxu0 0
      %3517 = vmatpush1.bf16.msra.mxu0 0
      %3518 = vmatprep.subr.bf16.mxu0 0
      %3519 = vmatpush1.bf16.msra.mxu0 0
      %3520 = vmatprep.subr.bf16.mxu0 0
      %3521 = vmatpush1.bf16.msra.mxu0 0
      %3522 = vmatprep.subr.bf16.mxu0 0
      %3523 = vmatpush1.bf16.msra.mxu0 0
      %3524 = vmatprep.subr.bf16.mxu0 0
      %3525 = vmatpush1.bf16.msra.mxu0 0
      %3526 = vmatprep.subr.bf16.mxu0 0
      %3527 = vmatpush1.bf16.msra.mxu0 0
      %3528 = vmatprep.subr.bf16.mxu0 0
      %3529 = vmatpush1.bf16.msra.mxu0 0
      %3530 = vmatprep.mubr.bf16.mxu0 0
      %3531 = vmatmul.mubr.bf16.gmra.mrb[0].mxu0 %v3496
      %v3532 = vpop.f32.mrb[0].mxu0
      %v3533 = vadd.f32 0.0, %v3532
      %v3534 = vpop.f32.mrb[0].mxu0
      %v3535 = vpop.f32.mrb[0].mxu0
      %v3536 = vpop.f32.mrb[0].mxu0
      %3537 = vdwg.mxu0
      %v3538 = vadd.f32 %v3460, %v3533
      %v3539 = vmax.f32 %v3538, 0.0
      %v3540 = vpack.c.bf16 %v3539, %v3539
      %v3541 = vld [vmem:[%s8] sm:$0xf]
      %v3542 = vld [vmem:[%s8 + $0x4] sm:$0xf]
      %v3543 = vld [vmem:[%s8 + $0x8] sm:$0xf]
      %v3544 = vld [vmem:[%s8 + $0xc] sm:$0xf]
      %v3545 = vld [vmem:[%s8 + $0x10] sm:$0xf]
      %v3546 = vld [vmem:[%s8 + $0x14] sm:$0xf]
      %v3547 = vld [vmem:[%s8 + $0x18] sm:$0xf]
      %v3548 = vld [vmem:[%s8 + $0x1c] sm:$0xf]
      %v3549 = vld [vmem:[%s9 + $0x6] sm:$0x1]
      %v3558 = vunpack.c.l.b16 %v3541
      %v3559 = vunpack.c.l.b16 %v3542
      %v3560 = vunpack.c.l.b16 %v3543
      %v3561 = vunpack.c.l.b16 %v3544
      %v3562 = vunpack.c.l.b16 %v3545
      %v3563 = vunpack.c.l.b16 %v3546
      %v3564 = vunpack.c.l.b16 %v3547
      %v3565 = vunpack.c.l.b16 %v3548
      %v3566 = vpack.c.b16 %v3559, %v3558
      %v3567 = vpack.c.b16 %v3561, %v3560
      %v3568 = vpack.c.b16 %v3563, %v3562
      %v3569 = vpack.c.b16 %v3565, %v3564
      %v3575 = vsel %vm1403, %v3540, 0
      %3577 = vmatprep.subr.bf16.mxu0 0
      %3578 = vmatpush1.bf16.msra.mxu0 %v3566
      %3579 = vmatprep.subr.bf16.mxu0 0
      %3580 = vmatpush1.bf16.msra.mxu0 %v3567
      %3581 = vmatprep.subr.bf16.mxu0 0
      %3582 = vmatpush1.bf16.msra.mxu0 %v3568
      %3583 = vmatprep.subr.bf16.mxu0 0
      %3584 = vmatpush1.bf16.msra.mxu0 %v3569
      %3585 = vmatprep.subr.bf16.mxu0 0
      %3586 = vmatpush1.bf16.msra.mxu0 0
      %3587 = vmatprep.subr.bf16.mxu0 0
      %3588 = vmatpush1.bf16.msra.mxu0 0
      %3589 = vmatprep.subr.bf16.mxu0 0
      %3590 = vmatpush1.bf16.msra.mxu0 0
      %3591 = vmatprep.subr.bf16.mxu0 0
      %3592 = vmatpush1.bf16.msra.mxu0 0
      %3593 = vmatprep.subr.bf16.mxu0 0
      %3594 = vmatpush1.bf16.msra.mxu0 0
      %3595 = vmatprep.subr.bf16.mxu0 0
      %3596 = vmatpush1.bf16.msra.mxu0 0
      %3597 = vmatprep.subr.bf16.mxu0 0
      %3598 = vmatpush1.bf16.msra.mxu0 0
      %3599 = vmatprep.subr.bf16.mxu0 0
      %3600 = vmatpush1.bf16.msra.mxu0 0
      %3601 = vmatprep.subr.bf16.mxu0 0
      %3602 = vmatpush1.bf16.msra.mxu0 0
      %3603 = vmatprep.subr.bf16.mxu0 0
      %3604 = vmatpush1.bf16.msra.mxu0 0
      %3605 = vmatprep.subr.bf16.mxu0 0
      %3606 = vmatpush1.bf16.msra.mxu0 0
      %3607 = vmatprep.subr.bf16.mxu0 0
      %3608 = vmatpush1.bf16.msra.mxu0 0
      %3609 = vmatprep.mubr.bf16.mxu0 0
      %3610 = vmatmul.mubr.bf16.gmra.mrb[0].mxu0 %v3575
      %v3611 = vpop.f32.mrb[0].mxu0
      %v3612 = vadd.f32 %v3549, %v3611
      %v3613 = vpop.f32.mrb[0].mxu0
      %v3614 = vpop.f32.mrb[0].mxu0
      %v3615 = vpop.f32.mrb[0].mxu0
      %3616 = vdwg.mxu0
      %v3617 = vtanh.pop %v3612
      %3619 = vrot.lane.b32.xlu0 %v3617, 64
      %v3620 = vpop.permute.xlu0 %3619
      %v3622 = vsel %vm1403, %v3382, %v3620
      %3623 = vst [vmem:[%s355] sm:$0x1] %v3622
      %p3624 = scmp.lt.s32.totalorder %s21, 1
      %s3625 = scalar_select %p3624, %s21, 1
      %s3626 = scalar_lea.vmem %s10, %s3625
      // Predicated region
      $region61: #{net_forward.1} parent=59 // pred_check
        %p3627 = pneg %p254
      $region62: #{net_forward.1} parent=59 // pred_check_branch
        %3629 = sbr.rel (%p3627) target = $region64
      $region63: #{net_forward.1} parent=59 // pred_region
        _
      $region64: #{net_forward.1} parent=59 // pred_fallthru
        _
    $region60: #{net_forward.1} parent=5 // pred_fallthru
      _
    %p3630 = scmp.le.s32.totalorder 2, %s16
    // Predicated region
    $region65: #{net_forward.1} parent=5 // pred_check
      %p3631 = pneg %p3630
    $region66: #{net_forward.1} parent=5 // pred_check_branch
      %3633 = sbr.rel (%p3631) target = $region68
    $region67: #{net_forward.1} parent=5 // pred_region
      %s3634 = ssub.s32 %s16, 2
      // Predicated region
      $region69: #{net_forward.1} parent=67 // pred_check
        %p3635 = pneg %p260
      $region70: #{net_forward.1} parent=67 // pred_check_branch
        %3637 = sbr.rel (%p3635) target = $region72
      $region71: #{net_forward.1} parent=67 // pred_region
        %p3638 = scmp.lt.s32.totalorder %s22, 1
        %s3639 = scalar_select %p3638, %s22, 1
        %s3640 = scalar_lea.vmem %s10, %s3639
      $region72: #{net_forward.1} parent=67 // pred_fallthru
        _
    $region68: #{net_forward.1} parent=5 // pred_fallthru
      _
  $region6: #{net_forward.1} parent=0 // loop_footer
    %s20 = sadd.s32 1, %s16
  $region7: #{net_forward.1} parent=0 // loop_footer_branch
    %15 = sbr.rel target = $region3
  $region8: #{net_forward.1} parent=0 // loop_exit
    _

</llo_original>
